<compile_context>
chip_gen: v5e
topology: v5e:2x2
jax: 0.10.0
libtpu: 0.0.40
codegen_flags: <defaults>
</compile_context>

<pallas_src>
import functools

import jax
import jax.numpy as jnp
from jax.experimental import pallas as pl
from jax.experimental.pallas import tpu as pltpu

LANE = 128            # TPU lane width; all channel dims are padded to this
BN_EPS = 1e-5
NEG_LARGE = -1e30     # spatial padding value for max pooling


# ------------------------------ tiling helpers ------------------------------

def _pick_tm(m):
    """Row-tile size: as large as possible, 128/256/512-aligned when divisible."""
    for t in (512, 256, 128):
        if m % t == 0:
            return t
    return m            # small toy M: single full-M tile (block == full dim)


def _pick_tk(k):
    """K-tile: largest multiple of 128 dividing K, capped at 1024."""
    best = 128
    d = 128
    while d <= min(k, 1024):
        if k % d == 0:
            best = d
        d += 128
    return best


# ---------------------------- Pallas kernels ----------------------------

def _conv_gemm_kernel(a_ref, b_ref, y_ref, stats_ref, acc_ref):
    """Tiled bf16 GEMM with f32 accumulation + fused BN-statistics epilogue."""
    k = pl.program_id(1)

    @pl.when(k == 0)
    def _():
        acc_ref[...] = jnp.zeros_like(acc_ref)

    acc_ref[...] += jnp.dot(a_ref[...], b_ref[...],
                            preferred_element_type=jnp.float32)

    @pl.when(k == pl.num_programs(1) - 1)
    def _():
        acc = acc_ref[...]
        y_ref[...] = acc
        # Per-M-tile partial BatchNorm statistics (reduced in the wrapper).
        stats_ref[0, 0:1, :] = jnp.sum(acc, axis=0, keepdims=True)
        stats_ref[0, 1:2, :] = jnp.sum(acc * acc, axis=0, keepdims=True)


def _bn_scale_shift(s_ref, g_ref, b_ref, inv_m):
    mean = s_ref[0:1, :] * inv_m
    var = jnp.maximum(s_ref[1:2, :] * inv_m - mean * mean, 0.0)
    scale = g_ref[...] * jax.lax.rsqrt(var + BN_EPS)
    shift = b_ref[...] - mean * scale
    return scale, shift


def _bn_apply_kernel(y_ref, s_ref, g_ref, b_ref, o_ref, *, inv_m, relu):
    scale, shift = _bn_scale_shift(s_ref, g_ref, b_ref, inv_m)
    y = y_ref[...] * scale + shift
    if relu:
        y = jnp.maximum(y, 0.0)
    o_ref[...] = y


def _bn_apply_res_relu_kernel(y_ref, s_ref, g_ref, b_ref, r_ref, o_ref, *, inv_m):
    scale, shift = _bn_scale_shift(s_ref, g_ref, b_ref, inv_m)
    y = y_ref[...] * scale + shift + r_ref[...]
    o_ref[...] = jnp.maximum(y, 0.0)


def _maxpool_kernel(ee_ref, eo_ref, oe_ref, oo_ref, o_ref, *, OH, OW):
    # 3x3 / stride-2 max pool over phase-split inputs: every window element is
    # a contiguous (unit-stride) sub-window of one of the four phase tensors.
    m = ee_ref[0, 0:OH, 0:OW, :]
    m = jnp.maximum(m, ee_ref[0, 0:OH, 1:OW + 1, :])
    m = jnp.maximum(m, ee_ref[0, 1:OH + 1, 0:OW, :])
    m = jnp.maximum(m, ee_ref[0, 1:OH + 1, 1:OW + 1, :])
    m = jnp.maximum(m, eo_ref[0, 0:OH, 0:OW, :])
    m = jnp.maximum(m, eo_ref[0, 1:OH + 1, 0:OW, :])
    m = jnp.maximum(m, oe_ref[0, 0:OH, 0:OW, :])
    m = jnp.maximum(m, oe_ref[0, 0:OH, 1:OW + 1, :])
    m = jnp.maximum(m, oo_ref[0, 0:OH, 0:OW, :])
    o_ref[0] = m


def _avg_fc_kernel(x_ref, w_ref, b_ref, o_ref):
    pooled = jnp.mean(x_ref[...], axis=1)                 # (N, C) global avg pool
    o_ref[...] = jnp.dot(pooled, w_ref[...],
                         preferred_element_type=jnp.float32) + b_ref[...]


# ---------------------------- Pallas wrappers ----------------------------

_FULL_VMEM = pl.BlockSpec(memory_space=pltpu.MemorySpace.VMEM)


def pallas_conv_gemm(a, b):
    """a: (M, K) bf16 im2col patches; b: (K, Cout) bf16 weight matrix.
    Returns y (M, Cout) f32 and per-channel [sum, sumsq] stats (2, Cout) f32."""
    M, K = a.shape
    Cout = b.shape[1]
    tm, tk = _pick_tm(M), _pick_tk(K)
    nm, nk = M // tm, K // tk
    cost = pl.CostEstimate(
        flops=2 * M * K * Cout, transcendentals=0,
        bytes_accessed=a.size * 2 + b.size * 2 + M * Cout * 4)
    y, part = pl.pallas_call(
        _conv_gemm_kernel,
        out_shape=(jax.ShapeDtypeStruct((M, Cout), jnp.float32),
                   jax.ShapeDtypeStruct((nm, 2, Cout), jnp.float32)),
        grid=(nm, nk),
        in_specs=[pl.BlockSpec((tm, tk), lambda i, k: (i, k)),
                  pl.BlockSpec((tk, Cout), lambda i, k: (k, 0))],
        out_specs=(pl.BlockSpec((tm, Cout), lambda i, k: (i, 0)),
                   pl.BlockSpec((1, 2, Cout), lambda i, k: (i, 0, 0))),
        scratch_shapes=[pltpu.VMEM((tm, Cout), jnp.float32)],
        compiler_params=pltpu.CompilerParams(
            dimension_semantics=("parallel", "arbitrary"),
            vmem_limit_bytes=32 * 1024 * 1024),
        cost_estimate=cost,
    )(a, b)
    return y, jnp.sum(part, axis=0)                       # (2, Cout) full stats


def pallas_bn_apply(y, stats, gamma, beta, *, relu, residual=None):
    """Tiled BatchNorm apply (+ optional residual add + ReLU)."""
    M, C = y.shape
    tm = _pick_tm(M)
    nm = M // tm
    row_spec = pl.BlockSpec((tm, C), lambda i: (i, 0))
    stat_spec = pl.BlockSpec((2, C), lambda i: (0, 0))
    vec_spec = pl.BlockSpec((1, C), lambda i: (0, 0))
    args = [y, stats, gamma.reshape(1, C), beta.reshape(1, C)]
    in_specs = [row_spec, stat_spec, vec_spec, vec_spec]
    if residual is None:
        kern = functools.partial(_bn_apply_kernel, inv_m=1.0 / M, relu=relu)
        aliases = {}
    else:
        kern = functools.partial(_bn_apply_res_relu_kernel, inv_m=1.0 / M)
        args.append(residual)
        in_specs.append(row_spec)
        aliases = {4: 0}            # reuse the residual buffer for the output
    return pl.pallas_call(
        kern,
        out_shape=jax.ShapeDtypeStruct((M, C), jnp.float32),
        grid=(nm,),
        in_specs=in_specs,
        out_specs=row_spec,
        input_output_aliases=aliases,
        compiler_params=pltpu.CompilerParams(dimension_semantics=("parallel",)),
    )(*args)


def maxpool2d(x):
    """MaxPool2d(kernel_size=3, stride=2, padding=1) on NHWC, lane-dense C."""
    N, H, W, C = x.shape
    OH = (H + 2 - 3) // 2 + 1
    OW = (W + 2 - 3) // 2 + 1
    Hp, Wp = H + 2, W + 2
    eh, ew = Hp % 2, Wp % 2                               # pad to even extents
    xp = jnp.pad(x, ((0, 0), (1, 1 + eh), (1, 1 + ew), (0, 0)),
                 constant_values=NEG_LARGE)
    Hp, Wp = Hp + eh, Wp + ew
    H2, W2 = Hp // 2, Wp // 2
    # Phase split (no data inflation): h = 2*h2 + hp, w = 2*w2 + wp.
    xr = xp.reshape(N, H2, 2, W2, 2, C)
    ee = xr[:, :, 0, :, 0, :]
    eo = xr[:, :, 0, :, 1, :]
    oe = xr[:, :, 1, :, 0, :]
    oo = xr[:, :, 1, :, 1, :]
    in_spec = pl.BlockSpec((1, H2, W2, C), lambda n: (n, 0, 0, 0))
    return pl.pallas_call(
        functools.partial(_maxpool_kernel, OH=OH, OW=OW),
        out_shape=jax.ShapeDtypeStruct((N, OH, OW, C), jnp.float32),
        grid=(N,),
        in_specs=[in_spec, in_spec, in_spec, in_spec],
        out_specs=pl.BlockSpec((1, OH, OW, C), lambda n: (n, 0, 0, 0)),
        compiler_params=pltpu.CompilerParams(dimension_semantics=("parallel",)),
    )(ee, eo, oe, oo)


def pallas_avgpool_fc(x, w, b):
    """Global average pool over the (flattened) spatial axis + linear layer."""
    N = x.shape[0]
    O = w.shape[1]
    return pl.pallas_call(
        _avg_fc_kernel,
        out_shape=jax.ShapeDtypeStruct((N, O), jnp.float32),
        in_specs=[_FULL_VMEM, _FULL_VMEM, _FULL_VMEM],
        out_specs=_FULL_VMEM,
    )(x, w, b.reshape(1, O))


# ---------------------------- JAX glue (layout / im2col) ----------------------------

def _im2col(x, ksize, stride, padding):
    # TODO(synk): at production activation sizes this should become an
    # implicit-GEMM (window-shift BlockSpecs / in-kernel strided loads) so the
    # KH*KW-inflated patch matrix never hits HBM; at these toy shapes the
    # inflation is a few hundred KB, so the bf16, kernel-position-major patch
    # matrix is built here and K-tiled inside the GEMM kernel instead.
    N, H, W, C = x.shape
    OH = (H + 2 * padding - ksize) // stride + 1
    OW = (W + 2 * padding - ksize) // stride + 1
    xp = jnp.pad(x.astype(jnp.bfloat16),
                 ((0, 0), (padding, padding), (padding, padding), (0, 0)))
    cols = []
    for kh in range(ksize):
        for kw in range(ksize):
            cols.append(xp[:, kh:kh + stride * OH:stride,
                           kw:kw + stride * OW:stride, :])
    patches = jnp.stack(cols, axis=3)                     # (N, OH, OW, KK, C)
    patches = patches.reshape(N * OH * OW, ksize * ksize * C)
    return patches, (N, OH, OW)


def conv_bn(x, cp, *, relu, residual=None):
    """conv (no bias) -> BatchNorm (batch stats) [-> +residual] [-> ReLU]."""
    patches, (N, OH, OW) = _im2col(x, cp['ksize'], cp['stride'], cp['pad'])
    y, stats = pallas_conv_gemm(patches, cp['wmat'])
    M, Cout = y.shape
    res = None if residual is None else residual.reshape(M, Cout)
    out = pallas_bn_apply(y, stats, cp['gamma'], cp['beta'],
                          relu=relu, residual=res)
    return out.reshape(N, OH, OW, Cout)


# ---------------------------- Parameters & forward ----------------------------

def _conv_param(key, cout, cin, ksize, stride, pad):
    fan_in = cin * ksize * ksize
    w = jax.random.normal(key, (cout, cin, ksize, ksize), jnp.float32)
    w = w * (2.0 / fan_in) ** 0.5
    # Pre-transpose to (kh, kw, cin, cout), zero-pad channels to the lane width
    # and keep the GEMM operand resident in bf16 (done once at init time).
    wmat = jnp.zeros((ksize, ksize, LANE, LANE), jnp.float32)
    wmat = wmat.at[:, :, :cin, :cout].set(jnp.transpose(w, (2, 3, 1, 0)))
    wmat = wmat.reshape(ksize * ksize * LANE, LANE).astype(jnp.bfloat16)
    gamma = jnp.zeros((LANE,), jnp.float32).at[:cout].set(1.0)
    beta = jnp.zeros((LANE,), jnp.float32)
    return {'wmat': wmat, 'gamma': gamma, 'beta': beta,
            'ksize': ksize, 'stride': stride, 'pad': pad}


def init_params(key, input_size, output_size, hidden_sizes):
    keys = iter(jax.random.split(key, 64))
    p = {'conv1': _conv_param(next(keys), hidden_sizes[0], input_size, 7, 2, 3)}

    def block_params(cin, cout, stride):
        bp = {'conv1': _conv_param(next(keys), cout, cin, 3, stride, 1),
              'conv2': _conv_param(next(keys), cout, cout, 3, 1, 1)}
        if stride != 1:                  # downsample: conv3x3 stride-2 + BN
            bp['down'] = _conv_param(next(keys), cout, cin, 3, stride, 1)
        return bp

    def make_block(cin, cout, stride):
        return [block_params(cin, cout, stride), block_params(cout, cout, 1)]

    p['res1'] = make_block(hidden_sizes[0], hidden_sizes[1], 1)
    p['res2'] = make_block(hidden_sizes[1], hidden_sizes[2], 2)
    p['res3'] = make_block(hidden_sizes[2], hidden_sizes[3], 2)
    p['res4'] = make_block(hidden_sizes[3], hidden_sizes[4], 2)

    fcw = jax.random.normal(next(keys), (hidden_sizes[4], output_size),
                            jnp.float32) * (1.0 / hidden_sizes[4]) ** 0.5
    p['fc_w'] = jnp.zeros((LANE, LANE), jnp.float32).at[
        :hidden_sizes[4], :output_size].set(fcw)
    p['fc_b'] = jnp.zeros((LANE,), jnp.float32)
    p['num_classes'] = output_size
    return p


def res_block_forward(x, bp):
    identity = conv_bn(x, bp['down'], relu=False) if 'down' in bp else x
    out = conv_bn(x, bp['conv1'], relu=True)
    out = conv_bn(out, bp['conv2'], relu=True, residual=identity)
    return out


def resnet_forward(params, x_nchw):
    x = jnp.transpose(x_nchw, (0, 2, 3, 1)).astype(jnp.float32)   # NCHW -> NHWC
    cin = x.shape[-1]
    x = jnp.pad(x, ((0, 0), (0, 0), (0, 0), (0, LANE - cin)))     # lane-dense C
    out = conv_bn(x, params['conv1'], relu=True)
    out = maxpool2d(out)
    for name in ('res1', 'res2', 'res3', 'res4'):
        for bp in params[name]:
            out = res_block_forward(out, bp)
    N, H, W, C = out.shape
    logits = pallas_avgpool_fc(out.reshape(N, H * W, C),
                               params['fc_w'], params['fc_b'])
    return logits[:, :params['num_classes']]


# ---------------------------- main ----------------------------

if __name__ == "__main__":
    key = jax.random.PRNGKey(0)
    k_param, k_x = jax.random.split(key)

    input_size, output_size = 4, 10
    hidden_sizes = [8, 8, 16, 16, 32]

    params = init_params(k_param, input_size, output_size, hidden_sizes)
    x = jax.random.normal(k_x, (2, input_size, 16, 16), jnp.float32)  # NCHW

    forward = jax.jit(lambda inp: resnet_forward(params, inp))
    out = jax.block_until_ready(forward(x))

    assert out.shape == (2, output_size), out.shape
    assert bool(jnp.all(jnp.isfinite(out)))
    print("KERNEL_OK")
</pallas_src>

<mosaic_0001>
module attributes {stable_mosaic.version = 11 : i64} {
  func.func @_conv_gemm_kernel(%arg0: i32, %arg1: i32, %arg2: memref<128x896xbf16, #tpu.memory_space<vmem>>, %arg3: memref<896x128xbf16, #tpu.memory_space<vmem>>, %arg4: memref<128x128xf32, #tpu.memory_space<vmem>>, %arg5: memref<1x2x128xf32, #tpu.memory_space<vmem>>, %arg6: memref<128x128xf32, #tpu.memory_space<vmem>>) attributes {dimension_semantics = [#tpu.dimension_semantics<parallel>, #tpu.dimension_semantics<arbitrary>], iteration_bounds = array<i64: 1, 7>, scalar_prefetch = 0 : i64, scratch_operands = 1 : i64, tpu.core_type = #tpu.core_type<tc>, window_params = [{transform_indices = @transform_0, window_bounds = array<i64: 128, 896>}, {transform_indices = @transform_1, window_bounds = array<i64: 896, 128>}, {transform_indices = @transform_2, window_bounds = array<i64: 128, 128>}, {transform_indices = @transform_3, window_bounds = array<i64: 1, 2, 128>}]} {
    %c0_i32 = arith.constant 0 : i32
    %0 = arith.cmpi eq, %arg1, %c0_i32 : i32
    %1 = arith.extui %0 : i1 to i32
    %c0_i32_0 = arith.constant 0 : i32
    %2 = arith.cmpi ne, %1, %c0_i32_0 : i32
    scf.if %2 {
      %cst_9 = arith.constant 0.000000e+00 : f32
      %12 = vector.broadcast %cst_9 : f32 to vector<128x128xf32>
      %c0_10 = arith.constant 0 : index
      %c0_11 = arith.constant 0 : index
      %13 = vector.load %arg6[%c0_10, %c0_11] : memref<128x128xf32, #tpu.memory_space<vmem>>, vector<128x128xf32>
      tpu.vector_store %arg6[%c0_10, %c0_11], %12 {strides = array<i32>} : memref<128x128xf32, #tpu.memory_space<vmem>>, vector<128x128xf32>,
    } else {
    }
    %c0 = arith.constant 0 : index
    %c0_1 = arith.constant 0 : index
    %3 = vector.load %arg6[%c0, %c0_1] : memref<128x128xf32, #tpu.memory_space<vmem>>, vector<128x128xf32>
    %c0_2 = arith.constant 0 : index
    %c0_3 = arith.constant 0 : index
    %4 = vector.load %arg2[%c0_2, %c0_3] : memref<128x896xbf16, #tpu.memory_space<vmem>>, vector<128x896xbf16>
    %c0_4 = arith.constant 0 : index
    %c0_5 = arith.constant 0 : index
    %5 = vector.load %arg3[%c0_4, %c0_5] : memref<896x128xbf16, #tpu.memory_space<vmem>>, vector<896x128xbf16>
    %cst = arith.constant dense<0.000000e+00> : vector<128x128xf32>
    %6 = tpu.matmul %4, %5, %cst {dimension_numbers = #tpu.dot_dimension_numbers<[1], [0], [0], [1], [0, 0, 1, 1], [], []>} : vector<128x896xbf16>, vector<896x128xbf16>, vector<128x128xf32> -> vector<128x128xf32>
    %7 = arith.addf %3, %6 : vector<128x128xf32>
    %c0_6 = arith.constant 0 : index
    %c0_7 = arith.constant 0 : index
    %8 = vector.load %arg6[%c0_6, %c0_7] : memref<128x128xf32, #tpu.memory_space<vmem>>, vector<128x128xf32>
    tpu.vector_store %arg6[%c0_6, %c0_7], %7 {strides = array<i32>} : memref<128x128xf32, #tpu.memory_space<vmem>>, vector<128x128xf32>,
    %c6_i32 = arith.constant 6 : i32
    %9 = arith.cmpi eq, %arg1, %c6_i32 : i32
    %10 = arith.extui %9 : i1 to i32
    %c0_i32_8 = arith.constant 0 : i32
    %11 = arith.cmpi ne, %10, %c0_i32_8 : i32
    scf.if %11 {
      %c0_9 = arith.constant 0 : index
      %c0_10 = arith.constant 0 : index
      %12 = vector.load %arg6[%c0_9, %c0_10] : memref<128x128xf32, #tpu.memory_space<vmem>>, vector<128x128xf32>
      %c0_11 = arith.constant 0 : index
      %c0_12 = arith.constant 0 : index
      %13 = vector.load %arg4[%c0_11, %c0_12] : memref<128x128xf32, #tpu.memory_space<vmem>>, vector<128x128xf32>
      tpu.vector_store %arg4[%c0_11, %c0_12], %12 {strides = array<i32>} : memref<128x128xf32, #tpu.memory_space<vmem>>, vector<128x128xf32>,
      %cst_13 = arith.constant dense<0.000000e+00> : vector<128xf32>
      %14 = vector.multi_reduction <add>, %12, %cst_13 [0] : vector<128x128xf32> to vector<128xf32>
      %15 = vector.shape_cast %14 : vector<128xf32> to vector<1x128xf32>
      %c0_14 = arith.constant 0 : index
      %c0_15 = arith.constant 0 : index
      %c0_16 = arith.constant 0 : index
      %16 = vector.load %arg5[%c0_14, %c0_15, %c0_16] : memref<1x2x128xf32, #tpu.memory_space<vmem>>, vector<1x1x128xf32>
      %17 = vector.shape_cast %16 : vector<1x1x128xf32> to vector<1x128xf32>
      %18 = vector.shape_cast %15 : vector<1x128xf32> to vector<1x1x128xf32>
      tpu.vector_store %arg5[%c0_14, %c0_15, %c0_16], %18 {strides = array<i32>} : memref<1x2x128xf32, #tpu.memory_space<vmem>>, vector<1x1x128xf32>,
      %19 = arith.mulf %12, %12 : vector<128x128xf32>
      %cst_17 = arith.constant dense<0.000000e+00> : vector<128xf32>
      %20 = vector.multi_reduction <add>, %19, %cst_17 [0] : vector<128x128xf32> to vector<128xf32>
      %21 = vector.shape_cast %20 : vector<128xf32> to vector<1x128xf32>
      %c0_18 = arith.constant 0 : index
      %c1 = arith.constant 1 : index
      %c0_19 = arith.constant 0 : index
      %22 = vector.load %arg5[%c0_18, %c1, %c0_19] : memref<1x2x128xf32, #tpu.memory_space<vmem>>, vector<1x1x128xf32>
      %23 = vector.shape_cast %22 : vector<1x1x128xf32> to vector<1x128xf32>
      %24 = vector.shape_cast %21 : vector<1x128xf32> to vector<1x1x128xf32>
      tpu.vector_store %arg5[%c0_18, %c1, %c0_19], %24 {strides = array<i32>} : memref<1x2x128xf32, #tpu.memory_space<vmem>>, vector<1x1x128xf32>,
    } else {
    }
    return
  }
  func.func @transform_0(%arg0: i32, %arg1: i32) -> (i32, i32) {
    %c0_i32 = arith.constant 0 : i32
    return %arg0, %arg1 : i32, i32
  }
  func.func @transform_1(%arg0: i32, %arg1: i32) -> (i32, i32) {
    %c0_i32 = arith.constant 0 : i32
    %c0_i32_0 = arith.constant 0 : i32
    return %arg1, %c0_i32 : i32, i32
  }
  func.func @transform_2(%arg0: i32, %arg1: i32) -> (i32, i32) {
    %c0_i32 = arith.constant 0 : i32
    %c0_i32_0 = arith.constant 0 : i32
    return %arg0, %c0_i32 : i32, i32
  }
  func.func @transform_3(%arg0: i32, %arg1: i32) -> (i32, i32, i32) {
    %c0_i32 = arith.constant 0 : i32
    %c0_i32_0 = arith.constant 0 : i32
    %c0_i32_1 = arith.constant 0 : i32
    return %arg0, %c0_i32, %c0_i32_0 : i32, i32, i32
  }
}

module attributes {stable_mosaic.version = 11 : i64} {
  func.func @_bn_apply_kernel(%arg0: i32, %arg1: memref<128x128xf32, #tpu.memory_space<vmem>>, %arg2: memref<2x128xf32, #tpu.memory_space<vmem>>, %arg3: memref<1x128xf32, #tpu.memory_space<vmem>>, %arg4: memref<1x128xf32, #tpu.memory_space<vmem>>, %arg5: memref<128x128xf32, #tpu.memory_space<vmem>>) attributes {dimension_semantics = [#tpu.dimension_semantics<parallel>], iteration_bounds = array<i64: 1>, scalar_prefetch = 0 : i64, scratch_operands = 0 : i64, tpu.core_type = #tpu.core_type<tc>, window_params = [{transform_indices = @transform_0, window_bounds = array<i64: 128, 128>}, {pipeline_mode = #tpu.pipeline_mode<synchronous>, transform_indices = @transform_1, window_bounds = array<i64: 2, 128>}, {pipeline_mode = #tpu.pipeline_mode<synchronous>, transform_indices = @transform_2, window_bounds = array<i64: 1, 128>}, {pipeline_mode = #tpu.pipeline_mode<synchronous>, transform_indices = @transform_3, window_bounds = array<i64: 1, 128>}, {transform_indices = @transform_4, window_bounds = array<i64: 128, 128>}]} {
    %c0 = arith.constant 0 : index
    %c0_0 = arith.constant 0 : index
    %0 = vector.load %arg2[%c0, %c0_0] : memref<2x128xf32, #tpu.memory_space<vmem>>, vector<1x128xf32>
    %cst = arith.constant 7.812500e-03 : f32
    %1 = vector.broadcast %cst : f32 to vector<1x128xf32>
    %2 = arith.mulf %0, %1 : vector<1x128xf32>
    %c1 = arith.constant 1 : index
    %c0_1 = arith.constant 0 : index
    %3 = vector.load %arg2[%c1, %c0_1] : memref<2x128xf32, #tpu.memory_space<vmem>>, vector<1x128xf32>
    %cst_2 = arith.constant 7.812500e-03 : f32
    %4 = vector.broadcast %cst_2 : f32 to vector<1x128xf32>
    %5 = arith.mulf %3, %4 : vector<1x128xf32>
    %6 = arith.mulf %2, %2 : vector<1x128xf32>
    %7 = arith.subf %5, %6 : vector<1x128xf32>
    %cst_3 = arith.constant 0.000000e+00 : f32
    %8 = vector.broadcast %cst_3 : f32 to vector<1x128xf32>
    %9 = arith.maximumf %7, %8 : vector<1x128xf32>
    %c0_4 = arith.constant 0 : index
    %c0_5 = arith.constant 0 : index
    %10 = vector.load %arg3[%c0_4, %c0_5] : memref<1x128xf32, #tpu.memory_space<vmem>>, vector<1x128xf32>
    %cst_6 = arith.constant 9.99999974E-6 : f32
    %11 = vector.broadcast %cst_6 : f32 to vector<1x128xf32>
    %12 = arith.addf %9, %11 : vector<1x128xf32>
    %13 = math.rsqrt %12 : vector<1x128xf32>
    %14 = arith.mulf %10, %13 : vector<1x128xf32>
    %c0_7 = arith.constant 0 : index
    %c0_8 = arith.constant 0 : index
    %15 = vector.load %arg4[%c0_7, %c0_8] : memref<1x128xf32, #tpu.memory_space<vmem>>, vector<1x128xf32>
    %16 = arith.mulf %2, %14 : vector<1x128xf32>
    %17 = arith.subf %15, %16 : vector<1x128xf32>
    %c0_9 = arith.constant 0 : index
    %c0_10 = arith.constant 0 : index
    %18 = vector.load %arg1[%c0_9, %c0_10] : memref<128x128xf32, #tpu.memory_space<vmem>>, vector<128x128xf32>
    %19 = vector.broadcast %14 : vector<1x128xf32> to vector<128x128xf32>
    %20 = arith.mulf %18, %19 : vector<128x128xf32>
    %21 = vector.broadcast %17 : vector<1x128xf32> to vector<128x128xf32>
    %22 = arith.addf %20, %21 : vector<128x128xf32>
    %cst_11 = arith.constant 0.000000e+00 : f32
    %23 = vector.broadcast %cst_11 : f32 to vector<128x128xf32>
    %24 = arith.maximumf %22, %23 : vector<128x128xf32>
    %c0_12 = arith.constant 0 : index
    %c0_13 = arith.constant 0 : index
    %25 = vector.load %arg5[%c0_12, %c0_13] : memref<128x128xf32, #tpu.memory_space<vmem>>, vector<128x128xf32>
    tpu.vector_store %arg5[%c0_12, %c0_13], %24 {strides = array<i32>} : memref<128x128xf32, #tpu.memory_space<vmem>>, vector<128x128xf32>,
    return
  }
  func.func @transform_0(%arg0: i32) -> (i32, i32) {
    %c0_i32 = arith.constant 0 : i32
    %c0_i32_0 = arith.constant 0 : i32
    return %arg0, %c0_i32 : i32, i32
  }
  func.func @transform_1(%arg0: i32) -> (i32, i32) {
    %c0_i32 = arith.constant 0 : i32
    %c0_i32_0 = arith.constant 0 : i32
    %c0_i32_1 = arith.constant 0 : i32
    return %c0_i32, %c0_i32_0 : i32, i32
  }
  func.func @transform_2(%arg0: i32) -> (i32, i32) {
    %c0_i32 = arith.constant 0 : i32
    %c0_i32_0 = arith.constant 0 : i32
    %c0_i32_1 = arith.constant 0 : i32
    return %c0_i32, %c0_i32_0 : i32, i32
  }
  func.func @transform_3(%arg0: i32) -> (i32, i32) {
    %c0_i32 = arith.constant 0 : i32
    %c0_i32_0 = arith.constant 0 : i32
    %c0_i32_1 = arith.constant 0 : i32
    return %c0_i32, %c0_i32_0 : i32, i32
  }
  func.func @transform_4(%arg0: i32) -> (i32, i32) {
    %c0_i32 = arith.constant 0 : i32
    %c0_i32_0 = arith.constant 0 : i32
    return %arg0, %c0_i32 : i32, i32
  }
}

module attributes {stable_mosaic.version = 11 : i64} {
  func.func @_maxpool_kernel(%arg0: i32, %arg1: memref<1x5x5x128xf32, #tpu.memory_space<vmem>>, %arg2: memref<1x5x5x128xf32, #tpu.memory_space<vmem>>, %arg3: memref<1x5x5x128xf32, #tpu.memory_space<vmem>>, %arg4: memref<1x5x5x128xf32, #tpu.memory_space<vmem>>, %arg5: memref<1x4x4x128xf32, #tpu.memory_space<vmem>>) attributes {dimension_semantics = [#tpu.dimension_semantics<parallel>], iteration_bounds = array<i64: 2>, scalar_prefetch = 0 : i64, scratch_operands = 0 : i64, tpu.core_type = #tpu.core_type<tc>, window_params = [{transform_indices = @transform_0, window_bounds = array<i64: 1, 5, 5, 128>}, {transform_indices = @transform_1, window_bounds = array<i64: 1, 5, 5, 128>}, {transform_indices = @transform_2, window_bounds = array<i64: 1, 5, 5, 128>}, {transform_indices = @transform_3, window_bounds = array<i64: 1, 5, 5, 128>}, {transform_indices = @transform_4, window_bounds = array<i64: 1, 4, 4, 128>}]} {
    %c0 = arith.constant 0 : index
    %c0_0 = arith.constant 0 : index
    %c0_1 = arith.constant 0 : index
    %c0_2 = arith.constant 0 : index
    %0 = vector.load %arg1[%c0, %c0_0, %c0_1, %c0_2] : memref<1x5x5x128xf32, #tpu.memory_space<vmem>>, vector<1x4x4x128xf32>
    %1 = vector.shape_cast %0 : vector<1x4x4x128xf32> to vector<4x4x128xf32>
    %c0_3 = arith.constant 0 : index
    %c0_4 = arith.constant 0 : index
    %c1 = arith.constant 1 : index
    %c0_5 = arith.constant 0 : index
    %2 = vector.load %arg1[%c0_3, %c0_4, %c1, %c0_5] : memref<1x5x5x128xf32, #tpu.memory_space<vmem>>, vector<1x4x4x128xf32>
    %3 = vector.shape_cast %2 : vector<1x4x4x128xf32> to vector<4x4x128xf32>
    %4 = arith.maximumf %1, %3 : vector<4x4x128xf32>
    %c0_6 = arith.constant 0 : index
    %c1_7 = arith.constant 1 : index
    %c0_8 = arith.constant 0 : index
    %c0_9 = arith.constant 0 : index
    %5 = vector.load %arg1[%c0_6, %c1_7, %c0_8, %c0_9] : memref<1x5x5x128xf32, #tpu.memory_space<vmem>>, vector<1x4x4x128xf32>
    %6 = vector.shape_cast %5 : vector<1x4x4x128xf32> to vector<4x4x128xf32>
    %7 = arith.maximumf %4, %6 : vector<4x4x128xf32>
    %c0_10 = arith.constant 0 : index
    %c1_11 = arith.constant 1 : index
    %c1_12 = arith.constant 1 : index
    %c0_13 = arith.constant 0 : index
    %8 = vector.load %arg1[%c0_10, %c1_11, %c1_12, %c0_13] : memref<1x5x5x128xf32, #tpu.memory_space<vmem>>, vector<1x4x4x128xf32>
    %9 = vector.shape_cast %8 : vector<1x4x4x128xf32> to vector<4x4x128xf32>
    %10 = arith.maximumf %7, %9 : vector<4x4x128xf32>
    %c0_14 = arith.constant 0 : index
    %c0_15 = arith.constant 0 : index
    %c0_16 = arith.constant 0 : index
    %c0_17 = arith.constant 0 : index
    %11 = vector.load %arg2[%c0_14, %c0_15, %c0_16, %c0_17] : memref<1x5x5x128xf32, #tpu.memory_space<vmem>>, vector<1x4x4x128xf32>
    %12 = vector.shape_cast %11 : vector<1x4x4x128xf32> to vector<4x4x128xf32>
    %13 = arith.maximumf %10, %12 : vector<4x4x128xf32>
    %c0_18 = arith.constant 0 : index
    %c1_19 = arith.constant 1 : index
    %c0_20 = arith.constant 0 : index
    %c0_21 = arith.constant 0 : index
    %14 = vector.load %arg2[%c0_18, %c1_19, %c0_20, %c0_21] : memref<1x5x5x128xf32, #tpu.memory_space<vmem>>, vector<1x4x4x128xf32>
    %15 = vector.shape_cast %14 : vector<1x4x4x128xf32> to vector<4x4x128xf32>
    %16 = arith.maximumf %13, %15 : vector<4x4x128xf32>
    %c0_22 = arith.constant 0 : index
    %c0_23 = arith.constant 0 : index
    %c0_24 = arith.constant 0 : index
    %c0_25 = arith.constant 0 : index
    %17 = vector.load %arg3[%c0_22, %c0_23, %c0_24, %c0_25] : memref<1x5x5x128xf32, #tpu.memory_space<vmem>>, vector<1x4x4x128xf32>
    %18 = vector.shape_cast %17 : vector<1x4x4x128xf32> to vector<4x4x128xf32>
    %19 = arith.maximumf %16, %18 : vector<4x4x128xf32>
    %c0_26 = arith.constant 0 : index
    %c0_27 = arith.constant 0 : index
    %c1_28 = arith.constant 1 : index
    %c0_29 = arith.constant 0 : index
    %20 = vector.load %arg3[%c0_26, %c0_27, %c1_28, %c0_29] : memref<1x5x5x128xf32, #tpu.memory_space<vmem>>, vector<1x4x4x128xf32>
    %21 = vector.shape_cast %20 : vector<1x4x4x128xf32> to vector<4x4x128xf32>
    %22 = arith.maximumf %19, %21 : vector<4x4x128xf32>
    %c0_30 = arith.constant 0 : index
    %c0_31 = arith.constant 0 : index
    %c0_32 = arith.constant 0 : index
    %c0_33 = arith.constant 0 : index
    %23 = vector.load %arg4[%c0_30, %c0_31, %c0_32, %c0_33] : memref<1x5x5x128xf32, #tpu.memory_space<vmem>>, vector<1x4x4x128xf32>
    %24 = vector.shape_cast %23 : vector<1x4x4x128xf32> to vector<4x4x128xf32>
    %25 = arith.maximumf %22, %24 : vector<4x4x128xf32>
    %c0_34 = arith.constant 0 : index
    %c0_35 = arith.constant 0 : index
    %c0_36 = arith.constant 0 : index
    %c0_37 = arith.constant 0 : index
    %26 = vector.load %arg5[%c0_34, %c0_35, %c0_36, %c0_37] : memref<1x4x4x128xf32, #tpu.memory_space<vmem>>, vector<1x4x4x128xf32>
    %27 = vector.shape_cast %26 : vector<1x4x4x128xf32> to vector<4x4x128xf32>
    %28 = vector.shape_cast %25 : vector<4x4x128xf32> to vector<1x4x4x128xf32>
    tpu.vector_store %arg5[%c0_34, %c0_35, %c0_36, %c0_37], %28 {strides = array<i32>} : memref<1x4x4x128xf32, #tpu.memory_space<vmem>>, vector<1x4x4x128xf32>,
    return
  }
  func.func @transform_0(%arg0: i32) -> (i32, i32, i32, i32) {
    %c0_i32 = arith.constant 0 : i32
    %c0_i32_0 = arith.constant 0 : i32
    %c0_i32_1 = arith.constant 0 : i32
    %c0_i32_2 = arith.constant 0 : i32
    return %arg0, %c0_i32, %c0_i32_0, %c0_i32_1 : i32, i32, i32, i32
  }
  func.func @transform_1(%arg0: i32) -> (i32, i32, i32, i32) {
    %c0_i32 = arith.constant 0 : i32
    %c0_i32_0 = arith.constant 0 : i32
    %c0_i32_1 = arith.constant 0 : i32
    %c0_i32_2 = arith.constant 0 : i32
    return %arg0, %c0_i32, %c0_i32_0, %c0_i32_1 : i32, i32, i32, i32
  }
  func.func @transform_2(%arg0: i32) -> (i32, i32, i32, i32) {
    %c0_i32 = arith.constant 0 : i32
    %c0_i32_0 = arith.constant 0 : i32
    %c0_i32_1 = arith.constant 0 : i32
    %c0_i32_2 = arith.constant 0 : i32
    return %arg0, %c0_i32, %c0_i32_0, %c0_i32_1 : i32, i32, i32, i32
  }
  func.func @transform_3(%arg0: i32) -> (i32, i32, i32, i32) {
    %c0_i32 = arith.constant 0 : i32
    %c0_i32_0 = arith.constant 0 : i32
    %c0_i32_1 = arith.constant 0 : i32
    %c0_i32_2 = arith.constant 0 : i32
    return %arg0, %c0_i32, %c0_i32_0, %c0_i32_1 : i32, i32, i32, i32
  }
  func.func @transform_4(%arg0: i32) -> (i32, i32, i32, i32) {
    %c0_i32 = arith.constant 0 : i32
    %c0_i32_0 = arith.constant 0 : i32
    %c0_i32_1 = arith.constant 0 : i32
    %c0_i32_2 = arith.constant 0 : i32
    return %arg0, %c0_i32, %c0_i32_0, %c0_i32_1 : i32, i32, i32, i32
  }
}

module attributes {stable_mosaic.version = 11 : i64} {
  func.func @_conv_gemm_kernel(%arg0: i32, %arg1: i32, %arg2: memref<32x384xbf16, #tpu.memory_space<vmem>>, %arg3: memref<384x128xbf16, #tpu.memory_space<vmem>>, %arg4: memref<32x128xf32, #tpu.memory_space<vmem>>, %arg5: memref<1x2x128xf32, #tpu.memory_space<vmem>>, %arg6: memref<32x128xf32, #tpu.memory_space<vmem>>) attributes {dimension_semantics = [#tpu.dimension_semantics<parallel>, #tpu.dimension_semantics<arbitrary>], iteration_bounds = array<i64: 1, 3>, scalar_prefetch = 0 : i64, scratch_operands = 1 : i64, tpu.core_type = #tpu.core_type<tc>, window_params = [{transform_indices = @transform_0, window_bounds = array<i64: 32, 384>}, {transform_indices = @transform_1, window_bounds = array<i64: 384, 128>}, {transform_indices = @transform_2, window_bounds = array<i64: 32, 128>}, {transform_indices = @transform_3, window_bounds = array<i64: 1, 2, 128>}]} {
    %c0_i32 = arith.constant 0 : i32
    %0 = arith.cmpi eq, %arg1, %c0_i32 : i32
    %1 = arith.extui %0 : i1 to i32
    %c0_i32_0 = arith.constant 0 : i32
    %2 = arith.cmpi ne, %1, %c0_i32_0 : i32
    scf.if %2 {
      %cst_9 = arith.constant 0.000000e+00 : f32
      %12 = vector.broadcast %cst_9 : f32 to vector<32x128xf32>
      %c0_10 = arith.constant 0 : index
      %c0_11 = arith.constant 0 : index
      %13 = vector.load %arg6[%c0_10, %c0_11] : memref<32x128xf32, #tpu.memory_space<vmem>>, vector<32x128xf32>
      tpu.vector_store %arg6[%c0_10, %c0_11], %12 {strides = array<i32>} : memref<32x128xf32, #tpu.memory_space<vmem>>, vector<32x128xf32>,
    } else {
    }
    %c0 = arith.constant 0 : index
    %c0_1 = arith.constant 0 : index
    %3 = vector.load %arg6[%c0, %c0_1] : memref<32x128xf32, #tpu.memory_space<vmem>>, vector<32x128xf32>
    %c0_2 = arith.constant 0 : index
    %c0_3 = arith.constant 0 : index
    %4 = vector.load %arg2[%c0_2, %c0_3] : memref<32x384xbf16, #tpu.memory_space<vmem>>, vector<32x384xbf16>
    %c0_4 = arith.constant 0 : index
    %c0_5 = arith.constant 0 : index
    %5 = vector.load %arg3[%c0_4, %c0_5] : memref<384x128xbf16, #tpu.memory_space<vmem>>, vector<384x128xbf16>
    %cst = arith.constant dense<0.000000e+00> : vector<32x128xf32>
    %6 = tpu.matmul %4, %5, %cst {dimension_numbers = #tpu.dot_dimension_numbers<[1], [0], [0], [1], [0, 0, 1, 1], [], []>} : vector<32x384xbf16>, vector<384x128xbf16>, vector<32x128xf32> -> vector<32x128xf32>
    %7 = arith.addf %3, %6 : vector<32x128xf32>
    %c0_6 = arith.constant 0 : index
    %c0_7 = arith.constant 0 : index
    %8 = vector.load %arg6[%c0_6, %c0_7] : memref<32x128xf32, #tpu.memory_space<vmem>>, vector<32x128xf32>
    tpu.vector_store %arg6[%c0_6, %c0_7], %7 {strides = array<i32>} : memref<32x128xf32, #tpu.memory_space<vmem>>, vector<32x128xf32>,
    %c2_i32 = arith.constant 2 : i32
    %9 = arith.cmpi eq, %arg1, %c2_i32 : i32
    %10 = arith.extui %9 : i1 to i32
    %c0_i32_8 = arith.constant 0 : i32
    %11 = arith.cmpi ne, %10, %c0_i32_8 : i32
    scf.if %11 {
      %c0_9 = arith.constant 0 : index
      %c0_10 = arith.constant 0 : index
      %12 = vector.load %arg6[%c0_9, %c0_10] : memref<32x128xf32, #tpu.memory_space<vmem>>, vector<32x128xf32>
      %c0_11 = arith.constant 0 : index
      %c0_12 = arith.constant 0 : index
      %13 = vector.load %arg4[%c0_11, %c0_12] : memref<32x128xf32, #tpu.memory_space<vmem>>, vector<32x128xf32>
      tpu.vector_store %arg4[%c0_11, %c0_12], %12 {strides = array<i32>} : memref<32x128xf32, #tpu.memory_space<vmem>>, vector<32x128xf32>,
      %cst_13 = arith.constant dense<0.000000e+00> : vector<128xf32>
      %14 = vector.multi_reduction <add>, %12, %cst_13 [0] : vector<32x128xf32> to vector<128xf32>
      %15 = vector.shape_cast %14 : vector<128xf32> to vector<1x128xf32>
      %c0_14 = arith.constant 0 : index
      %c0_15 = arith.constant 0 : index
      %c0_16 = arith.constant 0 : index
      %16 = vector.load %arg5[%c0_14, %c0_15, %c0_16] : memref<1x2x128xf32, #tpu.memory_space<vmem>>, vector<1x1x128xf32>
      %17 = vector.shape_cast %16 : vector<1x1x128xf32> to vector<1x128xf32>
      %18 = vector.shape_cast %15 : vector<1x128xf32> to vector<1x1x128xf32>
      tpu.vector_store %arg5[%c0_14, %c0_15, %c0_16], %18 {strides = array<i32>} : memref<1x2x128xf32, #tpu.memory_space<vmem>>, vector<1x1x128xf32>,
      %19 = arith.mulf %12, %12 : vector<32x128xf32>
      %cst_17 = arith.constant dense<0.000000e+00> : vector<128xf32>
      %20 = vector.multi_reduction <add>, %19, %cst_17 [0] : vector<32x128xf32> to vector<128xf32>
      %21 = vector.shape_cast %20 : vector<128xf32> to vector<1x128xf32>
      %c0_18 = arith.constant 0 : index
      %c1 = arith.constant 1 : index
      %c0_19 = arith.constant 0 : index
      %22 = vector.load %arg5[%c0_18, %c1, %c0_19] : memref<1x2x128xf32, #tpu.memory_space<vmem>>, vector<1x1x128xf32>
      %23 = vector.shape_cast %22 : vector<1x1x128xf32> to vector<1x128xf32>
      %24 = vector.shape_cast %21 : vector<1x128xf32> to vector<1x1x128xf32>
      tpu.vector_store %arg5[%c0_18, %c1, %c0_19], %24 {strides = array<i32>} : memref<1x2x128xf32, #tpu.memory_space<vmem>>, vector<1x1x128xf32>,
    } else {
    }
    return
  }
  func.func @transform_0(%arg0: i32, %arg1: i32) -> (i32, i32) {
    %c0_i32 = arith.constant 0 : i32
    return %arg0, %arg1 : i32, i32
  }
  func.func @transform_1(%arg0: i32, %arg1: i32) -> (i32, i32) {
    %c0_i32 = arith.constant 0 : i32
    %c0_i32_0 = arith.constant 0 : i32
    return %arg1, %c0_i32 : i32, i32
  }
  func.func @transform_2(%arg0: i32, %arg1: i32) -> (i32, i32) {
    %c0_i32 = arith.constant 0 : i32
    %c0_i32_0 = arith.constant 0 : i32
    return %arg0, %c0_i32 : i32, i32
  }
  func.func @transform_3(%arg0: i32, %arg1: i32) -> (i32, i32, i32) {
    %c0_i32 = arith.constant 0 : i32
    %c0_i32_0 = arith.constant 0 : i32
    %c0_i32_1 = arith.constant 0 : i32
    return %arg0, %c0_i32, %c0_i32_0 : i32, i32, i32
  }
}

module attributes {stable_mosaic.version = 11 : i64} {
  func.func @_bn_apply_kernel(%arg0: i32, %arg1: memref<32x128xf32, #tpu.memory_space<vmem>>, %arg2: memref<2x128xf32, #tpu.memory_space<vmem>>, %arg3: memref<1x128xf32, #tpu.memory_space<vmem>>, %arg4: memref<1x128xf32, #tpu.memory_space<vmem>>, %arg5: memref<32x128xf32, #tpu.memory_space<vmem>>) attributes {dimension_semantics = [#tpu.dimension_semantics<parallel>], iteration_bounds = array<i64: 1>, scalar_prefetch = 0 : i64, scratch_operands = 0 : i64, tpu.core_type = #tpu.core_type<tc>, window_params = [{transform_indices = @transform_0, window_bounds = array<i64: 32, 128>}, {pipeline_mode = #tpu.pipeline_mode<synchronous>, transform_indices = @transform_1, window_bounds = array<i64: 2, 128>}, {pipeline_mode = #tpu.pipeline_mode<synchronous>, transform_indices = @transform_2, window_bounds = array<i64: 1, 128>}, {pipeline_mode = #tpu.pipeline_mode<synchronous>, transform_indices = @transform_3, window_bounds = array<i64: 1, 128>}, {transform_indices = @transform_4, window_bounds = array<i64: 32, 128>}]} {
    %c0 = arith.constant 0 : index
    %c0_0 = arith.constant 0 : index
    %0 = vector.load %arg2[%c0, %c0_0] : memref<2x128xf32, #tpu.memory_space<vmem>>, vector<1x128xf32>
    %cst = arith.constant 3.125000e-02 : f32
    %1 = vector.broadcast %cst : f32 to vector<1x128xf32>
    %2 = arith.mulf %0, %1 : vector<1x128xf32>
    %c1 = arith.constant 1 : index
    %c0_1 = arith.constant 0 : index
    %3 = vector.load %arg2[%c1, %c0_1] : memref<2x128xf32, #tpu.memory_space<vmem>>, vector<1x128xf32>
    %cst_2 = arith.constant 3.125000e-02 : f32
    %4 = vector.broadcast %cst_2 : f32 to vector<1x128xf32>
    %5 = arith.mulf %3, %4 : vector<1x128xf32>
    %6 = arith.mulf %2, %2 : vector<1x128xf32>
    %7 = arith.subf %5, %6 : vector<1x128xf32>
    %cst_3 = arith.constant 0.000000e+00 : f32
    %8 = vector.broadcast %cst_3 : f32 to vector<1x128xf32>
    %9 = arith.maximumf %7, %8 : vector<1x128xf32>
    %c0_4 = arith.constant 0 : index
    %c0_5 = arith.constant 0 : index
    %10 = vector.load %arg3[%c0_4, %c0_5] : memref<1x128xf32, #tpu.memory_space<vmem>>, vector<1x128xf32>
    %cst_6 = arith.constant 9.99999974E-6 : f32
    %11 = vector.broadcast %cst_6 : f32 to vector<1x128xf32>
    %12 = arith.addf %9, %11 : vector<1x128xf32>
    %13 = math.rsqrt %12 : vector<1x128xf32>
    %14 = arith.mulf %10, %13 : vector<1x128xf32>
    %c0_7 = arith.constant 0 : index
    %c0_8 = arith.constant 0 : index
    %15 = vector.load %arg4[%c0_7, %c0_8] : memref<1x128xf32, #tpu.memory_space<vmem>>, vector<1x128xf32>
    %16 = arith.mulf %2, %14 : vector<1x128xf32>
    %17 = arith.subf %15, %16 : vector<1x128xf32>
    %c0_9 = arith.constant 0 : index
    %c0_10 = arith.constant 0 : index
    %18 = vector.load %arg1[%c0_9, %c0_10] : memref<32x128xf32, #tpu.memory_space<vmem>>, vector<32x128xf32>
    %19 = vector.broadcast %14 : vector<1x128xf32> to vector<32x128xf32>
    %20 = arith.mulf %18, %19 : vector<32x128xf32>
    %21 = vector.broadcast %17 : vector<1x128xf32> to vector<32x128xf32>
    %22 = arith.addf %20, %21 : vector<32x128xf32>
    %cst_11 = arith.constant 0.000000e+00 : f32
    %23 = vector.broadcast %cst_11 : f32 to vector<32x128xf32>
    %24 = arith.maximumf %22, %23 : vector<32x128xf32>
    %c0_12 = arith.constant 0 : index
    %c0_13 = arith.constant 0 : index
    %25 = vector.load %arg5[%c0_12, %c0_13] : memref<32x128xf32, #tpu.memory_space<vmem>>, vector<32x128xf32>
    tpu.vector_store %arg5[%c0_12, %c0_13], %24 {strides = array<i32>} : memref<32x128xf32, #tpu.memory_space<vmem>>, vector<32x128xf32>,
    return
  }
  func.func @transform_0(%arg0: i32) -> (i32, i32) {
    %c0_i32 = arith.constant 0 : i32
    %c0_i32_0 = arith.constant 0 : i32
    return %arg0, %c0_i32 : i32, i32
  }
  func.func @transform_1(%arg0: i32) -> (i32, i32) {
    %c0_i32 = arith.constant 0 : i32
    %c0_i32_0 = arith.constant 0 : i32
    %c0_i32_1 = arith.constant 0 : i32
    return %c0_i32, %c0_i32_0 : i32, i32
  }
  func.func @transform_2(%arg0: i32) -> (i32, i32) {
    %c0_i32 = arith.constant 0 : i32
    %c0_i32_0 = arith.constant 0 : i32
    %c0_i32_1 = arith.constant 0 : i32
    return %c0_i32, %c0_i32_0 : i32, i32
  }
  func.func @transform_3(%arg0: i32) -> (i32, i32) {
    %c0_i32 = arith.constant 0 : i32
    %c0_i32_0 = arith.constant 0 : i32
    %c0_i32_1 = arith.constant 0 : i32
    return %c0_i32, %c0_i32_0 : i32, i32
  }
  func.func @transform_4(%arg0: i32) -> (i32, i32) {
    %c0_i32 = arith.constant 0 : i32
    %c0_i32_0 = arith.constant 0 : i32
    return %arg0, %c0_i32 : i32, i32
  }
}

module attributes {stable_mosaic.version = 11 : i64} {
  func.func @_bn_apply_res_relu_kernel(%arg0: i32, %arg1: memref<32x128xf32, #tpu.memory_space<vmem>>, %arg2: memref<2x128xf32, #tpu.memory_space<vmem>>, %arg3: memref<1x128xf32, #tpu.memory_space<vmem>>, %arg4: memref<1x128xf32, #tpu.memory_space<vmem>>, %arg5: memref<32x128xf32, #tpu.memory_space<vmem>>, %arg6: memref<32x128xf32, #tpu.memory_space<vmem>>) attributes {dimension_semantics = [#tpu.dimension_semantics<parallel>], iteration_bounds = array<i64: 1>, scalar_prefetch = 0 : i64, scratch_operands = 0 : i64, tpu.core_type = #tpu.core_type<tc>, window_params = [{transform_indices = @transform_0, window_bounds = array<i64: 32, 128>}, {pipeline_mode = #tpu.pipeline_mode<synchronous>, transform_indices = @transform_1, window_bounds = array<i64: 2, 128>}, {pipeline_mode = #tpu.pipeline_mode<synchronous>, transform_indices = @transform_2, window_bounds = array<i64: 1, 128>}, {pipeline_mode = #tpu.pipeline_mode<synchronous>, transform_indices = @transform_3, window_bounds = array<i64: 1, 128>}, {transform_indices = @transform_4, window_bounds = array<i64: 32, 128>}, {transform_indices = @transform_5, window_bounds = array<i64: 32, 128>}]} {
    %c0 = arith.constant 0 : index
    %c0_0 = arith.constant 0 : index
    %0 = vector.load %arg2[%c0, %c0_0] : memref<2x128xf32, #tpu.memory_space<vmem>>, vector<1x128xf32>
    %cst = arith.constant 3.125000e-02 : f32
    %1 = vector.broadcast %cst : f32 to vector<1x128xf32>
    %2 = arith.mulf %0, %1 : vector<1x128xf32>
    %c1 = arith.constant 1 : index
    %c0_1 = arith.constant 0 : index
    %3 = vector.load %arg2[%c1, %c0_1] : memref<2x128xf32, #tpu.memory_space<vmem>>, vector<1x128xf32>
    %cst_2 = arith.constant 3.125000e-02 : f32
    %4 = vector.broadcast %cst_2 : f32 to vector<1x128xf32>
    %5 = arith.mulf %3, %4 : vector<1x128xf32>
    %6 = arith.mulf %2, %2 : vector<1x128xf32>
    %7 = arith.subf %5, %6 : vector<1x128xf32>
    %cst_3 = arith.constant 0.000000e+00 : f32
    %8 = vector.broadcast %cst_3 : f32 to vector<1x128xf32>
    %9 = arith.maximumf %7, %8 : vector<1x128xf32>
    %c0_4 = arith.constant 0 : index
    %c0_5 = arith.constant 0 : index
    %10 = vector.load %arg3[%c0_4, %c0_5] : memref<1x128xf32, #tpu.memory_space<vmem>>, vector<1x128xf32>
    %cst_6 = arith.constant 9.99999974E-6 : f32
    %11 = vector.broadcast %cst_6 : f32 to vector<1x128xf32>
    %12 = arith.addf %9, %11 : vector<1x128xf32>
    %13 = math.rsqrt %12 : vector<1x128xf32>
    %14 = arith.mulf %10, %13 : vector<1x128xf32>
    %c0_7 = arith.constant 0 : index
    %c0_8 = arith.constant 0 : index
    %15 = vector.load %arg4[%c0_7, %c0_8] : memref<1x128xf32, #tpu.memory_space<vmem>>, vector<1x128xf32>
    %16 = arith.mulf %2, %14 : vector<1x128xf32>
    %17 = arith.subf %15, %16 : vector<1x128xf32>
    %c0_9 = arith.constant 0 : index
    %c0_10 = arith.constant 0 : index
    %18 = vector.load %arg1[%c0_9, %c0_10] : memref<32x128xf32, #tpu.memory_space<vmem>>, vector<32x128xf32>
    %19 = vector.broadcast %14 : vector<1x128xf32> to vector<32x128xf32>
    %20 = arith.mulf %18, %19 : vector<32x128xf32>
    %21 = vector.broadcast %17 : vector<1x128xf32> to vector<32x128xf32>
    %22 = arith.addf %20, %21 : vector<32x128xf32>
    %c0_11 = arith.constant 0 : index
    %c0_12 = arith.constant 0 : index
    %23 = vector.load %arg5[%c0_11, %c0_12] : memref<32x128xf32, #tpu.memory_space<vmem>>, vector<32x128xf32>
    %24 = arith.addf %22, %23 : vector<32x128xf32>
    %cst_13 = arith.constant 0.000000e+00 : f32
    %25 = vector.broadcast %cst_13 : f32 to vector<32x128xf32>
    %26 = arith.maximumf %24, %25 : vector<32x128xf32>
    %c0_14 = arith.constant 0 : index
    %c0_15 = arith.constant 0 : index
    %27 = vector.load %arg6[%c0_14, %c0_15] : memref<32x128xf32, #tpu.memory_space<vmem>>, vector<32x128xf32>
    tpu.vector_store %arg6[%c0_14, %c0_15], %26 {strides = array<i32>} : memref<32x128xf32, #tpu.memory_space<vmem>>, vector<32x128xf32>,
    return
  }
  func.func @transform_0(%arg0: i32) -> (i32, i32) {
    %c0_i32 = arith.constant 0 : i32
    %c0_i32_0 = arith.constant 0 : i32
    return %arg0, %c0_i32 : i32, i32
  }
  func.func @transform_1(%arg0: i32) -> (i32, i32) {
    %c0_i32 = arith.constant 0 : i32
    %c0_i32_0 = arith.constant 0 : i32
    %c0_i32_1 = arith.constant 0 : i32
    return %c0_i32, %c0_i32_0 : i32, i32
  }
  func.func @transform_2(%arg0: i32) -> (i32, i32) {
    %c0_i32 = arith.constant 0 : i32
    %c0_i32_0 = arith.constant 0 : i32
    %c0_i32_1 = arith.constant 0 : i32
    return %c0_i32, %c0_i32_0 : i32, i32
  }
  func.func @transform_3(%arg0: i32) -> (i32, i32) {
    %c0_i32 = arith.constant 0 : i32
    %c0_i32_0 = arith.constant 0 : i32
    %c0_i32_1 = arith.constant 0 : i32
    return %c0_i32, %c0_i32_0 : i32, i32
  }
  func.func @transform_4(%arg0: i32) -> (i32, i32) {
    %c0_i32 = arith.constant 0 : i32
    %c0_i32_0 = arith.constant 0 : i32
    return %arg0, %c0_i32 : i32, i32
  }
  func.func @transform_5(%arg0: i32) -> (i32, i32) {
    %c0_i32 = arith.constant 0 : i32
    %c0_i32_0 = arith.constant 0 : i32
    return %arg0, %c0_i32 : i32, i32
  }
}

module attributes {stable_mosaic.version = 11 : i64} {
  func.func @_bn_apply_kernel(%arg0: i32, %arg1: memref<8x128xf32, #tpu.memory_space<vmem>>, %arg2: memref<2x128xf32, #tpu.memory_space<vmem>>, %arg3: memref<1x128xf32, #tpu.memory_space<vmem>>, %arg4: memref<1x128xf32, #tpu.memory_space<vmem>>, %arg5: memref<8x128xf32, #tpu.memory_space<vmem>>) attributes {dimension_semantics = [#tpu.dimension_semantics<parallel>], iteration_bounds = array<i64: 1>, scalar_prefetch = 0 : i64, scratch_operands = 0 : i64, tpu.core_type = #tpu.core_type<tc>, window_params = [{transform_indices = @transform_0, window_bounds = array<i64: 8, 128>}, {pipeline_mode = #tpu.pipeline_mode<synchronous>, transform_indices = @transform_1, window_bounds = array<i64: 2, 128>}, {pipeline_mode = #tpu.pipeline_mode<synchronous>, transform_indices = @transform_2, window_bounds = array<i64: 1, 128>}, {pipeline_mode = #tpu.pipeline_mode<synchronous>, transform_indices = @transform_3, window_bounds = array<i64: 1, 128>}, {transform_indices = @transform_4, window_bounds = array<i64: 8, 128>}]} {
    %c0 = arith.constant 0 : index
    %c0_0 = arith.constant 0 : index
    %0 = vector.load %arg2[%c0, %c0_0] : memref<2x128xf32, #tpu.memory_space<vmem>>, vector<1x128xf32>
    %cst = arith.constant 1.250000e-01 : f32
    %1 = vector.broadcast %cst : f32 to vector<1x128xf32>
    %2 = arith.mulf %0, %1 : vector<1x128xf32>
    %c1 = arith.constant 1 : index
    %c0_1 = arith.constant 0 : index
    %3 = vector.load %arg2[%c1, %c0_1] : memref<2x128xf32, #tpu.memory_space<vmem>>, vector<1x128xf32>
    %cst_2 = arith.constant 1.250000e-01 : f32
    %4 = vector.broadcast %cst_2 : f32 to vector<1x128xf32>
    %5 = arith.mulf %3, %4 : vector<1x128xf32>
    %6 = arith.mulf %2, %2 : vector<1x128xf32>
    %7 = arith.subf %5, %6 : vector<1x128xf32>
    %cst_3 = arith.constant 0.000000e+00 : f32
    %8 = vector.broadcast %cst_3 : f32 to vector<1x128xf32>
    %9 = arith.maximumf %7, %8 : vector<1x128xf32>
    %c0_4 = arith.constant 0 : index
    %c0_5 = arith.constant 0 : index
    %10 = vector.load %arg3[%c0_4, %c0_5] : memref<1x128xf32, #tpu.memory_space<vmem>>, vector<1x128xf32>
    %cst_6 = arith.constant 9.99999974E-6 : f32
    %11 = vector.broadcast %cst_6 : f32 to vector<1x128xf32>
    %12 = arith.addf %9, %11 : vector<1x128xf32>
    %13 = math.rsqrt %12 : vector<1x128xf32>
    %14 = arith.mulf %10, %13 : vector<1x128xf32>
    %c0_7 = arith.constant 0 : index
    %c0_8 = arith.constant 0 : index
    %15 = vector.load %arg4[%c0_7, %c0_8] : memref<1x128xf32, #tpu.memory_space<vmem>>, vector<1x128xf32>
    %16 = arith.mulf %2, %14 : vector<1x128xf32>
    %17 = arith.subf %15, %16 : vector<1x128xf32>
    %c0_9 = arith.constant 0 : index
    %c0_10 = arith.constant 0 : index
    %18 = vector.load %arg1[%c0_9, %c0_10] : memref<8x128xf32, #tpu.memory_space<vmem>>, vector<8x128xf32>
    %19 = vector.broadcast %14 : vector<1x128xf32> to vector<8x128xf32>
    %20 = arith.mulf %18, %19 : vector<8x128xf32>
    %21 = vector.broadcast %17 : vector<1x128xf32> to vector<8x128xf32>
    %22 = arith.addf %20, %21 : vector<8x128xf32>
    %c0_11 = arith.constant 0 : index
    %c0_12 = arith.constant 0 : index
    %23 = vector.load %arg5[%c0_11, %c0_12] : memref<8x128xf32, #tpu.memory_space<vmem>>, vector<8x128xf32>
    tpu.vector_store %arg5[%c0_11, %c0_12], %22 {strides = array<i32>} : memref<8x128xf32, #tpu.memory_space<vmem>>, vector<8x128xf32>,
    return
  }
  func.func @transform_0(%arg0: i32) -> (i32, i32) {
    %c0_i32 = arith.constant 0 : i32
    %c0_i32_0 = arith.constant 0 : i32
    return %arg0, %c0_i32 : i32, i32
  }
  func.func @transform_1(%arg0: i32) -> (i32, i32) {
    %c0_i32 = arith.constant 0 : i32
    %c0_i32_0 = arith.constant 0 : i32
    %c0_i32_1 = arith.constant 0 : i32
    return %c0_i32, %c0_i32_0 : i32, i32
  }
  func.func @transform_2(%arg0: i32) -> (i32, i32) {
    %c0_i32 = arith.constant 0 : i32
    %c0_i32_0 = arith.constant 0 : i32
    %c0_i32_1 = arith.constant 0 : i32
    return %c0_i32, %c0_i32_0 : i32, i32
  }
  func.func @transform_3(%arg0: i32) -> (i32, i32) {
    %c0_i32 = arith.constant 0 : i32
    %c0_i32_0 = arith.constant 0 : i32
    %c0_i32_1 = arith.constant 0 : i32
    return %c0_i32, %c0_i32_0 : i32, i32
  }
  func.func @transform_4(%arg0: i32) -> (i32, i32) {
    %c0_i32 = arith.constant 0 : i32
    %c0_i32_0 = arith.constant 0 : i32
    return %arg0, %c0_i32 : i32, i32
  }
}

module attributes {stable_mosaic.version = 11 : i64} {
  func.func @_conv_gemm_kernel(%arg0: i32, %arg1: i32, %arg2: memref<8x384xbf16, #tpu.memory_space<vmem>>, %arg3: memref<384x128xbf16, #tpu.memory_space<vmem>>, %arg4: memref<8x128xf32, #tpu.memory_space<vmem>>, %arg5: memref<1x2x128xf32, #tpu.memory_space<vmem>>, %arg6: memref<8x128xf32, #tpu.memory_space<vmem>>) attributes {dimension_semantics = [#tpu.dimension_semantics<parallel>, #tpu.dimension_semantics<arbitrary>], iteration_bounds = array<i64: 1, 3>, scalar_prefetch = 0 : i64, scratch_operands = 1 : i64, tpu.core_type = #tpu.core_type<tc>, window_params = [{transform_indices = @transform_0, window_bounds = array<i64: 8, 384>}, {transform_indices = @transform_1, window_bounds = array<i64: 384, 128>}, {transform_indices = @transform_2, window_bounds = array<i64: 8, 128>}, {transform_indices = @transform_3, window_bounds = array<i64: 1, 2, 128>}]} {
    %c0_i32 = arith.constant 0 : i32
    %0 = arith.cmpi eq, %arg1, %c0_i32 : i32
    %1 = arith.extui %0 : i1 to i32
    %c0_i32_0 = arith.constant 0 : i32
    %2 = arith.cmpi ne, %1, %c0_i32_0 : i32
    scf.if %2 {
      %cst_9 = arith.constant 0.000000e+00 : f32
      %12 = vector.broadcast %cst_9 : f32 to vector<8x128xf32>
      %c0_10 = arith.constant 0 : index
      %c0_11 = arith.constant 0 : index
      %13 = vector.load %arg6[%c0_10, %c0_11] : memref<8x128xf32, #tpu.memory_space<vmem>>, vector<8x128xf32>
      tpu.vector_store %arg6[%c0_10, %c0_11], %12 {strides = array<i32>} : memref<8x128xf32, #tpu.memory_space<vmem>>, vector<8x128xf32>,
    } else {
    }
    %c0 = arith.constant 0 : index
    %c0_1 = arith.constant 0 : index
    %3 = vector.load %arg6[%c0, %c0_1] : memref<8x128xf32, #tpu.memory_space<vmem>>, vector<8x128xf32>
    %c0_2 = arith.constant 0 : index
    %c0_3 = arith.constant 0 : index
    %4 = vector.load %arg2[%c0_2, %c0_3] : memref<8x384xbf16, #tpu.memory_space<vmem>>, vector<8x384xbf16>
    %c0_4 = arith.constant 0 : index
    %c0_5 = arith.constant 0 : index
    %5 = vector.load %arg3[%c0_4, %c0_5] : memref<384x128xbf16, #tpu.memory_space<vmem>>, vector<384x128xbf16>
    %cst = arith.constant dense<0.000000e+00> : vector<8x128xf32>
    %6 = tpu.matmul %4, %5, %cst {dimension_numbers = #tpu.dot_dimension_numbers<[1], [0], [0], [1], [0, 0, 1, 1], [], []>} : vector<8x384xbf16>, vector<384x128xbf16>, vector<8x128xf32> -> vector<8x128xf32>
    %7 = arith.addf %3, %6 : vector<8x128xf32>
    %c0_6 = arith.constant 0 : index
    %c0_7 = arith.constant 0 : index
    %8 = vector.load %arg6[%c0_6, %c0_7] : memref<8x128xf32, #tpu.memory_space<vmem>>, vector<8x128xf32>
    tpu.vector_store %arg6[%c0_6, %c0_7], %7 {strides = array<i32>} : memref<8x128xf32, #tpu.memory_space<vmem>>, vector<8x128xf32>,
    %c2_i32 = arith.constant 2 : i32
    %9 = arith.cmpi eq, %arg1, %c2_i32 : i32
    %10 = arith.extui %9 : i1 to i32
    %c0_i32_8 = arith.constant 0 : i32
    %11 = arith.cmpi ne, %10, %c0_i32_8 : i32
    scf.if %11 {
      %c0_9 = arith.constant 0 : index
      %c0_10 = arith.constant 0 : index
      %12 = vector.load %arg6[%c0_9, %c0_10] : memref<8x128xf32, #tpu.memory_space<vmem>>, vector<8x128xf32>
      %c0_11 = arith.constant 0 : index
      %c0_12 = arith.constant 0 : index
      %13 = vector.load %arg4[%c0_11, %c0_12] : memref<8x128xf32, #tpu.memory_space<vmem>>, vector<8x128xf32>
      tpu.vector_store %arg4[%c0_11, %c0_12], %12 {strides = array<i32>} : memref<8x128xf32, #tpu.memory_space<vmem>>, vector<8x128xf32>,
      %cst_13 = arith.constant dense<0.000000e+00> : vector<128xf32>
      %14 = vector.multi_reduction <add>, %12, %cst_13 [0] : vector<8x128xf32> to vector<128xf32>
      %15 = vector.shape_cast %14 : vector<128xf32> to vector<1x128xf32>
      %c0_14 = arith.constant 0 : index
      %c0_15 = arith.constant 0 : index
      %c0_16 = arith.constant 0 : index
      %16 = vector.load %arg5[%c0_14, %c0_15, %c0_16] : memref<1x2x128xf32, #tpu.memory_space<vmem>>, vector<1x1x128xf32>
      %17 = vector.shape_cast %16 : vector<1x1x128xf32> to vector<1x128xf32>
      %18 = vector.shape_cast %15 : vector<1x128xf32> to vector<1x1x128xf32>
      tpu.vector_store %arg5[%c0_14, %c0_15, %c0_16], %18 {strides = array<i32>} : memref<1x2x128xf32, #tpu.memory_space<vmem>>, vector<1x1x128xf32>,
      %19 = arith.mulf %12, %12 : vector<8x128xf32>
      %cst_17 = arith.constant dense<0.000000e+00> : vector<128xf32>
      %20 = vector.multi_reduction <add>, %19, %cst_17 [0] : vector<8x128xf32> to vector<128xf32>
      %21 = vector.shape_cast %20 : vector<128xf32> to vector<1x128xf32>
      %c0_18 = arith.constant 0 : index
      %c1 = arith.constant 1 : index
      %c0_19 = arith.constant 0 : index
      %22 = vector.load %arg5[%c0_18, %c1, %c0_19] : memref<1x2x128xf32, #tpu.memory_space<vmem>>, vector<1x1x128xf32>
      %23 = vector.shape_cast %22 : vector<1x1x128xf32> to vector<1x128xf32>
      %24 = vector.shape_cast %21 : vector<1x128xf32> to vector<1x1x128xf32>
      tpu.vector_store %arg5[%c0_18, %c1, %c0_19], %24 {strides = array<i32>} : memref<1x2x128xf32, #tpu.memory_space<vmem>>, vector<1x1x128xf32>,
    } else {
    }
    return
  }
  func.func @transform_0(%arg0: i32, %arg1: i32) -> (i32, i32) {
    %c0_i32 = arith.constant 0 : i32
    return %arg0, %arg1 : i32, i32
  }
  func.func @transform_1(%arg0: i32, %arg1: i32) -> (i32, i32) {
    %c0_i32 = arith.constant 0 : i32
    %c0_i32_0 = arith.constant 0 : i32
    return %arg1, %c0_i32 : i32, i32
  }
  func.func @transform_2(%arg0: i32, %arg1: i32) -> (i32, i32) {
    %c0_i32 = arith.constant 0 : i32
    %c0_i32_0 = arith.constant 0 : i32
    return %arg0, %c0_i32 : i32, i32
  }
  func.func @transform_3(%arg0: i32, %arg1: i32) -> (i32, i32, i32) {
    %c0_i32 = arith.constant 0 : i32
    %c0_i32_0 = arith.constant 0 : i32
    %c0_i32_1 = arith.constant 0 : i32
    return %arg0, %c0_i32, %c0_i32_0 : i32, i32, i32
  }
}

module attributes {stable_mosaic.version = 11 : i64} {
  func.func @_bn_apply_kernel(%arg0: i32, %arg1: memref<8x128xf32, #tpu.memory_space<vmem>>, %arg2: memref<2x128xf32, #tpu.memory_space<vmem>>, %arg3: memref<1x128xf32, #tpu.memory_space<vmem>>, %arg4: memref<1x128xf32, #tpu.memory_space<vmem>>, %arg5: memref<8x128xf32, #tpu.memory_space<vmem>>) attributes {dimension_semantics = [#tpu.dimension_semantics<parallel>], iteration_bounds = array<i64: 1>, scalar_prefetch = 0 : i64, scratch_operands = 0 : i64, tpu.core_type = #tpu.core_type<tc>, window_params = [{transform_indices = @transform_0, window_bounds = array<i64: 8, 128>}, {pipeline_mode = #tpu.pipeline_mode<synchronous>, transform_indices = @transform_1, window_bounds = array<i64: 2, 128>}, {pipeline_mode = #tpu.pipeline_mode<synchronous>, transform_indices = @transform_2, window_bounds = array<i64: 1, 128>}, {pipeline_mode = #tpu.pipeline_mode<synchronous>, transform_indices = @transform_3, window_bounds = array<i64: 1, 128>}, {transform_indices = @transform_4, window_bounds = array<i64: 8, 128>}]} {
    %c0 = arith.constant 0 : index
    %c0_0 = arith.constant 0 : index
    %0 = vector.load %arg2[%c0, %c0_0] : memref<2x128xf32, #tpu.memory_space<vmem>>, vector<1x128xf32>
    %cst = arith.constant 1.250000e-01 : f32
    %1 = vector.broadcast %cst : f32 to vector<1x128xf32>
    %2 = arith.mulf %0, %1 : vector<1x128xf32>
    %c1 = arith.constant 1 : index
    %c0_1 = arith.constant 0 : index
    %3 = vector.load %arg2[%c1, %c0_1] : memref<2x128xf32, #tpu.memory_space<vmem>>, vector<1x128xf32>
    %cst_2 = arith.constant 1.250000e-01 : f32
    %4 = vector.broadcast %cst_2 : f32 to vector<1x128xf32>
    %5 = arith.mulf %3, %4 : vector<1x128xf32>
    %6 = arith.mulf %2, %2 : vector<1x128xf32>
    %7 = arith.subf %5, %6 : vector<1x128xf32>
    %cst_3 = arith.constant 0.000000e+00 : f32
    %8 = vector.broadcast %cst_3 : f32 to vector<1x128xf32>
    %9 = arith.maximumf %7, %8 : vector<1x128xf32>
    %c0_4 = arith.constant 0 : index
    %c0_5 = arith.constant 0 : index
    %10 = vector.load %arg3[%c0_4, %c0_5] : memref<1x128xf32, #tpu.memory_space<vmem>>, vector<1x128xf32>
    %cst_6 = arith.constant 9.99999974E-6 : f32
    %11 = vector.broadcast %cst_6 : f32 to vector<1x128xf32>
    %12 = arith.addf %9, %11 : vector<1x128xf32>
    %13 = math.rsqrt %12 : vector<1x128xf32>
    %14 = arith.mulf %10, %13 : vector<1x128xf32>
    %c0_7 = arith.constant 0 : index
    %c0_8 = arith.constant 0 : index
    %15 = vector.load %arg4[%c0_7, %c0_8] : memref<1x128xf32, #tpu.memory_space<vmem>>, vector<1x128xf32>
    %16 = arith.mulf %2, %14 : vector<1x128xf32>
    %17 = arith.subf %15, %16 : vector<1x128xf32>
    %c0_9 = arith.constant 0 : index
    %c0_10 = arith.constant 0 : index
    %18 = vector.load %arg1[%c0_9, %c0_10] : memref<8x128xf32, #tpu.memory_space<vmem>>, vector<8x128xf32>
    %19 = vector.broadcast %14 : vector<1x128xf32> to vector<8x128xf32>
    %20 = arith.mulf %18, %19 : vector<8x128xf32>
    %21 = vector.broadcast %17 : vector<1x128xf32> to vector<8x128xf32>
    %22 = arith.addf %20, %21 : vector<8x128xf32>
    %cst_11 = arith.constant 0.000000e+00 : f32
    %23 = vector.broadcast %cst_11 : f32 to vector<8x128xf32>
    %24 = arith.maximumf %22, %23 : vector<8x128xf32>
    %c0_12 = arith.constant 0 : index
    %c0_13 = arith.constant 0 : index
    %25 = vector.load %arg5[%c0_12, %c0_13] : memref<8x128xf32, #tpu.memory_space<vmem>>, vector<8x128xf32>
    tpu.vector_store %arg5[%c0_12, %c0_13], %24 {strides = array<i32>} : memref<8x128xf32, #tpu.memory_space<vmem>>, vector<8x128xf32>,
    return
  }
  func.func @transform_0(%arg0: i32) -> (i32, i32) {
    %c0_i32 = arith.constant 0 : i32
    %c0_i32_0 = arith.constant 0 : i32
    return %arg0, %c0_i32 : i32, i32
  }
  func.func @transform_1(%arg0: i32) -> (i32, i32) {
    %c0_i32 = arith.constant 0 : i32
    %c0_i32_0 = arith.constant 0 : i32
    %c0_i32_1 = arith.constant 0 : i32
    return %c0_i32, %c0_i32_0 : i32, i32
  }
  func.func @transform_2(%arg0: i32) -> (i32, i32) {
    %c0_i32 = arith.constant 0 : i32
    %c0_i32_0 = arith.constant 0 : i32
    %c0_i32_1 = arith.constant 0 : i32
    return %c0_i32, %c0_i32_0 : i32, i32
  }
  func.func @transform_3(%arg0: i32) -> (i32, i32) {
    %c0_i32 = arith.constant 0 : i32
    %c0_i32_0 = arith.constant 0 : i32
    %c0_i32_1 = arith.constant 0 : i32
    return %c0_i32, %c0_i32_0 : i32, i32
  }
  func.func @transform_4(%arg0: i32) -> (i32, i32) {
    %c0_i32 = arith.constant 0 : i32
    %c0_i32_0 = arith.constant 0 : i32
    return %arg0, %c0_i32 : i32, i32
  }
}

module attributes {stable_mosaic.version = 11 : i64} {
  func.func @_bn_apply_res_relu_kernel(%arg0: i32, %arg1: memref<8x128xf32, #tpu.memory_space<vmem>>, %arg2: memref<2x128xf32, #tpu.memory_space<vmem>>, %arg3: memref<1x128xf32, #tpu.memory_space<vmem>>, %arg4: memref<1x128xf32, #tpu.memory_space<vmem>>, %arg5: memref<8x128xf32, #tpu.memory_space<vmem>>, %arg6: memref<8x128xf32, #tpu.memory_space<vmem>>) attributes {dimension_semantics = [#tpu.dimension_semantics<parallel>], iteration_bounds = array<i64: 1>, scalar_prefetch = 0 : i64, scratch_operands = 0 : i64, tpu.core_type = #tpu.core_type<tc>, window_params = [{transform_indices = @transform_0, window_bounds = array<i64: 8, 128>}, {pipeline_mode = #tpu.pipeline_mode<synchronous>, transform_indices = @transform_1, window_bounds = array<i64: 2, 128>}, {pipeline_mode = #tpu.pipeline_mode<synchronous>, transform_indices = @transform_2, window_bounds = array<i64: 1, 128>}, {pipeline_mode = #tpu.pipeline_mode<synchronous>, transform_indices = @transform_3, window_bounds = array<i64: 1, 128>}, {transform_indices = @transform_4, window_bounds = array<i64: 8, 128>}, {transform_indices = @transform_5, window_bounds = array<i64: 8, 128>}]} {
    %c0 = arith.constant 0 : index
    %c0_0 = arith.constant 0 : index
    %0 = vector.load %arg2[%c0, %c0_0] : memref<2x128xf32, #tpu.memory_space<vmem>>, vector<1x128xf32>
    %cst = arith.constant 1.250000e-01 : f32
    %1 = vector.broadcast %cst : f32 to vector<1x128xf32>
    %2 = arith.mulf %0, %1 : vector<1x128xf32>
    %c1 = arith.constant 1 : index
    %c0_1 = arith.constant 0 : index
    %3 = vector.load %arg2[%c1, %c0_1] : memref<2x128xf32, #tpu.memory_space<vmem>>, vector<1x128xf32>
    %cst_2 = arith.constant 1.250000e-01 : f32
    %4 = vector.broadcast %cst_2 : f32 to vector<1x128xf32>
    %5 = arith.mulf %3, %4 : vector<1x128xf32>
    %6 = arith.mulf %2, %2 : vector<1x128xf32>
    %7 = arith.subf %5, %6 : vector<1x128xf32>
    %cst_3 = arith.constant 0.000000e+00 : f32
    %8 = vector.broadcast %cst_3 : f32 to vector<1x128xf32>
    %9 = arith.maximumf %7, %8 : vector<1x128xf32>
    %c0_4 = arith.constant 0 : index
    %c0_5 = arith.constant 0 : index
    %10 = vector.load %arg3[%c0_4, %c0_5] : memref<1x128xf32, #tpu.memory_space<vmem>>, vector<1x128xf32>
    %cst_6 = arith.constant 9.99999974E-6 : f32
    %11 = vector.broadcast %cst_6 : f32 to vector<1x128xf32>
    %12 = arith.addf %9, %11 : vector<1x128xf32>
    %13 = math.rsqrt %12 : vector<1x128xf32>
    %14 = arith.mulf %10, %13 : vector<1x128xf32>
    %c0_7 = arith.constant 0 : index
    %c0_8 = arith.constant 0 : index
    %15 = vector.load %arg4[%c0_7, %c0_8] : memref<1x128xf32, #tpu.memory_space<vmem>>, vector<1x128xf32>
    %16 = arith.mulf %2, %14 : vector<1x128xf32>
    %17 = arith.subf %15, %16 : vector<1x128xf32>
    %c0_9 = arith.constant 0 : index
    %c0_10 = arith.constant 0 : index
    %18 = vector.load %arg1[%c0_9, %c0_10] : memref<8x128xf32, #tpu.memory_space<vmem>>, vector<8x128xf32>
    %19 = vector.broadcast %14 : vector<1x128xf32> to vector<8x128xf32>
    %20 = arith.mulf %18, %19 : vector<8x128xf32>
    %21 = vector.broadcast %17 : vector<1x128xf32> to vector<8x128xf32>
    %22 = arith.addf %20, %21 : vector<8x128xf32>
    %c0_11 = arith.constant 0 : index
    %c0_12 = arith.constant 0 : index
    %23 = vector.load %arg5[%c0_11, %c0_12] : memref<8x128xf32, #tpu.memory_space<vmem>>, vector<8x128xf32>
    %24 = arith.addf %22, %23 : vector<8x128xf32>
    %cst_13 = arith.constant 0.000000e+00 : f32
    %25 = vector.broadcast %cst_13 : f32 to vector<8x128xf32>
    %26 = arith.maximumf %24, %25 : vector<8x128xf32>
    %c0_14 = arith.constant 0 : index
    %c0_15 = arith.constant 0 : index
    %27 = vector.load %arg6[%c0_14, %c0_15] : memref<8x128xf32, #tpu.memory_space<vmem>>, vector<8x128xf32>
    tpu.vector_store %arg6[%c0_14, %c0_15], %26 {strides = array<i32>} : memref<8x128xf32, #tpu.memory_space<vmem>>, vector<8x128xf32>,
    return
  }
  func.func @transform_0(%arg0: i32) -> (i32, i32) {
    %c0_i32 = arith.constant 0 : i32
    %c0_i32_0 = arith.constant 0 : i32
    return %arg0, %c0_i32 : i32, i32
  }
  func.func @transform_1(%arg0: i32) -> (i32, i32) {
    %c0_i32 = arith.constant 0 : i32
    %c0_i32_0 = arith.constant 0 : i32
    %c0_i32_1 = arith.constant 0 : i32
    return %c0_i32, %c0_i32_0 : i32, i32
  }
  func.func @transform_2(%arg0: i32) -> (i32, i32) {
    %c0_i32 = arith.constant 0 : i32
    %c0_i32_0 = arith.constant 0 : i32
    %c0_i32_1 = arith.constant 0 : i32
    return %c0_i32, %c0_i32_0 : i32, i32
  }
  func.func @transform_3(%arg0: i32) -> (i32, i32) {
    %c0_i32 = arith.constant 0 : i32
    %c0_i32_0 = arith.constant 0 : i32
    %c0_i32_1 = arith.constant 0 : i32
    return %c0_i32, %c0_i32_0 : i32, i32
  }
  func.func @transform_4(%arg0: i32) -> (i32, i32) {
    %c0_i32 = arith.constant 0 : i32
    %c0_i32_0 = arith.constant 0 : i32
    return %arg0, %c0_i32 : i32, i32
  }
  func.func @transform_5(%arg0: i32) -> (i32, i32) {
    %c0_i32 = arith.constant 0 : i32
    %c0_i32_0 = arith.constant 0 : i32
    return %arg0, %c0_i32 : i32, i32
  }
}

module attributes {stable_mosaic.version = 11 : i64} {
  func.func @_conv_gemm_kernel(%arg0: i32, %arg1: i32, %arg2: memref<2x384xbf16, #tpu.memory_space<vmem>>, %arg3: memref<384x128xbf16, #tpu.memory_space<vmem>>, %arg4: memref<2x128xf32, #tpu.memory_space<vmem>>, %arg5: memref<1x2x128xf32, #tpu.memory_space<vmem>>, %arg6: memref<2x128xf32, #tpu.memory_space<vmem>>) attributes {dimension_semantics = [#tpu.dimension_semantics<parallel>, #tpu.dimension_semantics<arbitrary>], iteration_bounds = array<i64: 1, 3>, scalar_prefetch = 0 : i64, scratch_operands = 1 : i64, tpu.core_type = #tpu.core_type<tc>, window_params = [{transform_indices = @transform_0, window_bounds = array<i64: 2, 384>}, {transform_indices = @transform_1, window_bounds = array<i64: 384, 128>}, {transform_indices = @transform_2, window_bounds = array<i64: 2, 128>}, {transform_indices = @transform_3, window_bounds = array<i64: 1, 2, 128>}]} {
    %c0_i32 = arith.constant 0 : i32
    %0 = arith.cmpi eq, %arg1, %c0_i32 : i32
    %1 = arith.extui %0 : i1 to i32
    %c0_i32_0 = arith.constant 0 : i32
    %2 = arith.cmpi ne, %1, %c0_i32_0 : i32
    scf.if %2 {
      %cst_9 = arith.constant 0.000000e+00 : f32
      %12 = vector.broadcast %cst_9 : f32 to vector<2x128xf32>
      %c0_10 = arith.constant 0 : index
      %c0_11 = arith.constant 0 : index
      %13 = vector.load %arg6[%c0_10, %c0_11] : memref<2x128xf32, #tpu.memory_space<vmem>>, vector<2x128xf32>
      tpu.vector_store %arg6[%c0_10, %c0_11], %12 {strides = array<i32>} : memref<2x128xf32, #tpu.memory_space<vmem>>, vector<2x128xf32>,
    } else {
    }
    %c0 = arith.constant 0 : index
    %c0_1 = arith.constant 0 : index
    %3 = vector.load %arg6[%c0, %c0_1] : memref<2x128xf32, #tpu.memory_space<vmem>>, vector<2x128xf32>
    %c0_2 = arith.constant 0 : index
    %c0_3 = arith.constant 0 : index
    %4 = vector.load %arg2[%c0_2, %c0_3] : memref<2x384xbf16, #tpu.memory_space<vmem>>, vector<2x384xbf16>
    %c0_4 = arith.constant 0 : index
    %c0_5 = arith.constant 0 : index
    %5 = vector.load %arg3[%c0_4, %c0_5] : memref<384x128xbf16, #tpu.memory_space<vmem>>, vector<384x128xbf16>
    %cst = arith.constant dense<0.000000e+00> : vector<2x128xf32>
    %6 = tpu.matmul %4, %5, %cst {dimension_numbers = #tpu.dot_dimension_numbers<[1], [0], [0], [1], [0, 0, 1, 1], [], []>} : vector<2x384xbf16>, vector<384x128xbf16>, vector<2x128xf32> -> vector<2x128xf32>
    %7 = arith.addf %3, %6 : vector<2x128xf32>
    %c0_6 = arith.constant 0 : index
    %c0_7 = arith.constant 0 : index
    %8 = vector.load %arg6[%c0_6, %c0_7] : memref<2x128xf32, #tpu.memory_space<vmem>>, vector<2x128xf32>
    tpu.vector_store %arg6[%c0_6, %c0_7], %7 {strides = array<i32>} : memref<2x128xf32, #tpu.memory_space<vmem>>, vector<2x128xf32>,
    %c2_i32 = arith.constant 2 : i32
    %9 = arith.cmpi eq, %arg1, %c2_i32 : i32
    %10 = arith.extui %9 : i1 to i32
    %c0_i32_8 = arith.constant 0 : i32
    %11 = arith.cmpi ne, %10, %c0_i32_8 : i32
    scf.if %11 {
      %c0_9 = arith.constant 0 : index
      %c0_10 = arith.constant 0 : index
      %12 = vector.load %arg6[%c0_9, %c0_10] : memref<2x128xf32, #tpu.memory_space<vmem>>, vector<2x128xf32>
      %c0_11 = arith.constant 0 : index
      %c0_12 = arith.constant 0 : index
      %13 = vector.load %arg4[%c0_11, %c0_12] : memref<2x128xf32, #tpu.memory_space<vmem>>, vector<2x128xf32>
      tpu.vector_store %arg4[%c0_11, %c0_12], %12 {strides = array<i32>} : memref<2x128xf32, #tpu.memory_space<vmem>>, vector<2x128xf32>,
      %cst_13 = arith.constant dense<0.000000e+00> : vector<128xf32>
      %14 = vector.multi_reduction <add>, %12, %cst_13 [0] : vector<2x128xf32> to vector<128xf32>
      %15 = vector.shape_cast %14 : vector<128xf32> to vector<1x128xf32>
      %c0_14 = arith.constant 0 : index
      %c0_15 = arith.constant 0 : index
      %c0_16 = arith.constant 0 : index
      %16 = vector.load %arg5[%c0_14, %c0_15, %c0_16] : memref<1x2x128xf32, #tpu.memory_space<vmem>>, vector<1x1x128xf32>
      %17 = vector.shape_cast %16 : vector<1x1x128xf32> to vector<1x128xf32>
      %18 = vector.shape_cast %15 : vector<1x128xf32> to vector<1x1x128xf32>
      tpu.vector_store %arg5[%c0_14, %c0_15, %c0_16], %18 {strides = array<i32>} : memref<1x2x128xf32, #tpu.memory_space<vmem>>, vector<1x1x128xf32>,
      %19 = arith.mulf %12, %12 : vector<2x128xf32>
      %cst_17 = arith.constant dense<0.000000e+00> : vector<128xf32>
      %20 = vector.multi_reduction <add>, %19, %cst_17 [0] : vector<2x128xf32> to vector<128xf32>
      %21 = vector.shape_cast %20 : vector<128xf32> to vector<1x128xf32>
      %c0_18 = arith.constant 0 : index
      %c1 = arith.constant 1 : index
      %c0_19 = arith.constant 0 : index
      %22 = vector.load %arg5[%c0_18, %c1, %c0_19] : memref<1x2x128xf32, #tpu.memory_space<vmem>>, vector<1x1x128xf32>
      %23 = vector.shape_cast %22 : vector<1x1x128xf32> to vector<1x128xf32>
      %24 = vector.shape_cast %21 : vector<1x128xf32> to vector<1x1x128xf32>
      tpu.vector_store %arg5[%c0_18, %c1, %c0_19], %24 {strides = array<i32>} : memref<1x2x128xf32, #tpu.memory_space<vmem>>, vector<1x1x128xf32>,
    } else {
    }
    return
  }
  func.func @transform_0(%arg0: i32, %arg1: i32) -> (i32, i32) {
    %c0_i32 = arith.constant 0 : i32
    return %arg0, %arg1 : i32, i32
  }
  func.func @transform_1(%arg0: i32, %arg1: i32) -> (i32, i32) {
    %c0_i32 = arith.constant 0 : i32
    %c0_i32_0 = arith.constant 0 : i32
    return %arg1, %c0_i32 : i32, i32
  }
  func.func @transform_2(%arg0: i32, %arg1: i32) -> (i32, i32) {
    %c0_i32 = arith.constant 0 : i32
    %c0_i32_0 = arith.constant 0 : i32
    return %arg0, %c0_i32 : i32, i32
  }
  func.func @transform_3(%arg0: i32, %arg1: i32) -> (i32, i32, i32) {
    %c0_i32 = arith.constant 0 : i32
    %c0_i32_0 = arith.constant 0 : i32
    %c0_i32_1 = arith.constant 0 : i32
    return %arg0, %c0_i32, %c0_i32_0 : i32, i32, i32
  }
}

module attributes {stable_mosaic.version = 11 : i64} {
  func.func @_bn_apply_kernel(%arg0: i32, %arg1: memref<2x128xf32, #tpu.memory_space<vmem>>, %arg2: memref<2x128xf32, #tpu.memory_space<vmem>>, %arg3: memref<1x128xf32, #tpu.memory_space<vmem>>, %arg4: memref<1x128xf32, #tpu.memory_space<vmem>>, %arg5: memref<2x128xf32, #tpu.memory_space<vmem>>) attributes {dimension_semantics = [#tpu.dimension_semantics<parallel>], iteration_bounds = array<i64: 1>, scalar_prefetch = 0 : i64, scratch_operands = 0 : i64, tpu.core_type = #tpu.core_type<tc>, window_params = [{transform_indices = @transform_0, window_bounds = array<i64: 2, 128>}, {pipeline_mode = #tpu.pipeline_mode<synchronous>, transform_indices = @transform_1, window_bounds = array<i64: 2, 128>}, {pipeline_mode = #tpu.pipeline_mode<synchronous>, transform_indices = @transform_2, window_bounds = array<i64: 1, 128>}, {pipeline_mode = #tpu.pipeline_mode<synchronous>, transform_indices = @transform_3, window_bounds = array<i64: 1, 128>}, {transform_indices = @transform_4, window_bounds = array<i64: 2, 128>}]} {
    %c0 = arith.constant 0 : index
    %c0_0 = arith.constant 0 : index
    %0 = vector.load %arg2[%c0, %c0_0] : memref<2x128xf32, #tpu.memory_space<vmem>>, vector<1x128xf32>
    %cst = arith.constant 5.000000e-01 : f32
    %1 = vector.broadcast %cst : f32 to vector<1x128xf32>
    %2 = arith.mulf %0, %1 : vector<1x128xf32>
    %c1 = arith.constant 1 : index
    %c0_1 = arith.constant 0 : index
    %3 = vector.load %arg2[%c1, %c0_1] : memref<2x128xf32, #tpu.memory_space<vmem>>, vector<1x128xf32>
    %cst_2 = arith.constant 5.000000e-01 : f32
    %4 = vector.broadcast %cst_2 : f32 to vector<1x128xf32>
    %5 = arith.mulf %3, %4 : vector<1x128xf32>
    %6 = arith.mulf %2, %2 : vector<1x128xf32>
    %7 = arith.subf %5, %6 : vector<1x128xf32>
    %cst_3 = arith.constant 0.000000e+00 : f32
    %8 = vector.broadcast %cst_3 : f32 to vector<1x128xf32>
    %9 = arith.maximumf %7, %8 : vector<1x128xf32>
    %c0_4 = arith.constant 0 : index
    %c0_5 = arith.constant 0 : index
    %10 = vector.load %arg3[%c0_4, %c0_5] : memref<1x128xf32, #tpu.memory_space<vmem>>, vector<1x128xf32>
    %cst_6 = arith.constant 9.99999974E-6 : f32
    %11 = vector.broadcast %cst_6 : f32 to vector<1x128xf32>
    %12 = arith.addf %9, %11 : vector<1x128xf32>
    %13 = math.rsqrt %12 : vector<1x128xf32>
    %14 = arith.mulf %10, %13 : vector<1x128xf32>
    %c0_7 = arith.constant 0 : index
    %c0_8 = arith.constant 0 : index
    %15 = vector.load %arg4[%c0_7, %c0_8] : memref<1x128xf32, #tpu.memory_space<vmem>>, vector<1x128xf32>
    %16 = arith.mulf %2, %14 : vector<1x128xf32>
    %17 = arith.subf %15, %16 : vector<1x128xf32>
    %c0_9 = arith.constant 0 : index
    %c0_10 = arith.constant 0 : index
    %18 = vector.load %arg1[%c0_9, %c0_10] : memref<2x128xf32, #tpu.memory_space<vmem>>, vector<2x128xf32>
    %19 = vector.broadcast %14 : vector<1x128xf32> to vector<2x128xf32>
    %20 = arith.mulf %18, %19 : vector<2x128xf32>
    %21 = vector.broadcast %17 : vector<1x128xf32> to vector<2x128xf32>
    %22 = arith.addf %20, %21 : vector<2x128xf32>
    %cst_11 = arith.constant 0.000000e+00 : f32
    %23 = vector.broadcast %cst_11 : f32 to vector<2x128xf32>
    %24 = arith.maximumf %22, %23 : vector<2x128xf32>
    %c0_12 = arith.constant 0 : index
    %c0_13 = arith.constant 0 : index
    %25 = vector.load %arg5[%c0_12, %c0_13] : memref<2x128xf32, #tpu.memory_space<vmem>>, vector<2x128xf32>
    tpu.vector_store %arg5[%c0_12, %c0_13], %24 {strides = array<i32>} : memref<2x128xf32, #tpu.memory_space<vmem>>, vector<2x128xf32>,
    return
  }
  func.func @transform_0(%arg0: i32) -> (i32, i32) {
    %c0_i32 = arith.constant 0 : i32
    %c0_i32_0 = arith.constant 0 : i32
    return %arg0, %c0_i32 : i32, i32
  }
  func.func @transform_1(%arg0: i32) -> (i32, i32) {
    %c0_i32 = arith.constant 0 : i32
    %c0_i32_0 = arith.constant 0 : i32
    %c0_i32_1 = arith.constant 0 : i32
    return %c0_i32, %c0_i32_0 : i32, i32
  }
  func.func @transform_2(%arg0: i32) -> (i32, i32) {
    %c0_i32 = arith.constant 0 : i32
    %c0_i32_0 = arith.constant 0 : i32
    %c0_i32_1 = arith.constant 0 : i32
    return %c0_i32, %c0_i32_0 : i32, i32
  }
  func.func @transform_3(%arg0: i32) -> (i32, i32) {
    %c0_i32 = arith.constant 0 : i32
    %c0_i32_0 = arith.constant 0 : i32
    %c0_i32_1 = arith.constant 0 : i32
    return %c0_i32, %c0_i32_0 : i32, i32
  }
  func.func @transform_4(%arg0: i32) -> (i32, i32) {
    %c0_i32 = arith.constant 0 : i32
    %c0_i32_0 = arith.constant 0 : i32
    return %arg0, %c0_i32 : i32, i32
  }
}

module attributes {stable_mosaic.version = 11 : i64} {
  func.func @_bn_apply_kernel(%arg0: i32, %arg1: memref<2x128xf32, #tpu.memory_space<vmem>>, %arg2: memref<2x128xf32, #tpu.memory_space<vmem>>, %arg3: memref<1x128xf32, #tpu.memory_space<vmem>>, %arg4: memref<1x128xf32, #tpu.memory_space<vmem>>, %arg5: memref<2x128xf32, #tpu.memory_space<vmem>>) attributes {dimension_semantics = [#tpu.dimension_semantics<parallel>], iteration_bounds = array<i64: 1>, scalar_prefetch = 0 : i64, scratch_operands = 0 : i64, tpu.core_type = #tpu.core_type<tc>, window_params = [{transform_indices = @transform_0, window_bounds = array<i64: 2, 128>}, {pipeline_mode = #tpu.pipeline_mode<synchronous>, transform_indices = @transform_1, window_bounds = array<i64: 2, 128>}, {pipeline_mode = #tpu.pipeline_mode<synchronous>, transform_indices = @transform_2, window_bounds = array<i64: 1, 128>}, {pipeline_mode = #tpu.pipeline_mode<synchronous>, transform_indices = @transform_3, window_bounds = array<i64: 1, 128>}, {transform_indices = @transform_4, window_bounds = array<i64: 2, 128>}]} {
    %c0 = arith.constant 0 : index
    %c0_0 = arith.constant 0 : index
    %0 = vector.load %arg2[%c0, %c0_0] : memref<2x128xf32, #tpu.memory_space<vmem>>, vector<1x128xf32>
    %cst = arith.constant 5.000000e-01 : f32
    %1 = vector.broadcast %cst : f32 to vector<1x128xf32>
    %2 = arith.mulf %0, %1 : vector<1x128xf32>
    %c1 = arith.constant 1 : index
    %c0_1 = arith.constant 0 : index
    %3 = vector.load %arg2[%c1, %c0_1] : memref<2x128xf32, #tpu.memory_space<vmem>>, vector<1x128xf32>
    %cst_2 = arith.constant 5.000000e-01 : f32
    %4 = vector.broadcast %cst_2 : f32 to vector<1x128xf32>
    %5 = arith.mulf %3, %4 : vector<1x128xf32>
    %6 = arith.mulf %2, %2 : vector<1x128xf32>
    %7 = arith.subf %5, %6 : vector<1x128xf32>
    %cst_3 = arith.constant 0.000000e+00 : f32
    %8 = vector.broadcast %cst_3 : f32 to vector<1x128xf32>
    %9 = arith.maximumf %7, %8 : vector<1x128xf32>
    %c0_4 = arith.constant 0 : index
    %c0_5 = arith.constant 0 : index
    %10 = vector.load %arg3[%c0_4, %c0_5] : memref<1x128xf32, #tpu.memory_space<vmem>>, vector<1x128xf32>
    %cst_6 = arith.constant 9.99999974E-6 : f32
    %11 = vector.broadcast %cst_6 : f32 to vector<1x128xf32>
    %12 = arith.addf %9, %11 : vector<1x128xf32>
    %13 = math.rsqrt %12 : vector<1x128xf32>
    %14 = arith.mulf %10, %13 : vector<1x128xf32>
    %c0_7 = arith.constant 0 : index
    %c0_8 = arith.constant 0 : index
    %15 = vector.load %arg4[%c0_7, %c0_8] : memref<1x128xf32, #tpu.memory_space<vmem>>, vector<1x128xf32>
    %16 = arith.mulf %2, %14 : vector<1x128xf32>
    %17 = arith.subf %15, %16 : vector<1x128xf32>
    %c0_9 = arith.constant 0 : index
    %c0_10 = arith.constant 0 : index
    %18 = vector.load %arg1[%c0_9, %c0_10] : memref<2x128xf32, #tpu.memory_space<vmem>>, vector<2x128xf32>
    %19 = vector.broadcast %14 : vector<1x128xf32> to vector<2x128xf32>
    %20 = arith.mulf %18, %19 : vector<2x128xf32>
    %21 = vector.broadcast %17 : vector<1x128xf32> to vector<2x128xf32>
    %22 = arith.addf %20, %21 : vector<2x128xf32>
    %c0_11 = arith.constant 0 : index
    %c0_12 = arith.constant 0 : index
    %23 = vector.load %arg5[%c0_11, %c0_12] : memref<2x128xf32, #tpu.memory_space<vmem>>, vector<2x128xf32>
    tpu.vector_store %arg5[%c0_11, %c0_12], %22 {strides = array<i32>} : memref<2x128xf32, #tpu.memory_space<vmem>>, vector<2x128xf32>,
    return
  }
  func.func @transform_0(%arg0: i32) -> (i32, i32) {
    %c0_i32 = arith.constant 0 : i32
    %c0_i32_0 = arith.constant 0 : i32
    return %arg0, %c0_i32 : i32, i32
  }
  func.func @transform_1(%arg0: i32) -> (i32, i32) {
    %c0_i32 = arith.constant 0 : i32
    %c0_i32_0 = arith.constant 0 : i32
    %c0_i32_1 = arith.constant 0 : i32
    return %c0_i32, %c0_i32_0 : i32, i32
  }
  func.func @transform_2(%arg0: i32) -> (i32, i32) {
    %c0_i32 = arith.constant 0 : i32
    %c0_i32_0 = arith.constant 0 : i32
    %c0_i32_1 = arith.constant 0 : i32
    return %c0_i32, %c0_i32_0 : i32, i32
  }
  func.func @transform_3(%arg0: i32) -> (i32, i32) {
    %c0_i32 = arith.constant 0 : i32
    %c0_i32_0 = arith.constant 0 : i32
    %c0_i32_1 = arith.constant 0 : i32
    return %c0_i32, %c0_i32_0 : i32, i32
  }
  func.func @transform_4(%arg0: i32) -> (i32, i32) {
    %c0_i32 = arith.constant 0 : i32
    %c0_i32_0 = arith.constant 0 : i32
    return %arg0, %c0_i32 : i32, i32
  }
}

module attributes {stable_mosaic.version = 11 : i64} {
  func.func @_avg_fc_kernel(%arg0: memref<2x1x128xf32, #tpu.memory_space<vmem>>, %arg1: memref<128x128xf32, #tpu.memory_space<vmem>>, %arg2: memref<1x128xf32, #tpu.memory_space<vmem>>, %arg3: memref<2x128xf32, #tpu.memory_space<vmem>>) attributes {dimension_semantics = [], scalar_prefetch = 0 : i64, scratch_operands = 0 : i64, tpu.core_type = #tpu.core_type<tc>} {
    %c0 = arith.constant 0 : index
    %c0_0 = arith.constant 0 : index
    %c0_1 = arith.constant 0 : index
    %0 = vector.load %arg0[%c0, %c0_0, %c0_1] : memref<2x1x128xf32, #tpu.memory_space<vmem>>, vector<2x1x128xf32>
    %cst = arith.constant dense<0.000000e+00> : vector<2x128xf32>
    %1 = vector.multi_reduction <add>, %0, %cst [1] : vector<2x1x128xf32> to vector<2x128xf32>
    %cst_2 = arith.constant 1.000000e+00 : f32
    %2 = vector.broadcast %cst_2 : f32 to vector<2x128xf32>
    %3 = arith.divf %1, %2 : vector<2x128xf32>
    %c0_3 = arith.constant 0 : index
    %c0_4 = arith.constant 0 : index
    %4 = vector.load %arg1[%c0_3, %c0_4] : memref<128x128xf32, #tpu.memory_space<vmem>>, vector<128x128xf32>
    %cst_5 = arith.constant dense<0.000000e+00> : vector<2x128xf32>
    %5 = tpu.matmul %3, %4, %cst_5 {dimension_numbers = #tpu.dot_dimension_numbers<[1], [0], [0], [1], [0, 0, 1, 1], [], []>} : vector<2x128xf32>, vector<128x128xf32>, vector<2x128xf32> -> vector<2x128xf32>
    %c0_6 = arith.constant 0 : index
    %c0_7 = arith.constant 0 : index
    %6 = vector.load %arg2[%c0_6, %c0_7] : memref<1x128xf32, #tpu.memory_space<vmem>>, vector<1x128xf32>
    %7 = vector.broadcast %6 : vector<1x128xf32> to vector<2x128xf32>
    %8 = arith.addf %5, %7 : vector<2x128xf32>
    %c0_8 = arith.constant 0 : index
    %c0_9 = arith.constant 0 : index
    %9 = vector.load %arg3[%c0_8, %c0_9] : memref<2x128xf32, #tpu.memory_space<vmem>>, vector<2x128xf32>
    tpu.vector_store %arg3[%c0_8, %c0_9], %8 {strides = array<i32>} : memref<2x128xf32, #tpu.memory_space<vmem>>, vector<2x128xf32>,
    return
  }
}

module attributes {stable_mosaic.version = 11 : i64} {
  func.func @_bn_apply_res_relu_kernel(%arg0: i32, %arg1: memref<2x128xf32, #tpu.memory_space<vmem>>, %arg2: memref<2x128xf32, #tpu.memory_space<vmem>>, %arg3: memref<1x128xf32, #tpu.memory_space<vmem>>, %arg4: memref<1x128xf32, #tpu.memory_space<vmem>>, %arg5: memref<2x128xf32, #tpu.memory_space<vmem>>, %arg6: memref<2x128xf32, #tpu.memory_space<vmem>>) attributes {dimension_semantics = [#tpu.dimension_semantics<parallel>], iteration_bounds = array<i64: 1>, scalar_prefetch = 0 : i64, scratch_operands = 0 : i64, tpu.core_type = #tpu.core_type<tc>, window_params = [{transform_indices = @transform_0, window_bounds = array<i64: 2, 128>}, {pipeline_mode = #tpu.pipeline_mode<synchronous>, transform_indices = @transform_1, window_bounds = array<i64: 2, 128>}, {pipeline_mode = #tpu.pipeline_mode<synchronous>, transform_indices = @transform_2, window_bounds = array<i64: 1, 128>}, {pipeline_mode = #tpu.pipeline_mode<synchronous>, transform_indices = @transform_3, window_bounds = array<i64: 1, 128>}, {transform_indices = @transform_4, window_bounds = array<i64: 2, 128>}, {transform_indices = @transform_5, window_bounds = array<i64: 2, 128>}]} {
    %c0 = arith.constant 0 : index
    %c0_0 = arith.constant 0 : index
    %0 = vector.load %arg2[%c0, %c0_0] : memref<2x128xf32, #tpu.memory_space<vmem>>, vector<1x128xf32>
    %cst = arith.constant 5.000000e-01 : f32
    %1 = vector.broadcast %cst : f32 to vector<1x128xf32>
    %2 = arith.mulf %0, %1 : vector<1x128xf32>
    %c1 = arith.constant 1 : index
    %c0_1 = arith.constant 0 : index
    %3 = vector.load %arg2[%c1, %c0_1] : memref<2x128xf32, #tpu.memory_space<vmem>>, vector<1x128xf32>
    %cst_2 = arith.constant 5.000000e-01 : f32
    %4 = vector.broadcast %cst_2 : f32 to vector<1x128xf32>
    %5 = arith.mulf %3, %4 : vector<1x128xf32>
    %6 = arith.mulf %2, %2 : vector<1x128xf32>
    %7 = arith.subf %5, %6 : vector<1x128xf32>
    %cst_3 = arith.constant 0.000000e+00 : f32
    %8 = vector.broadcast %cst_3 : f32 to vector<1x128xf32>
    %9 = arith.maximumf %7, %8 : vector<1x128xf32>
    %c0_4 = arith.constant 0 : index
    %c0_5 = arith.constant 0 : index
    %10 = vector.load %arg3[%c0_4, %c0_5] : memref<1x128xf32, #tpu.memory_space<vmem>>, vector<1x128xf32>
    %cst_6 = arith.constant 9.99999974E-6 : f32
    %11 = vector.broadcast %cst_6 : f32 to vector<1x128xf32>
    %12 = arith.addf %9, %11 : vector<1x128xf32>
    %13 = math.rsqrt %12 : vector<1x128xf32>
    %14 = arith.mulf %10, %13 : vector<1x128xf32>
    %c0_7 = arith.constant 0 : index
    %c0_8 = arith.constant 0 : index
    %15 = vector.load %arg4[%c0_7, %c0_8] : memref<1x128xf32, #tpu.memory_space<vmem>>, vector<1x128xf32>
    %16 = arith.mulf %2, %14 : vector<1x128xf32>
    %17 = arith.subf %15, %16 : vector<1x128xf32>
    %c0_9 = arith.constant 0 : index
    %c0_10 = arith.constant 0 : index
    %18 = vector.load %arg1[%c0_9, %c0_10] : memref<2x128xf32, #tpu.memory_space<vmem>>, vector<2x128xf32>
    %19 = vector.broadcast %14 : vector<1x128xf32> to vector<2x128xf32>
    %20 = arith.mulf %18, %19 : vector<2x128xf32>
    %21 = vector.broadcast %17 : vector<1x128xf32> to vector<2x128xf32>
    %22 = arith.addf %20, %21 : vector<2x128xf32>
    %c0_11 = arith.constant 0 : index
    %c0_12 = arith.constant 0 : index
    %23 = vector.load %arg5[%c0_11, %c0_12] : memref<2x128xf32, #tpu.memory_space<vmem>>, vector<2x128xf32>
    %24 = arith.addf %22, %23 : vector<2x128xf32>
    %cst_13 = arith.constant 0.000000e+00 : f32
    %25 = vector.broadcast %cst_13 : f32 to vector<2x128xf32>
    %26 = arith.maximumf %24, %25 : vector<2x128xf32>
    %c0_14 = arith.constant 0 : index
    %c0_15 = arith.constant 0 : index
    %27 = vector.load %arg6[%c0_14, %c0_15] : memref<2x128xf32, #tpu.memory_space<vmem>>, vector<2x128xf32>
    tpu.vector_store %arg6[%c0_14, %c0_15], %26 {strides = array<i32>} : memref<2x128xf32, #tpu.memory_space<vmem>>, vector<2x128xf32>,
    return
  }
  func.func @transform_0(%arg0: i32) -> (i32, i32) {
    %c0_i32 = arith.constant 0 : i32
    %c0_i32_0 = arith.constant 0 : i32
    return %arg0, %c0_i32 : i32, i32
  }
  func.func @transform_1(%arg0: i32) -> (i32, i32) {
    %c0_i32 = arith.constant 0 : i32
    %c0_i32_0 = arith.constant 0 : i32
    %c0_i32_1 = arith.constant 0 : i32
    return %c0_i32, %c0_i32_0 : i32, i32
  }
  func.func @transform_2(%arg0: i32) -> (i32, i32) {
    %c0_i32 = arith.constant 0 : i32
    %c0_i32_0 = arith.constant 0 : i32
    %c0_i32_1 = arith.constant 0 : i32
    return %c0_i32, %c0_i32_0 : i32, i32
  }
  func.func @transform_3(%arg0: i32) -> (i32, i32) {
    %c0_i32 = arith.constant 0 : i32
    %c0_i32_0 = arith.constant 0 : i32
    %c0_i32_1 = arith.constant 0 : i32
    return %c0_i32, %c0_i32_0 : i32, i32
  }
  func.func @transform_4(%arg0: i32) -> (i32, i32) {
    %c0_i32 = arith.constant 0 : i32
    %c0_i32_0 = arith.constant 0 : i32
    return %arg0, %c0_i32 : i32, i32
  }
  func.func @transform_5(%arg0: i32) -> (i32, i32) {
    %c0_i32 = arith.constant 0 : i32
    %c0_i32_0 = arith.constant 0 : i32
    return %arg0, %c0_i32 : i32, i32
  }
}

</mosaic_0001>

<llo_original>
// kernel: _lambda_.43
$region0: #{_lambda_.43}
  #allocation0 [shape = 'u32[]', space=smem, size = 0x4, offset = 0x4, fixed_abs, tag = 'smem constant byte address 0x4 - core index']
  #allocation1 [shape = 'u32[72,128]{1,0:T(1,128)}', space=vmem, size = 0x9000, scoped, tag = 'internal scratch']
  %s0 = inlined_call_operand.vmem [shape: f32[128,128], index: 0, kind: input, shape index: {}]
  %s1 = inlined_call_operand.vmem [shape: f32[2,128], index: 1, kind: input, shape index: {}]
  %s2 = inlined_call_operand.vmem [shape: f32[1,128], index: 2, kind: input, shape index: {}]
  %s3 = inlined_call_operand.vmem [shape: f32[1,128], index: 3, kind: input, shape index: {}]
  %s4 = inlined_call_operand.vmem [shape: f32[128,128], index: 4, kind: output, shape index: {}]
  %s5 = sld [smem:[#allocation0]]
  $region26: #{_lambda_.43} parent=0
    _
  %s7 = ssub.s32 1, %s5
  %s8 = scalar_select 0, %s7, %s5
  // Predicated region
  $region2: #{_lambda_.43} parent=0 // pred_check
    _
  $region3: #{_lambda_.43} parent=0 // pred_check_branch
    %10 = sbr.rel (0) target = $region5
  $region4: #{_lambda_.43} parent=0 // pred_region
    _
  $region5: #{_lambda_.43} parent=0 // pred_fallthru
    _
  // Predicated region
  $region6: #{_lambda_.43} parent=0 // pred_check
    _
  $region7: #{_lambda_.43} parent=0 // pred_check_branch
    %12 = sbr.rel (0) target = $region9
  $region8: #{_lambda_.43} parent=0 // pred_region
    _
  $region9: #{_lambda_.43} parent=0 // pred_fallthru
    _
  // Predicated region
  $region10: #{_lambda_.43} parent=0 // pred_check
    _
  $region11: #{_lambda_.43} parent=0 // pred_check_branch
    %14 = sbr.rel (0) target = $region13
  $region12: #{_lambda_.43} parent=0 // pred_region
    _
  $region13: #{_lambda_.43} parent=0 // pred_fallthru
    _
  // Predicated region
  $region14: #{_lambda_.43} parent=0 // pred_check
    _
  $region15: #{_lambda_.43} parent=0 // pred_check_branch
    %16 = sbr.rel (0) target = $region17
  $region16: #{_lambda_.43} parent=0 // pred_region
    _
  $region17: #{_lambda_.43} parent=0 // pred_fallthru
    _
  %v17 = vld [vmem:[%s1] sm:$0x1]
  %v18 = vmul.f32 %v17, 0.0078125
  %v19 = vld [vmem:[%s1 + $0x1] sm:$0x1]
  %v20 = vmul.f32 %v19, 0.0078125
  %v21 = vmul.f32 %v18, %v18
  %v22 = vsub.f32 %v20, %v21
  %v23 = vmax.f32 %v22, 0.0
  %v24 = vld [vmem:[%s2] sm:$0x1]
  %v25 = vadd.f32 %v23, 1e-05
  %v26 = vrsqrt.pop %v25
  %v27 = vmul.f32 %v26, %v25
  %v28 = vmul.f32 %v27, %v26
  %v29 = vmul.f32 0.5, %v28
  %v30 = vsub.f32 1.5, %v29
  %v31 = vmul.f32 %v26, %v30
  %vm32 = vweird.f32 %v25
  %vm33 = vweird.f32 %v26
  %vm34 = vmor %vm32, %vm33
  %v35 = vsel %vm34, %v26, %v31
  %v36 = vmul.f32 %v24, %v35
  %v37 = vld [vmem:[%s3] sm:$0x1]
  %v38 = vmul.f32 %v18, %v36
  %v39 = vsub.f32 %v37, %v38
  %v40 = vld [vmem:[%s0] sm:$0xff]
  %v41 = vld [vmem:[%s0 + $0x8] sm:$0xff]
  %v42 = vld [vmem:[%s0 + $0x10] sm:$0xff]
  %v43 = vld [vmem:[%s0 + $0x18] sm:$0xff]
  %v44 = vld [vmem:[%s0 + $0x20] sm:$0xff]
  %v45 = vld [vmem:[%s0 + $0x28] sm:$0xff]
  %v46 = vld [vmem:[%s0 + $0x30] sm:$0xff]
  %v47 = vld [vmem:[%s0 + $0x38] sm:$0xff]
  %v48 = vld [vmem:[%s0 + $0x40] sm:$0xff]
  %v49 = vld [vmem:[%s0 + $0x48] sm:$0xff]
  %v50 = vld [vmem:[%s0 + $0x50] sm:$0xff]
  %v51 = vld [vmem:[%s0 + $0x58] sm:$0xff]
  %v52 = vld [vmem:[%s0 + $0x60] sm:$0xff]
  %v53 = vld [vmem:[%s0 + $0x68] sm:$0xff]
  %v54 = vld [vmem:[%s0 + $0x70] sm:$0xff]
  %v55 = vld [vmem:[%s0 + $0x78] sm:$0xff]
  %v57 = vperm.slane %v36, 0
  %v59 = vmul.f32 %v40, %v57
  %v60 = vmul.f32 %v41, %v57
  %v61 = vmul.f32 %v42, %v57
  %v62 = vmul.f32 %v43, %v57
  %v63 = vmul.f32 %v44, %v57
  %v64 = vmul.f32 %v45, %v57
  %v65 = vmul.f32 %v46, %v57
  %v66 = vmul.f32 %v47, %v57
  %v67 = vmul.f32 %v48, %v57
  %v68 = vmul.f32 %v49, %v57
  %v69 = vmul.f32 %v50, %v57
  %v70 = vmul.f32 %v51, %v57
  %v71 = vmul.f32 %v52, %v57
  %v72 = vmul.f32 %v53, %v57
  %v73 = vmul.f32 %v54, %v57
  %v74 = vmul.f32 %v55, %v57
  %v76 = vperm.slane %v39, 0
  %v78 = vadd.f32 %v59, %v76
  %v79 = vadd.f32 %v60, %v76
  %v80 = vadd.f32 %v61, %v76
  %v81 = vadd.f32 %v62, %v76
  %v82 = vadd.f32 %v63, %v76
  %v83 = vadd.f32 %v64, %v76
  %v84 = vadd.f32 %v65, %v76
  %v85 = vadd.f32 %v66, %v76
  %v86 = vadd.f32 %v67, %v76
  %v87 = vadd.f32 %v68, %v76
  %v88 = vadd.f32 %v69, %v76
  %v89 = vadd.f32 %v70, %v76
  %v90 = vadd.f32 %v71, %v76
  %v91 = vadd.f32 %v72, %v76
  %v92 = vadd.f32 %v73, %v76
  %v93 = vadd.f32 %v74, %v76
  %v94 = vmax.f32 %v78, 0.0
  %v95 = vmax.f32 %v79, 0.0
  %v96 = vmax.f32 %v80, 0.0
  %v97 = vmax.f32 %v81, 0.0
  %v98 = vmax.f32 %v82, 0.0
  %v99 = vmax.f32 %v83, 0.0
  %v100 = vmax.f32 %v84, 0.0
  %v101 = vmax.f32 %v85, 0.0
  %v102 = vmax.f32 %v86, 0.0
  %v103 = vmax.f32 %v87, 0.0
  %v104 = vmax.f32 %v88, 0.0
  %v105 = vmax.f32 %v89, 0.0
  %v106 = vmax.f32 %v90, 0.0
  %v107 = vmax.f32 %v91, 0.0
  %v108 = vmax.f32 %v92, 0.0
  %v109 = vmax.f32 %v93, 0.0
  %110 = vst [vmem:[%s4] sm:$0xff] %v94
  %111 = vst [vmem:[%s4 + $0x8] sm:$0xff] %v95
  %112 = vst [vmem:[%s4 + $0x10] sm:$0xff] %v96
  %113 = vst [vmem:[%s4 + $0x18] sm:$0xff] %v97
  %114 = vst [vmem:[%s4 + $0x20] sm:$0xff] %v98
  %115 = vst [vmem:[%s4 + $0x28] sm:$0xff] %v99
  %116 = vst [vmem:[%s4 + $0x30] sm:$0xff] %v100
  %117 = vst [vmem:[%s4 + $0x38] sm:$0xff] %v101
  %118 = vst [vmem:[%s4 + $0x40] sm:$0xff] %v102
  %119 = vst [vmem:[%s4 + $0x48] sm:$0xff] %v103
  %120 = vst [vmem:[%s4 + $0x50] sm:$0xff] %v104
  %121 = vst [vmem:[%s4 + $0x58] sm:$0xff] %v105
  %122 = vst [vmem:[%s4 + $0x60] sm:$0xff] %v106
  %123 = vst [vmem:[%s4 + $0x68] sm:$0xff] %v107
  %124 = vst [vmem:[%s4 + $0x70] sm:$0xff] %v108
  %125 = vst [vmem:[%s4 + $0x78] sm:$0xff] %v109
  // Predicated region
  $region18: #{_lambda_.43} parent=0 // pred_check
    _
  $region19: #{_lambda_.43} parent=0 // pred_check_branch
    %127 = sbr.rel (0) target = $region21
  $region20: #{_lambda_.43} parent=0 // pred_region
    _
  $region21: #{_lambda_.43} parent=0 // pred_fallthru
    _
  // Predicated region
  $region22: #{_lambda_.43} parent=0 // pred_check
    _
  $region23: #{_lambda_.43} parent=0 // pred_check_branch
    %129 = sbr.rel (0) target = $region25
  $region24: #{_lambda_.43} parent=0 // pred_region
    _
  $region25: #{_lambda_.43} parent=0 // pred_fallthru
    _

// kernel: _lambda_.44
$region0: #{_lambda_.44}
  #allocation0 [shape = 'u32[]', space=smem, size = 0x4, offset = 0x4, fixed_abs, tag = 'smem constant byte address 0x4 - core index']
  #allocation1 [shape = 'u32[72,128]{1,0:T(1,128)}', space=vmem, size = 0x9000, scoped, tag = 'internal scratch']
  %s0 = inlined_call_operand.vmem [shape: f32[2,5,5,128], index: 0, kind: input, shape index: {}]
  %s1 = inlined_call_operand.vmem [shape: f32[2,5,5,128], index: 1, kind: input, shape index: {}]
  %s2 = inlined_call_operand.vmem [shape: f32[2,5,5,128], index: 2, kind: input, shape index: {}]
  %s3 = inlined_call_operand.vmem [shape: f32[2,5,5,128], index: 3, kind: input, shape index: {}]
  %s4 = inlined_call_operand.vmem [shape: f32[2,4,4,128], index: 4, kind: output, shape index: {}]
  %s5 = sld [smem:[#allocation0]]
  $region49: #{_lambda_.44} parent=0
    _
  %s7 = ssub.s32 1, %s5
  %s8 = scalar_select 0, %s7, %s5
  loop: start=0, step=1, limit=4
  $region2: #{_lambda_.44} parent=0 // loop_pre_header
    _
  $region3: #{_lambda_.44} parent=0 // loop_header
    %s10 = sphi 0, %s14
    %p11 = scmp.ge.s32.totalorder %s10, 4
    %s20 = sphi 0, %s22
    %s23 = sphi 0, %s20
    %s24 = sphi 0, %s23
    %s40 = sphi 0, %s24
    %s46 = sphi 0, %s48
    %s49 = sphi 0, %s46
    %s50 = sphi 0, %s49
    %s66 = sphi 0, %s50
    %s72 = sphi 0, %s74
    %s75 = sphi 0, %s72
    %s76 = sphi 0, %s75
    %s92 = sphi 0, %s76
    %s98 = sphi 0, %s100
    %s101 = sphi 0, %s98
    %s102 = sphi 0, %s101
    %s118 = sphi 0, %s102
    %s124 = sphi 0, %s126
    %s127 = sphi 0, %s124
    %s128 = sphi 0, %s127
    %s144 = sphi 0, %s128
  $region4: #{_lambda_.44} parent=0 // loop_header_branch
    %13 = sbr.rel (%p11) target = $region8
  $region5: #{_lambda_.44} parent=0 // loop_body
    %s15 = ssub.s32 %s10, 1
    %s16 = ssub.s32 %s10, 2
    %s17 = sadd.s32 %s10, 1
    %s18 = ssub.s32 %s10, %s17
    %p19 = scmp.eq.s32.totalorder %s18, 0
    %s21 = sadd.s32 %s20, 1
    %s22 = scalar_select %p19, %s20, %s21
    %p25 = pneg %p19
    %p26 = scmp.eq.s32.totalorder %s10, 1
    %p27 = por %p25, %p26
    %p28 = scmp.ne.s32.totalorder %s20, %s23
    %p29 = scmp.eq.s32.totalorder %s10, 0
    %p30 = por %p28, %p29
    %p31 = scmp.ne.s32.totalorder %s20, %s23
    %p32 = scmp.eq.s32.totalorder %s15, 1
    %p33 = por %p31, %p32
    %p34 = scmp.ne.s32.totalorder %s23, %s24
    %p35 = scmp.eq.s32.totalorder %s15, 0
    %p36 = por %p34, %p35
    %p37 = scmp.ne.s32.totalorder %s23, %s24
    %p38 = scmp.eq.s32.totalorder %s16, 1
    %p39 = por %p37, %p38
    %p41 = scmp.ne.s32.totalorder %s24, %s40
    %p42 = scmp.eq.s32.totalorder %s16, 0
    %p43 = por %p41, %p42
    %s44 = ssub.s32 %s10, %s17
    %p45 = scmp.eq.s32.totalorder %s44, 0
    %s47 = sadd.s32 %s46, 1
    %s48 = scalar_select %p45, %s46, %s47
    %p51 = pneg %p45
    %p52 = scmp.eq.s32.totalorder %s10, 1
    %p53 = por %p51, %p52
    %p54 = scmp.ne.s32.totalorder %s46, %s49
    %p55 = scmp.eq.s32.totalorder %s10, 0
    %p56 = por %p54, %p55
    %p57 = scmp.ne.s32.totalorder %s46, %s49
    %p58 = scmp.eq.s32.totalorder %s15, 1
    %p59 = por %p57, %p58
    %p60 = scmp.ne.s32.totalorder %s49, %s50
    %p61 = scmp.eq.s32.totalorder %s15, 0
    %p62 = por %p60, %p61
    %p63 = scmp.ne.s32.totalorder %s49, %s50
    %p64 = scmp.eq.s32.totalorder %s16, 1
    %p65 = por %p63, %p64
    %p67 = scmp.ne.s32.totalorder %s50, %s66
    %p68 = scmp.eq.s32.totalorder %s16, 0
    %p69 = por %p67, %p68
    %s70 = ssub.s32 %s10, %s17
    %p71 = scmp.eq.s32.totalorder %s70, 0
    %s73 = sadd.s32 %s72, 1
    %s74 = scalar_select %p71, %s72, %s73
    %p77 = pneg %p71
    %p78 = scmp.eq.s32.totalorder %s10, 1
    %p79 = por %p77, %p78
    %p80 = scmp.ne.s32.totalorder %s72, %s75
    %p81 = scmp.eq.s32.totalorder %s10, 0
    %p82 = por %p80, %p81
    %p83 = scmp.ne.s32.totalorder %s72, %s75
    %p84 = scmp.eq.s32.totalorder %s15, 1
    %p85 = por %p83, %p84
    %p86 = scmp.ne.s32.totalorder %s75, %s76
    %p87 = scmp.eq.s32.totalorder %s15, 0
    %p88 = por %p86, %p87
    %p89 = scmp.ne.s32.totalorder %s75, %s76
    %p90 = scmp.eq.s32.totalorder %s16, 1
    %p91 = por %p89, %p90
    %p93 = scmp.ne.s32.totalorder %s76, %s92
    %p94 = scmp.eq.s32.totalorder %s16, 0
    %p95 = por %p93, %p94
    %s96 = ssub.s32 %s10, %s17
    %p97 = scmp.eq.s32.totalorder %s96, 0
    %s99 = sadd.s32 %s98, 1
    %s100 = scalar_select %p97, %s98, %s99
    %p103 = pneg %p97
    %p104 = scmp.eq.s32.totalorder %s10, 1
    %p105 = por %p103, %p104
    %p106 = scmp.ne.s32.totalorder %s98, %s101
    %p107 = scmp.eq.s32.totalorder %s10, 0
    %p108 = por %p106, %p107
    %p109 = scmp.ne.s32.totalorder %s98, %s101
    %p110 = scmp.eq.s32.totalorder %s15, 1
    %p111 = por %p109, %p110
    %p112 = scmp.ne.s32.totalorder %s101, %s102
    %p113 = scmp.eq.s32.totalorder %s15, 0
    %p114 = por %p112, %p113
    %p115 = scmp.ne.s32.totalorder %s101, %s102
    %p116 = scmp.eq.s32.totalorder %s16, 1
    %p117 = por %p115, %p116
    %p119 = scmp.ne.s32.totalorder %s102, %s118
    %p120 = scmp.eq.s32.totalorder %s16, 0
    %p121 = por %p119, %p120
    %s122 = ssub.s32 %s10, %s17
    %p123 = scmp.eq.s32.totalorder %s122, 0
    %s125 = sadd.s32 %s124, 1
    %s126 = scalar_select %p123, %s124, %s125
    %p129 = pneg %p123
    %p130 = scmp.eq.s32.totalorder %s10, 1
    %p131 = por %p129, %p130
    %p132 = scmp.ne.s32.totalorder %s124, %s127
    %p133 = scmp.eq.s32.totalorder %s10, 0
    %p134 = por %p132, %p133
    %p135 = scmp.ne.s32.totalorder %s124, %s127
    %p136 = scmp.eq.s32.totalorder %s15, 1
    %p137 = por %p135, %p136
    %p138 = scmp.ne.s32.totalorder %s127, %s128
    %p139 = scmp.eq.s32.totalorder %s15, 0
    %p140 = por %p138, %p139
    %p141 = scmp.ne.s32.totalorder %s127, %s128
    %p142 = scmp.eq.s32.totalorder %s16, 1
    %p143 = por %p141, %p142
    %p145 = scmp.ne.s32.totalorder %s128, %s144
    %p146 = scmp.eq.s32.totalorder %s16, 0
    %p147 = por %p145, %p146
    %p148 = scmp.le.s32.totalorder 1, %s10
    %p149 = scmp.lt.s32.totalorder %s10, 3
    %p150 = pnand %p148, %p149
    %p151 = pneg %p150
    // Predicated region
    $region9: #{_lambda_.44} parent=5 // pred_check
      _
    $region10: #{_lambda_.44} parent=5 // pred_check_branch
      %153 = sbr.rel (%p150) target = $region12
    $region11: #{_lambda_.44} parent=5 // pred_region
      %s154 = ssub.s32 %s10, 1
    $region12: #{_lambda_.44} parent=5 // pred_fallthru
      _
    %p155 = scmp.lt.s32.totalorder %s10, 2
    // Predicated region
    $region13: #{_lambda_.44} parent=5 // pred_check
      %p156 = pneg %p155
    $region14: #{_lambda_.44} parent=5 // pred_check_branch
      %158 = sbr.rel (%p156) target = $region16
    $region15: #{_lambda_.44} parent=5 // pred_region
      // Predicated region
      $region17: #{_lambda_.44} parent=15 // pred_check
        %p159 = pneg %p30
      $region18: #{_lambda_.44} parent=15 // pred_check_branch
        %161 = sbr.rel (%p159) target = $region20
      $region19: #{_lambda_.44} parent=15 // pred_region
        %p162 = scmp.lt.s32.totalorder %s10, 1
        %s163 = scalar_select %p162, %s10, 1
        %s164 = smul.addr %s163, 5
        %s165 = smul.addr %s164, 8
        %s166 = scalar_lea.vmem %s0, %s165
      $region20: #{_lambda_.44} parent=15 // pred_fallthru
        _
      // Predicated region
      $region21: #{_lambda_.44} parent=15 // pred_check
        %p167 = pneg %p56
      $region22: #{_lambda_.44} parent=15 // pred_check_branch
        %169 = sbr.rel (%p167) target = $region24
      $region23: #{_lambda_.44} parent=15 // pred_region
        %p170 = scmp.lt.s32.totalorder %s10, 1
        %s171 = scalar_select %p170, %s10, 1
        %s172 = smul.addr %s171, 5
        %s173 = smul.addr %s172, 8
        %s174 = scalar_lea.vmem %s1, %s173
      $region24: #{_lambda_.44} parent=15 // pred_fallthru
        _
      // Predicated region
      $region25: #{_lambda_.44} parent=15 // pred_check
        %p175 = pneg %p82
      $region26: #{_lambda_.44} parent=15 // pred_check_branch
        %177 = sbr.rel (%p175) target = $region28
      $region27: #{_lambda_.44} parent=15 // pred_region
        %p178 = scmp.lt.s32.totalorder %s10, 1
        %s179 = scalar_select %p178, %s10, 1
        %s180 = smul.addr %s179, 5
        %s181 = smul.addr %s180, 8
        %s182 = scalar_lea.vmem %s2, %s181
      $region28: #{_lambda_.44} parent=15 // pred_fallthru
        _
      // Predicated region
      $region29: #{_lambda_.44} parent=15 // pred_check
        %p183 = pneg %p108
      $region30: #{_lambda_.44} parent=15 // pred_check_branch
        %185 = sbr.rel (%p183) target = $region32
      $region31: #{_lambda_.44} parent=15 // pred_region
        %p186 = scmp.lt.s32.totalorder %s10, 1
        %s187 = scalar_select %p186, %s10, 1
        %s188 = smul.addr %s187, 5
        %s189 = smul.addr %s188, 8
        %s190 = scalar_lea.vmem %s3, %s189
      $region32: #{_lambda_.44} parent=15 // pred_fallthru
        _
    $region16: #{_lambda_.44} parent=5 // pred_fallthru
      _
    %p191 = scmp.le.s32.totalorder 1, %s10
    %p192 = scmp.lt.s32.totalorder %s10, 3
    %p193 = pnand %p191, %p192
    %p194 = pneg %p193
    // Predicated region
    $region33: #{_lambda_.44} parent=5 // pred_check
      _
    $region34: #{_lambda_.44} parent=5 // pred_check_branch
      %196 = sbr.rel (%p193) target = $region36
    $region35: #{_lambda_.44} parent=5 // pred_region
      %s197 = ssub.s32 %s10, 1
      %p198 = scmp.lt.s32.totalorder %s15, 1
      %s199 = scalar_select %p198, %s15, 1
      %s200 = smul.addr %s199, 5
      %s201 = smul.addr %s200, 8
      %s202 = scalar_lea.vmem %s0, %s201
      %p203 = pneg %p36
      %p204 = pneg %p33
      %p205 = scmp.lt.s32.totalorder %s15, 1
      %s206 = scalar_select %p205, %s15, 1
      %s207 = smul.addr %s206, 5
      %s208 = smul.addr %s207, 8
      %s209 = scalar_lea.vmem %s1, %s208
      %p210 = pneg %p62
      %p211 = pneg %p59
      %p212 = scmp.lt.s32.totalorder %s15, 1
      %s213 = scalar_select %p212, %s15, 1
      %s214 = smul.addr %s213, 5
      %s215 = smul.addr %s214, 8
      %s216 = scalar_lea.vmem %s2, %s215
      %p217 = pneg %p88
      %p218 = pneg %p85
      %p219 = scmp.lt.s32.totalorder %s15, 1
      %s220 = scalar_select %p219, %s15, 1
      %s221 = smul.addr %s220, 5
      %s222 = smul.addr %s221, 8
      %s223 = scalar_lea.vmem %s3, %s222
      %p224 = pneg %p114
      %p225 = pneg %p111
      %p226 = pneg %p140
      %p227 = pneg %p137
      %p228 = scmp.lt.s32.totalorder %s15, 1
      %s229 = scalar_select %p228, %s15, 1
      %s230 = smul.addr %s229, 4
      %s231 = smul.addr %s230, 4
      %s232 = scalar_lea.vmem %s4, %s231
      %p233 = scmp.lt.s32.totalorder %s15, 1
      %s234 = scalar_select %p233, %s15, 1
      %s235 = smul.addr %s234, 5
      %s236 = smul.addr %s235, 8
      %s237 = scalar_lea.vmem %s0, %s236
      %p238 = scmp.lt.s32.totalorder %s15, 1
      %s239 = scalar_select %p238, %s15, 1
      %s240 = smul.addr %s239, 5
      %s241 = smul.addr %s240, 8
      %s242 = scalar_lea.vmem %s1, %s241
      %p243 = scmp.lt.s32.totalorder %s15, 1
      %s244 = scalar_select %p243, %s15, 1
      %s245 = smul.addr %s244, 5
      %s246 = smul.addr %s245, 8
      %s247 = scalar_lea.vmem %s2, %s246
      %p248 = scmp.lt.s32.totalorder %s15, 1
      %s249 = scalar_select %p248, %s15, 1
      %s250 = smul.addr %s249, 5
      %s251 = smul.addr %s250, 8
      %s252 = scalar_lea.vmem %s3, %s251
      %p253 = scmp.lt.s32.totalorder %s15, 1
      %s254 = scalar_select %p253, %s15, 1
      %s255 = smul.addr %s254, 4
      %s256 = smul.addr %s255, 4
      %s257 = scalar_lea.vmem %s4, %s256
      %v258 = vld [vmem:[%s237] sm:$0xf]
      %v259 = vld [vmem:[%s237 + $0x8] sm:$0xf]
      %v260 = vld [vmem:[%s237 + $0x10] sm:$0xf]
      %v261 = vld [vmem:[%s237 + $0x18] sm:$0xf]
      %v262 = vld [vmem:[%s237 + $0x1] sm:$0xf]
      %v263 = vld [vmem:[%s237 + $0x9] sm:$0xf]
      %v264 = vld [vmem:[%s237 + $0x11] sm:$0xf]
      %v265 = vld [vmem:[%s237 + $0x19] sm:$0xf]
      %v266 = vmax.f32 %v258, %v262
      %v267 = vmax.f32 %v259, %v263
      %v268 = vmax.f32 %v260, %v264
      %v269 = vmax.f32 %v261, %v265
      %s270 = scalar_lea.vmem %s237, 8
      %v271 = vld [vmem:[%s270] sm:$0xf]
      %v272 = vld [vmem:[%s270 + $0x8] sm:$0xf]
      %v273 = vld [vmem:[%s270 + $0x10] sm:$0xf]
      %v274 = vld [vmem:[%s270 + $0x18] sm:$0xf]
      %v275 = vmax.f32 %v266, %v271
      %v276 = vmax.f32 %v267, %v272
      %v277 = vmax.f32 %v268, %v273
      %v278 = vmax.f32 %v269, %v274
      %v279 = vld [vmem:[%s270 + $0x1] sm:$0xf]
      %v280 = vld [vmem:[%s270 + $0x9] sm:$0xf]
      %v281 = vld [vmem:[%s270 + $0x11] sm:$0xf]
      %v282 = vld [vmem:[%s270 + $0x19] sm:$0xf]
      %v283 = vmax.f32 %v275, %v279
      %v284 = vmax.f32 %v276, %v280
      %v285 = vmax.f32 %v277, %v281
      %v286 = vmax.f32 %v278, %v282
      %v287 = vld [vmem:[%s242] sm:$0xf]
      %v288 = vld [vmem:[%s242 + $0x8] sm:$0xf]
      %v289 = vld [vmem:[%s242 + $0x10] sm:$0xf]
      %v290 = vld [vmem:[%s242 + $0x18] sm:$0xf]
      %v291 = vmax.f32 %v283, %v287
      %v292 = vmax.f32 %v284, %v288
      %v293 = vmax.f32 %v285, %v289
      %v294 = vmax.f32 %v286, %v290
      %s295 = scalar_lea.vmem %s242, 8
      %v296 = vld [vmem:[%s295] sm:$0xf]
      %v297 = vld [vmem:[%s295 + $0x8] sm:$0xf]
      %v298 = vld [vmem:[%s295 + $0x10] sm:$0xf]
      %v299 = vld [vmem:[%s295 + $0x18] sm:$0xf]
      %v300 = vmax.f32 %v291, %v296
      %v301 = vmax.f32 %v292, %v297
      %v302 = vmax.f32 %v293, %v298
      %v303 = vmax.f32 %v294, %v299
      %v304 = vld [vmem:[%s247] sm:$0xf]
      %v305 = vld [vmem:[%s247 + $0x8] sm:$0xf]
      %v306 = vld [vmem:[%s247 + $0x10] sm:$0xf]
      %v307 = vld [vmem:[%s247 + $0x18] sm:$0xf]
      %v308 = vmax.f32 %v300, %v304
      %v309 = vmax.f32 %v301, %v305
      %v310 = vmax.f32 %v302, %v306
      %v311 = vmax.f32 %v303, %v307
      %v312 = vld [vmem:[%s247 + $0x1] sm:$0xf]
      %v313 = vld [vmem:[%s247 + $0x9] sm:$0xf]
      %v314 = vld [vmem:[%s247 + $0x11] sm:$0xf]
      %v315 = vld [vmem:[%s247 + $0x19] sm:$0xf]
      %v316 = vmax.f32 %v308, %v312
      %v317 = vmax.f32 %v309, %v313
      %v318 = vmax.f32 %v310, %v314
      %v319 = vmax.f32 %v311, %v315
      %v320 = vld [vmem:[%s252] sm:$0xf]
      %v321 = vld [vmem:[%s252 + $0x8] sm:$0xf]
      %v322 = vld [vmem:[%s252 + $0x10] sm:$0xf]
      %v323 = vld [vmem:[%s252 + $0x18] sm:$0xf]
      %v324 = vmax.f32 %v316, %v320
      %v325 = vmax.f32 %v317, %v321
      %v326 = vmax.f32 %v318, %v322
      %v327 = vmax.f32 %v319, %v323
      %328 = vst [vmem:[%s257] sm:$0xf] %v324
      %329 = vst [vmem:[%s257 + $0x4] sm:$0xf] %v325
      %330 = vst [vmem:[%s257 + $0x8] sm:$0xf] %v326
      %331 = vst [vmem:[%s257 + $0xc] sm:$0xf] %v327
      %p332 = scmp.lt.s32.totalorder %s15, 1
      %s333 = scalar_select %p332, %s15, 1
      %s334 = smul.addr %s333, 4
      %s335 = smul.addr %s334, 4
      %s336 = scalar_lea.vmem %s4, %s335
      // Predicated region
      $region37: #{_lambda_.44} parent=35 // pred_check
        %p337 = pneg %p137
      $region38: #{_lambda_.44} parent=35 // pred_check_branch
        %339 = sbr.rel (%p337) target = $region40
      $region39: #{_lambda_.44} parent=35 // pred_region
        _
      $region40: #{_lambda_.44} parent=35 // pred_fallthru
        _
    $region36: #{_lambda_.44} parent=5 // pred_fallthru
      _
    %p340 = scmp.le.s32.totalorder 2, %s10
    // Predicated region
    $region41: #{_lambda_.44} parent=5 // pred_check
      %p341 = pneg %p340
    $region42: #{_lambda_.44} parent=5 // pred_check_branch
      %343 = sbr.rel (%p341) target = $region44
    $region43: #{_lambda_.44} parent=5 // pred_region
      %s344 = ssub.s32 %s10, 2
      // Predicated region
      $region45: #{_lambda_.44} parent=43 // pred_check
        %p345 = pneg %p143
      $region46: #{_lambda_.44} parent=43 // pred_check_branch
        %347 = sbr.rel (%p345) target = $region48
      $region47: #{_lambda_.44} parent=43 // pred_region
        %p348 = scmp.lt.s32.totalorder %s16, 1
        %s349 = scalar_select %p348, %s16, 1
        %s350 = smul.addr %s349, 4
        %s351 = smul.addr %s350, 4
        %s352 = scalar_lea.vmem %s4, %s351
      $region48: #{_lambda_.44} parent=43 // pred_fallthru
        _
    $region44: #{_lambda_.44} parent=5 // pred_fallthru
      _
  $region6: #{_lambda_.44} parent=0 // loop_footer
    %s14 = sadd.s32 1, %s10
  $region7: #{_lambda_.44} parent=0 // loop_footer_branch
    %9 = sbr.rel target = $region3
  $region8: #{_lambda_.44} parent=0 // loop_exit
    _

// kernel: _lambda_.42
$region0: #{_lambda_.42}
  #allocation0 [shape = 'u32[]', space=smem, size = 0x4, offset = 0x4, fixed_abs, tag = 'smem constant byte address 0x4 - core index']
  #allocation1 [shape = 'u32[72,128]{1,0:T(1,128)}', space=vmem, size = 0x9000, scoped, tag = 'internal scratch']
  #allocation2 [shape = 'f32[128,128]{1,0:T(8,128)}', space=vmem, size = 0x10000, scoped, tag = 'scratch operand']
  %s0 = inlined_call_operand.vmem [shape: bf16[128,6272], index: 0, kind: input, shape index: {}]
  %s1 = inlined_call_operand.vmem [shape: bf16[6272,128], index: 1, kind: input, shape index: {}]
  %s2 = inlined_call_operand.vmem [shape: f32[128,128], index: 2, kind: output, shape index: {0}]
  %s3 = inlined_call_operand.vmem [shape: f32[1,2,128], index: 3, kind: output, shape index: {1}]
  %4 = xla_tuple %s2, %s3
  %s5 = sld [smem:[#allocation0]]
  $region83: #{_lambda_.42} parent=0
    _
  %s7 = ssub.s32 1, %s5
  %s8 = scalar_select 0, %s7, %s5
  $region1: #{_lambda_.42} parent=0
    #allocation3 [shape = 'u8[458752]{0}', space=vmem, size = 0x70000, scoped, tag = 'input window, operand 0']
    loop: start=0, step=1, limit=9
    $region2: #{_lambda_.42} parent=1 // loop_pre_header
      _
    $region3: #{_lambda_.42} parent=1 // loop_header
      %s10 = sphi 0, %s14
      %p11 = scmp.ge.s32.totalorder %s10, 9
      %s17 = sphi 0, %s29
      %s18 = sphi 0, %s25
      %s19 = sphi 0, %s17
      %s20 = sphi 0, %s18
      %s21 = sphi 0, %s19
      %s22 = sphi 0, %s20
      %s34 = sphi 0, %s36
      %s37 = sphi 0, %s34
      %s38 = sphi 0, %s37
      %s54 = sphi 0, %s38
      %s60 = sphi 0, %s62
      %s63 = sphi 0, %s60
      %s64 = sphi 0, %s63
      %s80 = sphi 0, %s64
      %s86 = sphi 0, %s88
      %s89 = sphi 0, %s86
      %s90 = sphi 0, %s89
      %s106 = sphi 0, %s90
      %s112 = sphi 0, %s114
      %s115 = sphi 0, %s112
      %s116 = sphi 0, %s115
      %s132 = sphi 0, %s116
    $region4: #{_lambda_.42} parent=1 // loop_header_branch
      %13 = sbr.rel (%p11) target = $region8
    $region5: #{_lambda_.42} parent=1 // loop_body
      %s15 = ssub.s32 %s10, 1
      %s16 = ssub.s32 %s10, 2
      %s23 = sadd.s32 1, %s18
      %p24 = scmp.ge.s32.totalorder %s23, 7
      %s25 = scalar_select %p24, 0, %s23
      %s26 = sadd.s32 1, %s17
      %s27 = scalar_select %p24, %s26, %s17
      %p28 = scmp.ge.s32.totalorder %s27, 1
      %s29 = scalar_select %p28, 0, %s27
      %s30 = ssub.s32 %s17, %s29
      %s31 = ssub.s32 %s18, %s25
      %s32 = sor.u32 %s30, %s31
      %p33 = scmp.eq.s32.totalorder %s32, 0
      %s35 = sadd.s32 %s34, 1
      %s36 = scalar_select %p33, %s34, %s35
      %p39 = pneg %p33
      %p40 = scmp.eq.s32.totalorder %s10, 6
      %p41 = por %p39, %p40
      %p42 = scmp.ne.s32.totalorder %s34, %s37
      %p43 = scmp.eq.s32.totalorder %s10, 0
      %p44 = por %p42, %p43
      %p45 = scmp.ne.s32.totalorder %s34, %s37
      %p46 = scmp.eq.s32.totalorder %s15, 6
      %p47 = por %p45, %p46
      %p48 = scmp.ne.s32.totalorder %s37, %s38
      %p49 = scmp.eq.s32.totalorder %s15, 0
      %p50 = por %p48, %p49
      %p51 = scmp.ne.s32.totalorder %s37, %s38
      %p52 = scmp.eq.s32.totalorder %s16, 6
      %p53 = por %p51, %p52
      %p55 = scmp.ne.s32.totalorder %s38, %s54
      %p56 = scmp.eq.s32.totalorder %s16, 0
      %p57 = por %p55, %p56
      %s58 = ssub.s32 %s18, %s25
      %p59 = scmp.eq.s32.totalorder %s58, 0
      %s61 = sadd.s32 %s60, 1
      %s62 = scalar_select %p59, %s60, %s61
      %p65 = pneg %p59
      %p66 = scmp.eq.s32.totalorder %s10, 6
      %p67 = por %p65, %p66
      %p68 = scmp.ne.s32.totalorder %s60, %s63
      %p69 = scmp.eq.s32.totalorder %s10, 0
      %p70 = por %p68, %p69
      %p71 = scmp.ne.s32.totalorder %s60, %s63
      %p72 = scmp.eq.s32.totalorder %s15, 6
      %p73 = por %p71, %p72
      %p74 = scmp.ne.s32.totalorder %s63, %s64
      %p75 = scmp.eq.s32.totalorder %s15, 0
      %p76 = por %p74, %p75
      %p77 = scmp.ne.s32.totalorder %s63, %s64
      %p78 = scmp.eq.s32.totalorder %s16, 6
      %p79 = por %p77, %p78
      %p81 = scmp.ne.s32.totalorder %s64, %s80
      %p82 = scmp.eq.s32.totalorder %s16, 0
      %p83 = por %p81, %p82
      %s84 = ssub.s32 %s17, %s29
      %p85 = scmp.eq.s32.totalorder %s84, 0
      %s87 = sadd.s32 %s86, 1
      %s88 = scalar_select %p85, %s86, %s87
      %p91 = pneg %p85
      %p92 = scmp.eq.s32.totalorder %s10, 6
      %p93 = por %p91, %p92
      %p94 = scmp.ne.s32.totalorder %s86, %s89
      %p95 = scmp.eq.s32.totalorder %s10, 0
      %p96 = por %p94, %p95
      %p97 = scmp.ne.s32.totalorder %s86, %s89
      %p98 = scmp.eq.s32.totalorder %s15, 6
      %p99 = por %p97, %p98
      %p100 = scmp.ne.s32.totalorder %s89, %s90
      %p101 = scmp.eq.s32.totalorder %s15, 0
      %p102 = por %p100, %p101
      %p103 = scmp.ne.s32.totalorder %s89, %s90
      %p104 = scmp.eq.s32.totalorder %s16, 6
      %p105 = por %p103, %p104
      %p107 = scmp.ne.s32.totalorder %s90, %s106
      %p108 = scmp.eq.s32.totalorder %s16, 0
      %p109 = por %p107, %p108
      %s110 = ssub.s32 %s17, %s29
      %p111 = scmp.eq.s32.totalorder %s110, 0
      %s113 = sadd.s32 %s112, 1
      %s114 = scalar_select %p111, %s112, %s113
      %p117 = pneg %p111
      %p118 = scmp.eq.s32.totalorder %s10, 6
      %p119 = por %p117, %p118
      %p120 = scmp.ne.s32.totalorder %s112, %s115
      %p121 = scmp.eq.s32.totalorder %s10, 0
      %p122 = por %p120, %p121
      %p123 = scmp.ne.s32.totalorder %s112, %s115
      %p124 = scmp.eq.s32.totalorder %s15, 6
      %p125 = por %p123, %p124
      %p126 = scmp.ne.s32.totalorder %s115, %s116
      %p127 = scmp.eq.s32.totalorder %s15, 0
      %p128 = por %p126, %p127
      %p129 = scmp.ne.s32.totalorder %s115, %s116
      %p130 = scmp.eq.s32.totalorder %s16, 6
      %p131 = por %p129, %p130
      %p133 = scmp.ne.s32.totalorder %s116, %s132
      %p134 = scmp.eq.s32.totalorder %s16, 0
      %p135 = por %p133, %p134
      %p136 = scmp.le.s32.totalorder 1, %s10
      %p137 = scmp.lt.s32.totalorder %s10, 8
      %p138 = pnand %p136, %p137
      %p139 = pneg %p138
      // Predicated region
      $region9: #{_lambda_.42} parent=5 // pred_check
        _
      $region10: #{_lambda_.42} parent=5 // pred_check_branch
        %141 = sbr.rel (%p138) target = $region12
      $region11: #{_lambda_.42} parent=5 // pred_region
        %s142 = ssub.s32 %s10, 1
      $region12: #{_lambda_.42} parent=5 // pred_fallthru
        _
      %p143 = scmp.lt.s32.totalorder %s10, 7
      // Predicated region
      $region13: #{_lambda_.42} parent=5 // pred_check
        %p144 = pneg %p143
      $region14: #{_lambda_.42} parent=5 // pred_check_branch
        %146 = sbr.rel (%p144) target = $region16
      $region15: #{_lambda_.42} parent=5 // pred_region
        // Predicated region
        $region17: #{_lambda_.42} parent=15 // pred_check
          %p147 = pneg %p44
        $region18: #{_lambda_.42} parent=15 // pred_check_branch
          %149 = sbr.rel (%p147) target = $region20
        $region19: #{_lambda_.42} parent=15 // pred_region
          %s150 = sand.u32 %s34, 1
          %s151 = sand.u32 %s34, 1
          %s152 = smul.addr %s151, 448
          %s153 = scalar_lea.vmem [#allocation3], %s152
          %s154 = smul.u32 16, %s17
          %s155 = smul.u32 7, %s18
          %s156 = smul.addr %s154, 49
          %s157 = sadd.s32 %s155, %s156
          %s158 = smul.addr %s157, 4
          %s159 = scalar_lea.vmem %s0, %s158
          // Predicated region
          $region21: #{_lambda_.42} parent=19 // pred_check
            _
          $region22: #{_lambda_.42} parent=19 // pred_check_branch
            %161 = sbr.rel (0) target = $region24
          $region23: #{_lambda_.42} parent=19 // pred_region
            // Predicated region
            $region25: #{_lambda_.42} parent=23 // pred_check
              _
            $region26: #{_lambda_.42} parent=23 // pred_check_branch
              %163 = sbr.rel (0) target = $region28
            $region27: #{_lambda_.42} parent=23 // pred_region
              %s164 = scalar_lea.vmem %s159, 24
              %s165 = scalar_lea.vmem %s153, 24 [#allocation3]
              loop: start=0, step=1, limit=1
              $region29: #{_lambda_.42} parent=27 // loop_pre_header
                _
              $region30: #{_lambda_.42} parent=27 // loop_header
                %s167 = sphi 0, %s171
                %p168 = scmp.ge.s32.totalorder %s167, 1
                %s172 = sphi %s159, %s159
                %s173 = sphi %s153, %s153
              $region31: #{_lambda_.42} parent=27 // loop_header_branch
                %170 = sbr.rel (%p168) target = $region35
              $region32: #{_lambda_.42} parent=27 // loop_body
                %v174 = vld [vmem:[%s172] sm:$0xff]
                %175 = vst [vmem:[%s173] sm:$0xff] %v174
                %v176 = vld [vmem:[%s172 + $0x8] sm:$0xff]
                %177 = vst [vmem:[%s173 + $0x8] sm:$0xff] %v176
                %v178 = vld [vmem:[%s172 + $0x10] sm:$0xff]
                %179 = vst [vmem:[%s173 + $0x10] sm:$0xff] %v178
                %v180 = vld [vmem:[%s172 + $0xc4] sm:$0xff]
                %181 = vst [vmem:[%s173 + $0x1c] sm:$0xff] %v180
                %v182 = vld [vmem:[%s172 + $0xcc] sm:$0xff]
                %183 = vst [vmem:[%s173 + $0x24] sm:$0xff] %v182
                %v184 = vld [vmem:[%s172 + $0xd4] sm:$0xff]
                %185 = vst [vmem:[%s173 + $0x2c] sm:$0xff] %v184
                %v186 = vld [vmem:[%s172 + $0x188] sm:$0xff]
                %187 = vst [vmem:[%s173 + $0x38] sm:$0xff] %v186
                %v188 = vld [vmem:[%s172 + $0x190] sm:$0xff]
                %189 = vst [vmem:[%s173 + $0x40] sm:$0xff] %v188
                %v190 = vld [vmem:[%s172 + $0x198] sm:$0xff]
                %191 = vst [vmem:[%s173 + $0x48] sm:$0xff] %v190
                %v192 = vld [vmem:[%s172 + $0x24c] sm:$0xff]
                %193 = vst [vmem:[%s173 + $0x54] sm:$0xff] %v192
                %v194 = vld [vmem:[%s172 + $0x254] sm:$0xff]
                %195 = vst [vmem:[%s173 + $0x5c] sm:$0xff] %v194
                %v196 = vld [vmem:[%s172 + $0x25c] sm:$0xff]
                %197 = vst [vmem:[%s173 + $0x64] sm:$0xff] %v196
                %v198 = vld [vmem:[%s172 + $0x310] sm:$0xff]
                %199 = vst [vmem:[%s173 + $0x70] sm:$0xff] %v198
                %v200 = vld [vmem:[%s172 + $0x318] sm:$0xff]
                %201 = vst [vmem:[%s173 + $0x78] sm:$0xff] %v200
                %v202 = vld [vmem:[%s172 + $0x320] sm:$0xff]
                %203 = vst [vmem:[%s173 + $0x80] sm:$0xff] %v202
                %v204 = vld [vmem:[%s172 + $0x3d4] sm:$0xff]
                %205 = vst [vmem:[%s173 + $0x8c] sm:$0xff] %v204
                %v206 = vld [vmem:[%s172 + $0x3dc] sm:$0xff]
                %207 = vst [vmem:[%s173 + $0x94] sm:$0xff] %v206
                %v208 = vld [vmem:[%s172 + $0x3e4] sm:$0xff]
                %209 = vst [vmem:[%s173 + $0x9c] sm:$0xff] %v208
                %v210 = vld [vmem:[%s172 + $0x498] sm:$0xff]
                %211 = vst [vmem:[%s173 + $0xa8] sm:$0xff] %v210
                %v212 = vld [vmem:[%s172 + $0x4a0] sm:$0xff]
                %213 = vst [vmem:[%s173 + $0xb0] sm:$0xff] %v212
                %v214 = vld [vmem:[%s172 + $0x4a8] sm:$0xff]
                %215 = vst [vmem:[%s173 + $0xb8] sm:$0xff] %v214
                %v216 = vld [vmem:[%s172 + $0x55c] sm:$0xff]
                %217 = vst [vmem:[%s173 + $0xc4] sm:$0xff] %v216
                %v218 = vld [vmem:[%s172 + $0x564] sm:$0xff]
                %219 = vst [vmem:[%s173 + $0xcc] sm:$0xff] %v218
                %v220 = vld [vmem:[%s172 + $0x56c] sm:$0xff]
                %221 = vst [vmem:[%s173 + $0xd4] sm:$0xff] %v220
                %v222 = vld [vmem:[%s172 + $0x620] sm:$0xff]
                %223 = vst [vmem:[%s173 + $0xe0] sm:$0xff] %v222
                %v224 = vld [vmem:[%s172 + $0x628] sm:$0xff]
                %225 = vst [vmem:[%s173 + $0xe8] sm:$0xff] %v224
                %v226 = vld [vmem:[%s172 + $0x630] sm:$0xff]
                %227 = vst [vmem:[%s173 + $0xf0] sm:$0xff] %v226
                %v228 = vld [vmem:[%s172 + $0x6e4] sm:$0xff]
                %229 = vst [vmem:[%s173 + $0xfc] sm:$0xff] %v228
                %v230 = vld [vmem:[%s172 + $0x6ec] sm:$0xff]
                %231 = vst [vmem:[%s173 + $0x104] sm:$0xff] %v230
                %v232 = vld [vmem:[%s172 + $0x6f4] sm:$0xff]
                %233 = vst [vmem:[%s173 + $0x10c] sm:$0xff] %v232
                %v234 = vld [vmem:[%s172 + $0x7a8] sm:$0xff]
                %235 = vst [vmem:[%s173 + $0x118] sm:$0xff] %v234
                %v236 = vld [vmem:[%s172 + $0x7b0] sm:$0xff]
                %237 = vst [vmem:[%s173 + $0x120] sm:$0xff] %v236
                %v238 = vld [vmem:[%s172 + $0x7b8] sm:$0xff]
                %239 = vst [vmem:[%s173 + $0x128] sm:$0xff] %v238
                %v240 = vld [vmem:[%s172 + $0x86c] sm:$0xff]
                %241 = vst [vmem:[%s173 + $0x134] sm:$0xff] %v240
                %v242 = vld [vmem:[%s172 + $0x874] sm:$0xff]
                %243 = vst [vmem:[%s173 + $0x13c] sm:$0xff] %v242
                %v244 = vld [vmem:[%s172 + $0x87c] sm:$0xff]
                %245 = vst [vmem:[%s173 + $0x144] sm:$0xff] %v244
                %v246 = vld [vmem:[%s172 + $0x930] sm:$0xff]
                %247 = vst [vmem:[%s173 + $0x150] sm:$0xff] %v246
                %v248 = vld [vmem:[%s172 + $0x938] sm:$0xff]
                %249 = vst [vmem:[%s173 + $0x158] sm:$0xff] %v248
                %v250 = vld [vmem:[%s172 + $0x940] sm:$0xff]
                %251 = vst [vmem:[%s173 + $0x160] sm:$0xff] %v250
                %v252 = vld [vmem:[%s172 + $0x9f4] sm:$0xff]
                %253 = vst [vmem:[%s173 + $0x16c] sm:$0xff] %v252
                %v254 = vld [vmem:[%s172 + $0x9fc] sm:$0xff]
                %255 = vst [vmem:[%s173 + $0x174] sm:$0xff] %v254
                %v256 = vld [vmem:[%s172 + $0xa04] sm:$0xff]
                %257 = vst [vmem:[%s173 + $0x17c] sm:$0xff] %v256
                %v258 = vld [vmem:[%s172 + $0xab8] sm:$0xff]
                %259 = vst [vmem:[%s173 + $0x188] sm:$0xff] %v258
                %v260 = vld [vmem:[%s172 + $0xac0] sm:$0xff]
                %261 = vst [vmem:[%s173 + $0x190] sm:$0xff] %v260
                %v262 = vld [vmem:[%s172 + $0xac8] sm:$0xff]
                %263 = vst [vmem:[%s173 + $0x198] sm:$0xff] %v262
                %v264 = vld [vmem:[%s172 + $0xb7c] sm:$0xff]
                %265 = vst [vmem:[%s173 + $0x1a4] sm:$0xff] %v264
                %v266 = vld [vmem:[%s172 + $0xb84] sm:$0xff]
                %267 = vst [vmem:[%s173 + $0x1ac] sm:$0xff] %v266
                %v268 = vld [vmem:[%s172 + $0xb8c] sm:$0xff]
                %269 = vst [vmem:[%s173 + $0x1b4] sm:$0xff] %v268
              $region33: #{_lambda_.42} parent=27 // loop_footer
                %s171 = sadd.s32 1, %s167
              $region34: #{_lambda_.42} parent=27 // loop_footer_branch
                %166 = sbr.rel target = $region30
              $region35: #{_lambda_.42} parent=27 // loop_exit
                _
              %s271 = ssub.s32 16, 1
              loop: start=0, step=1, limit=1
              $region36: #{_lambda_.42} parent=27 // loop_pre_header
                _
              $region37: #{_lambda_.42} parent=27 // loop_header
                %s273 = sphi 0, %s277
                %p274 = scmp.ge.s32.totalorder %s273, 1
                %s278 = sphi %s164, %s164
                %s279 = sphi %s165, %s165
              $region38: #{_lambda_.42} parent=27 // loop_header_branch
                %276 = sbr.rel (%p274) target = $region42
              $region39: #{_lambda_.42} parent=27 // loop_body
                %v280 = vld [vmem:[%s278] sm:%s271]
                %281 = vst [vmem:[%s279] sm:%s271] %v280
                %v282 = vld [vmem:[%s278 + $0xc4] sm:%s271]
                %283 = vst [vmem:[%s279 + $0x1c] sm:%s271] %v282
                %v284 = vld [vmem:[%s278 + $0x188] sm:%s271]
                %285 = vst [vmem:[%s279 + $0x38] sm:%s271] %v284
                %v286 = vld [vmem:[%s278 + $0x24c] sm:%s271]
                %287 = vst [vmem:[%s279 + $0x54] sm:%s271] %v286
                %v288 = vld [vmem:[%s278 + $0x310] sm:%s271]
                %289 = vst [vmem:[%s279 + $0x70] sm:%s271] %v288
                %v290 = vld [vmem:[%s278 + $0x3d4] sm:%s271]
                %291 = vst [vmem:[%s279 + $0x8c] sm:%s271] %v290
                %v292 = vld [vmem:[%s278 + $0x498] sm:%s271]
                %293 = vst [vmem:[%s279 + $0xa8] sm:%s271] %v292
                %v294 = vld [vmem:[%s278 + $0x55c] sm:%s271]
                %295 = vst [vmem:[%s279 + $0xc4] sm:%s271] %v294
                %v296 = vld [vmem:[%s278 + $0x620] sm:%s271]
                %297 = vst [vmem:[%s279 + $0xe0] sm:%s271] %v296
                %v298 = vld [vmem:[%s278 + $0x6e4] sm:%s271]
                %299 = vst [vmem:[%s279 + $0xfc] sm:%s271] %v298
                %v300 = vld [vmem:[%s278 + $0x7a8] sm:%s271]
                %301 = vst [vmem:[%s279 + $0x118] sm:%s271] %v300
                %v302 = vld [vmem:[%s278 + $0x86c] sm:%s271]
                %303 = vst [vmem:[%s279 + $0x134] sm:%s271] %v302
                %v304 = vld [vmem:[%s278 + $0x930] sm:%s271]
                %305 = vst [vmem:[%s279 + $0x150] sm:%s271] %v304
                %v306 = vld [vmem:[%s278 + $0x9f4] sm:%s271]
                %307 = vst [vmem:[%s279 + $0x16c] sm:%s271] %v306
                %v308 = vld [vmem:[%s278 + $0xab8] sm:%s271]
                %309 = vst [vmem:[%s279 + $0x188] sm:%s271] %v308
                %v310 = vld [vmem:[%s278 + $0xb7c] sm:%s271]
                %311 = vst [vmem:[%s279 + $0x1a4] sm:%s271] %v310
              $region40: #{_lambda_.42} parent=27 // loop_footer
                %s277 = sadd.s32 1, %s273
              $region41: #{_lambda_.42} parent=27 // loop_footer_branch
                %272 = sbr.rel target = $region37
              $region42: #{_lambda_.42} parent=27 // loop_exit
                _
            $region28: #{_lambda_.42} parent=23 // pred_fallthru
              _
          $region24: #{_lambda_.42} parent=19 // pred_fallthru
            _
          %312 = vnop
        $region20: #{_lambda_.42} parent=15 // pred_fallthru
          _
        // Predicated region
        $region43: #{_lambda_.42} parent=15 // pred_check
          %p313 = pneg %p70
        $region44: #{_lambda_.42} parent=15 // pred_check_branch
          %315 = sbr.rel (%p313) target = $region46
        $region45: #{_lambda_.42} parent=15 // pred_region
          %s316 = smul.u32 112, %s18
          %p317 = scmp.lt.s32.totalorder %s316, 783
          %s318 = scalar_select %p317, %s316, 783
          %s319 = smul.addr %s318, 4
          %s320 = scalar_lea.vmem %s1, %s319
          %s321 = smul.u32 112, %s18
        $region46: #{_lambda_.42} parent=15 // pred_fallthru
          _
      $region16: #{_lambda_.42} parent=5 // pred_fallthru
        _
      %p322 = scmp.le.s32.totalorder 1, %s10
      %p323 = scmp.lt.s32.totalorder %s10, 8
      %p324 = pnand %p322, %p323
      %p325 = pneg %p324
      // Predicated region
      $region47: #{_lambda_.42} parent=5 // pred_check
        _
      $region48: #{_lambda_.42} parent=5 // pred_check_branch
        %327 = sbr.rel (%p324) target = $region50
      $region49: #{_lambda_.42} parent=5 // pred_region
        %s328 = ssub.s32 %s10, 1
        %s329 = sand.u32 %s37, 1
        %s330 = sand.u32 %s37, 1
        %s331 = smul.addr %s330, 448
        %s332 = scalar_lea.vmem [#allocation3], %s331
        // Predicated region
        $region51: #{_lambda_.42} parent=49 // pred_check
          %p333 = pneg %p50
        $region52: #{_lambda_.42} parent=49 // pred_check_branch
          %335 = sbr.rel (%p333) target = $region54
        $region53: #{_lambda_.42} parent=49 // pred_region
          _
        $region54: #{_lambda_.42} parent=49 // pred_fallthru
          _
        %s336 = sand.u32 %s37, 1
        %s337 = sand.u32 %s37, 1
        %s338 = smul.addr %s337, 448
        %s339 = scalar_lea.vmem [#allocation3], %s338
        %p340 = pneg %p50
        %p341 = pneg %p47
        %s342 = smul.u32 112, %s20
        %p343 = scmp.lt.s32.totalorder %s342, 783
        %s344 = scalar_select %p343, %s342, 783
        %s345 = smul.addr %s344, 4
        %s346 = scalar_lea.vmem %s1, %s345
        %p347 = pneg %p76
        %p348 = pneg %p73
        %p349 = pneg %p102
        %p350 = pneg %p99
        %s351 = smul.u32 16, %s19
        %p352 = scmp.lt.s32.totalorder %s351, 15
        %s353 = scalar_select %p352, %s351, 15
        %s354 = smul.addr %s353, 8
        %s355 = scalar_lea.vmem %s2, %s354
        %p356 = pneg %p128
        %p357 = pneg %p125
        %p358 = scmp.lt.s32.totalorder %s19, 0
        %s359 = scalar_select %p358, %s19, 0
        %s360 = smul.addr %s359, 2
        %s361 = scalar_lea.vmem %s3, %s360
        %s362 = smul.u32 16, %s19
        %s363 = smul.u32 7, %s20
        %s364 = smul.u32 112, %s20
        %p365 = scmp.lt.s32.totalorder %s364, 783
        %s366 = scalar_select %p365, %s364, 783
        %s367 = smul.addr %s366, 4
        %s368 = scalar_lea.vmem %s1, %s367
        %s369 = smul.u32 112, %s20
        %s370 = smul.u32 16, %s19
        %p371 = scmp.lt.s32.totalorder %s370, 15
        %s372 = scalar_select %p371, %s370, 15
        %s373 = smul.addr %s372, 8
        %s374 = scalar_lea.vmem %s2, %s373
        %s375 = smul.u32 16, %s19
        %p376 = scmp.lt.s32.totalorder %s19, 0
        %s377 = scalar_select %p376, %s19, 0
        %s378 = smul.addr %s377, 2
        %s379 = scalar_lea.vmem %s3, %s378
        %p380 = scmp.eq.s32.totalorder %s20, 0
        // Predicated region
        $region55: #{_lambda_.42} parent=49 // pred_check
          %p381 = pneg %p380
        $region56: #{_lambda_.42} parent=49 // pred_check_branch
          %383 = sbr.rel (%p381) target = $region58
        $region57: #{_lambda_.42} parent=49 // pred_region
          %384 = vst [vmem:[#allocation2] sm:$0xff] 0.0
          %385 = vst [vmem:[#allocation2 + $0x8] sm:$0xff] 0.0
          %386 = vst [vmem:[#allocation2 + $0x10] sm:$0xff] 0.0
          %387 = vst [vmem:[#allocation2 + $0x18] sm:$0xff] 0.0
          %388 = vst [vmem:[#allocation2 + $0x20] sm:$0xff] 0.0
          %389 = vst [vmem:[#allocation2 + $0x28] sm:$0xff] 0.0
          %390 = vst [vmem:[#allocation2 + $0x30] sm:$0xff] 0.0
          %391 = vst [vmem:[#allocation2 + $0x38] sm:$0xff] 0.0
          %392 = vst [vmem:[#allocation2 + $0x40] sm:$0xff] 0.0
          %393 = vst [vmem:[#allocation2 + $0x48] sm:$0xff] 0.0
          %394 = vst [vmem:[#allocation2 + $0x50] sm:$0xff] 0.0
          %395 = vst [vmem:[#allocation2 + $0x58] sm:$0xff] 0.0
          %396 = vst [vmem:[#allocation2 + $0x60] sm:$0xff] 0.0
          %397 = vst [vmem:[#allocation2 + $0x68] sm:$0xff] 0.0
          %398 = vst [vmem:[#allocation2 + $0x70] sm:$0xff] 0.0
          %399 = vst [vmem:[#allocation2 + $0x78] sm:$0xff] 0.0
        $region58: #{_lambda_.42} parent=49 // pred_fallthru
          _
        %v400 = vld [vmem:[#allocation2] sm:$0xff]
        %v401 = vld [vmem:[#allocation2 + $0x8] sm:$0xff]
        %v402 = vld [vmem:[#allocation2 + $0x10] sm:$0xff]
        %v403 = vld [vmem:[#allocation2 + $0x18] sm:$0xff]
        %v404 = vld [vmem:[#allocation2 + $0x20] sm:$0xff]
        %v405 = vld [vmem:[#allocation2 + $0x28] sm:$0xff]
        %v406 = vld [vmem:[#allocation2 + $0x30] sm:$0xff]
        %v407 = vld [vmem:[#allocation2 + $0x38] sm:$0xff]
        %v408 = vld [vmem:[#allocation2 + $0x40] sm:$0xff]
        %v409 = vld [vmem:[#allocation2 + $0x48] sm:$0xff]
        %v410 = vld [vmem:[#allocation2 + $0x50] sm:$0xff]
        %v411 = vld [vmem:[#allocation2 + $0x58] sm:$0xff]
        %v412 = vld [vmem:[#allocation2 + $0x60] sm:$0xff]
        %v413 = vld [vmem:[#allocation2 + $0x68] sm:$0xff]
        %v414 = vld [vmem:[#allocation2 + $0x70] sm:$0xff]
        %v415 = vld [vmem:[#allocation2 + $0x78] sm:$0xff]
        %v416 = vld [vmem:[%s332] sm:$0xff]
        %v417 = vld [vmem:[%s332 + $0x8] sm:$0xff]
        %v418 = vld [vmem:[%s332 + $0x10] sm:$0xff]
        %v419 = vld [vmem:[%s332 + $0x18] sm:$0xf]
        %v420 = vld [vmem:[%s332 + $0x1c] sm:$0xff]
        %v421 = vld [vmem:[%s332 + $0x24] sm:$0xff]
        %v422 = vld [vmem:[%s332 + $0x2c] sm:$0xff]
        %v423 = vld [vmem:[%s332 + $0x34] sm:$0xf]
        %v424 = vld [vmem:[%s332 + $0x38] sm:$0xff]
        %v425 = vld [vmem:[%s332 + $0x40] sm:$0xff]
        %v426 = vld [vmem:[%s332 + $0x48] sm:$0xff]
        %v427 = vld [vmem:[%s332 + $0x50] sm:$0xf]
        %v428 = vld [vmem:[%s332 + $0x54] sm:$0xff]
        %v429 = vld [vmem:[%s332 + $0x5c] sm:$0xff]
        %v430 = vld [vmem:[%s332 + $0x64] sm:$0xff]
        %v431 = vld [vmem:[%s332 + $0x6c] sm:$0xf]
        %v432 = vld [vmem:[%s332 + $0x70] sm:$0xff]
        %v433 = vld [vmem:[%s332 + $0x78] sm:$0xff]
        %v434 = vld [vmem:[%s332 + $0x80] sm:$0xff]
        %v435 = vld [vmem:[%s332 + $0x88] sm:$0xf]
        %v436 = vld [vmem:[%s332 + $0x8c] sm:$0xff]
        %v437 = vld [vmem:[%s332 + $0x94] sm:$0xff]
        %v438 = vld [vmem:[%s332 + $0x9c] sm:$0xff]
        %v439 = vld [vmem:[%s332 + $0xa4] sm:$0xf]
        %v440 = vld [vmem:[%s332 + $0xa8] sm:$0xff]
        %v441 = vld [vmem:[%s332 + $0xb0] sm:$0xff]
        %v442 = vld [vmem:[%s332 + $0xb8] sm:$0xff]
        %v443 = vld [vmem:[%s332 + $0xc0] sm:$0xf]
        %v444 = vld [vmem:[%s332 + $0xc4] sm:$0xff]
        %v445 = vld [vmem:[%s332 + $0xcc] sm:$0xff]
        %v446 = vld [vmem:[%s332 + $0xd4] sm:$0xff]
        %v447 = vld [vmem:[%s332 + $0xdc] sm:$0xf]
        %v448 = vld [vmem:[%s332 + $0xe0] sm:$0xff]
        %v449 = vld [vmem:[%s332 + $0xe8] sm:$0xff]
        %v450 = vld [vmem:[%s332 + $0xf0] sm:$0xff]
        %v451 = vld [vmem:[%s332 + $0xf8] sm:$0xf]
        %v452 = vld [vmem:[%s332 + $0xfc] sm:$0xff]
        %v453 = vld [vmem:[%s332 + $0x104] sm:$0xff]
        %v454 = vld [vmem:[%s332 + $0x10c] sm:$0xff]
        %v455 = vld [vmem:[%s332 + $0x114] sm:$0xf]
        %v456 = vld [vmem:[%s332 + $0x118] sm:$0xff]
        %v457 = vld [vmem:[%s332 + $0x120] sm:$0xff]
        %v458 = vld [vmem:[%s332 + $0x128] sm:$0xff]
        %v459 = vld [vmem:[%s332 + $0x130] sm:$0xf]
        %v460 = vld [vmem:[%s332 + $0x134] sm:$0xff]
        %v461 = vld [vmem:[%s332 + $0x13c] sm:$0xff]
        %v462 = vld [vmem:[%s332 + $0x144] sm:$0xff]
        %v463 = vld [vmem:[%s332 + $0x14c] sm:$0xf]
        %v464 = vld [vmem:[%s332 + $0x150] sm:$0xff]
        %v465 = vld [vmem:[%s332 + $0x158] sm:$0xff]
        %v466 = vld [vmem:[%s332 + $0x160] sm:$0xff]
        %v467 = vld [vmem:[%s332 + $0x168] sm:$0xf]
        %v468 = vld [vmem:[%s332 + $0x16c] sm:$0xff]
        %v469 = vld [vmem:[%s332 + $0x174] sm:$0xff]
        %v470 = vld [vmem:[%s332 + $0x17c] sm:$0xff]
        %v471 = vld [vmem:[%s332 + $0x184] sm:$0xf]
        %v472 = vld [vmem:[%s332 + $0x188] sm:$0xff]
        %v473 = vld [vmem:[%s332 + $0x190] sm:$0xff]
        %v474 = vld [vmem:[%s332 + $0x198] sm:$0xff]
        %v475 = vld [vmem:[%s332 + $0x1a0] sm:$0xf]
        %v476 = vld [vmem:[%s332 + $0x1a4] sm:$0xff]
        %v477 = vld [vmem:[%s332 + $0x1ac] sm:$0xff]
        %v478 = vld [vmem:[%s332 + $0x1b4] sm:$0xff]
        %v479 = vld [vmem:[%s332 + $0x1bc] sm:$0xf]
        %v480 = vld [vmem:[%s368] sm:$0xf]
        %v481 = vld [vmem:[%s368 + $0x4] sm:$0xf]
        %v482 = vld [vmem:[%s368 + $0x8] sm:$0xf]
        %v483 = vld [vmem:[%s368 + $0xc] sm:$0xf]
        %v484 = vld [vmem:[%s368 + $0x10] sm:$0xf]
        %v485 = vld [vmem:[%s368 + $0x14] sm:$0xf]
        %v486 = vld [vmem:[%s368 + $0x18] sm:$0xf]
        %v487 = vld [vmem:[%s368 + $0x1c] sm:$0xf]
        %v488 = vld [vmem:[%s368 + $0x20] sm:$0xf]
        %v489 = vld [vmem:[%s368 + $0x24] sm:$0xf]
        %v490 = vld [vmem:[%s368 + $0x28] sm:$0xf]
        %v491 = vld [vmem:[%s368 + $0x2c] sm:$0xf]
        %v492 = vld [vmem:[%s368 + $0x30] sm:$0xf]
        %v493 = vld [vmem:[%s368 + $0x34] sm:$0xf]
        %v494 = vld [vmem:[%s368 + $0x38] sm:$0xf]
        %v495 = vld [vmem:[%s368 + $0x3c] sm:$0xf]
        %v496 = vld [vmem:[%s368 + $0x40] sm:$0xf]
        %v497 = vld [vmem:[%s368 + $0x44] sm:$0xf]
        %v498 = vld [vmem:[%s368 + $0x48] sm:$0xf]
        %v499 = vld [vmem:[%s368 + $0x4c] sm:$0xf]
        %v500 = vld [vmem:[%s368 + $0x50] sm:$0xf]
        %v501 = vld [vmem:[%s368 + $0x54] sm:$0xf]
        %v502 = vld [vmem:[%s368 + $0x58] sm:$0xf]
        %v503 = vld [vmem:[%s368 + $0x5c] sm:$0xf]
        %v504 = vld [vmem:[%s368 + $0x60] sm:$0xf]
        %v505 = vld [vmem:[%s368 + $0x64] sm:$0xf]
        %v506 = vld [vmem:[%s368 + $0x68] sm:$0xf]
        %v507 = vld [vmem:[%s368 + $0x6c] sm:$0xf]
        %v508 = vld [vmem:[%s368 + $0x70] sm:$0xf]
        %v509 = vld [vmem:[%s368 + $0x74] sm:$0xf]
        %v510 = vld [vmem:[%s368 + $0x78] sm:$0xf]
        %v511 = vld [vmem:[%s368 + $0x7c] sm:$0xf]
        %v512 = vld [vmem:[%s368 + $0x80] sm:$0xf]
        %v513 = vld [vmem:[%s368 + $0x84] sm:$0xf]
        %v514 = vld [vmem:[%s368 + $0x88] sm:$0xf]
        %v515 = vld [vmem:[%s368 + $0x8c] sm:$0xf]
        %v516 = vld [vmem:[%s368 + $0x90] sm:$0xf]
        %v517 = vld [vmem:[%s368 + $0x94] sm:$0xf]
        %v518 = vld [vmem:[%s368 + $0x98] sm:$0xf]
        %v519 = vld [vmem:[%s368 + $0x9c] sm:$0xf]
        %v520 = vld [vmem:[%s368 + $0xa0] sm:$0xf]
        %v521 = vld [vmem:[%s368 + $0xa4] sm:$0xf]
        %v522 = vld [vmem:[%s368 + $0xa8] sm:$0xf]
        %v523 = vld [vmem:[%s368 + $0xac] sm:$0xf]
        %v524 = vld [vmem:[%s368 + $0xb0] sm:$0xf]
        %v525 = vld [vmem:[%s368 + $0xb4] sm:$0xf]
        %v526 = vld [vmem:[%s368 + $0xb8] sm:$0xf]
        %v527 = vld [vmem:[%s368 + $0xbc] sm:$0xf]
        %v528 = vld [vmem:[%s368 + $0xc0] sm:$0xf]
        %v529 = vld [vmem:[%s368 + $0xc4] sm:$0xf]
        %v530 = vld [vmem:[%s368 + $0xc8] sm:$0xf]
        %v531 = vld [vmem:[%s368 + $0xcc] sm:$0xf]
        %v532 = vld [vmem:[%s368 + $0xd0] sm:$0xf]
        %v533 = vld [vmem:[%s368 + $0xd4] sm:$0xf]
        %v534 = vld [vmem:[%s368 + $0xd8] sm:$0xf]
        %v535 = vld [vmem:[%s368 + $0xdc] sm:$0xf]
        %v536 = vld [vmem:[%s368 + $0xe0] sm:$0xf]
        %v537 = vld [vmem:[%s368 + $0xe4] sm:$0xf]
        %v538 = vld [vmem:[%s368 + $0xe8] sm:$0xf]
        %v539 = vld [vmem:[%s368 + $0xec] sm:$0xf]
        %v540 = vld [vmem:[%s368 + $0xf0] sm:$0xf]
        %v541 = vld [vmem:[%s368 + $0xf4] sm:$0xf]
        %v542 = vld [vmem:[%s368 + $0xf8] sm:$0xf]
        %v543 = vld [vmem:[%s368 + $0xfc] sm:$0xf]
        %v544 = vld [vmem:[%s368 + $0x100] sm:$0xf]
        %v545 = vld [vmem:[%s368 + $0x104] sm:$0xf]
        %v546 = vld [vmem:[%s368 + $0x108] sm:$0xf]
        %v547 = vld [vmem:[%s368 + $0x10c] sm:$0xf]
        %v548 = vld [vmem:[%s368 + $0x110] sm:$0xf]
        %v549 = vld [vmem:[%s368 + $0x114] sm:$0xf]
        %v550 = vld [vmem:[%s368 + $0x118] sm:$0xf]
        %v551 = vld [vmem:[%s368 + $0x11c] sm:$0xf]
        %v552 = vld [vmem:[%s368 + $0x120] sm:$0xf]
        %v553 = vld [vmem:[%s368 + $0x124] sm:$0xf]
        %v554 = vld [vmem:[%s368 + $0x128] sm:$0xf]
        %v555 = vld [vmem:[%s368 + $0x12c] sm:$0xf]
        %v556 = vld [vmem:[%s368 + $0x130] sm:$0xf]
        %v557 = vld [vmem:[%s368 + $0x134] sm:$0xf]
        %v558 = vld [vmem:[%s368 + $0x138] sm:$0xf]
        %v559 = vld [vmem:[%s368 + $0x13c] sm:$0xf]
        %v560 = vld [vmem:[%s368 + $0x140] sm:$0xf]
        %v561 = vld [vmem:[%s368 + $0x144] sm:$0xf]
        %v562 = vld [vmem:[%s368 + $0x148] sm:$0xf]
        %v563 = vld [vmem:[%s368 + $0x14c] sm:$0xf]
        %v564 = vld [vmem:[%s368 + $0x150] sm:$0xf]
        %v565 = vld [vmem:[%s368 + $0x154] sm:$0xf]
        %v566 = vld [vmem:[%s368 + $0x158] sm:$0xf]
        %v567 = vld [vmem:[%s368 + $0x15c] sm:$0xf]
        %v568 = vld [vmem:[%s368 + $0x160] sm:$0xf]
        %v569 = vld [vmem:[%s368 + $0x164] sm:$0xf]
        %v570 = vld [vmem:[%s368 + $0x168] sm:$0xf]
        %v571 = vld [vmem:[%s368 + $0x16c] sm:$0xf]
        %v572 = vld [vmem:[%s368 + $0x170] sm:$0xf]
        %v573 = vld [vmem:[%s368 + $0x174] sm:$0xf]
        %v574 = vld [vmem:[%s368 + $0x178] sm:$0xf]
        %v575 = vld [vmem:[%s368 + $0x17c] sm:$0xf]
        %v576 = vld [vmem:[%s368 + $0x180] sm:$0xf]
        %v577 = vld [vmem:[%s368 + $0x184] sm:$0xf]
        %v578 = vld [vmem:[%s368 + $0x188] sm:$0xf]
        %v579 = vld [vmem:[%s368 + $0x18c] sm:$0xf]
        %v580 = vld [vmem:[%s368 + $0x190] sm:$0xf]
        %v581 = vld [vmem:[%s368 + $0x194] sm:$0xf]
        %v582 = vld [vmem:[%s368 + $0x198] sm:$0xf]
        %v583 = vld [vmem:[%s368 + $0x19c] sm:$0xf]
        %v584 = vld [vmem:[%s368 + $0x1a0] sm:$0xf]
        %v585 = vld [vmem:[%s368 + $0x1a4] sm:$0xf]
        %v586 = vld [vmem:[%s368 + $0x1a8] sm:$0xf]
        %v587 = vld [vmem:[%s368 + $0x1ac] sm:$0xf]
        %v588 = vld [vmem:[%s368 + $0x1b0] sm:$0xf]
        %v589 = vld [vmem:[%s368 + $0x1b4] sm:$0xf]
        %v590 = vld [vmem:[%s368 + $0x1b8] sm:$0xf]
        %v591 = vld [vmem:[%s368 + $0x1bc] sm:$0xf]
        %v656 = vunpack.c.l.b16 %v416
        %v657 = vunpack.c.h.b16 %v416
        %v658 = vunpack.c.l.b16 %v417
        %v659 = vunpack.c.h.b16 %v417
        %v660 = vunpack.c.l.b16 %v418
        %v661 = vunpack.c.h.b16 %v418
        %v662 = vunpack.c.l.b16 %v419
        %v663 = vunpack.c.l.b16 %v420
        %v664 = vunpack.c.h.b16 %v420
        %v665 = vunpack.c.l.b16 %v421
        %v666 = vunpack.c.h.b16 %v421
        %v667 = vunpack.c.l.b16 %v422
        %v668 = vunpack.c.h.b16 %v422
        %v669 = vunpack.c.l.b16 %v423
        %v670 = vunpack.c.l.b16 %v424
        %v671 = vunpack.c.h.b16 %v424
        %v672 = vunpack.c.l.b16 %v425
        %v673 = vunpack.c.h.b16 %v425
        %v674 = vunpack.c.l.b16 %v426
        %v675 = vunpack.c.h.b16 %v426
        %v676 = vunpack.c.l.b16 %v427
        %v677 = vunpack.c.l.b16 %v428
        %v678 = vunpack.c.h.b16 %v428
        %v679 = vunpack.c.l.b16 %v429
        %v680 = vunpack.c.h.b16 %v429
        %v681 = vunpack.c.l.b16 %v430
        %v682 = vunpack.c.h.b16 %v430
        %v683 = vunpack.c.l.b16 %v431
        %v684 = vunpack.c.l.b16 %v432
        %v685 = vunpack.c.h.b16 %v432
        %v686 = vunpack.c.l.b16 %v433
        %v687 = vunpack.c.h.b16 %v433
        %v688 = vunpack.c.l.b16 %v434
        %v689 = vunpack.c.h.b16 %v434
        %v690 = vunpack.c.l.b16 %v435
        %v691 = vunpack.c.l.b16 %v436
        %v692 = vunpack.c.h.b16 %v436
        %v693 = vunpack.c.l.b16 %v437
        %v694 = vunpack.c.h.b16 %v437
        %v695 = vunpack.c.l.b16 %v438
        %v696 = vunpack.c.h.b16 %v438
        %v697 = vunpack.c.l.b16 %v439
        %v698 = vunpack.c.l.b16 %v440
        %v699 = vunpack.c.h.b16 %v440
        %v700 = vunpack.c.l.b16 %v441
        %v701 = vunpack.c.h.b16 %v441
        %v702 = vunpack.c.l.b16 %v442
        %v703 = vunpack.c.h.b16 %v442
        %v704 = vunpack.c.l.b16 %v443
        %v705 = vunpack.c.l.b16 %v444
        %v706 = vunpack.c.h.b16 %v444
        %v707 = vunpack.c.l.b16 %v445
        %v708 = vunpack.c.h.b16 %v445
        %v709 = vunpack.c.l.b16 %v446
        %v710 = vunpack.c.h.b16 %v446
        %v711 = vunpack.c.l.b16 %v447
        %v712 = vunpack.c.l.b16 %v448
        %v713 = vunpack.c.h.b16 %v448
        %v714 = vunpack.c.l.b16 %v449
        %v715 = vunpack.c.h.b16 %v449
        %v716 = vunpack.c.l.b16 %v450
        %v717 = vunpack.c.h.b16 %v450
        %v718 = vunpack.c.l.b16 %v451
        %v719 = vunpack.c.l.b16 %v452
        %v720 = vunpack.c.h.b16 %v452
        %v721 = vunpack.c.l.b16 %v453
        %v722 = vunpack.c.h.b16 %v453
        %v723 = vunpack.c.l.b16 %v454
        %v724 = vunpack.c.h.b16 %v454
        %v725 = vunpack.c.l.b16 %v455
        %v726 = vunpack.c.l.b16 %v456
        %v727 = vunpack.c.h.b16 %v456
        %v728 = vunpack.c.l.b16 %v457
        %v729 = vunpack.c.h.b16 %v457
        %v730 = vunpack.c.l.b16 %v458
        %v731 = vunpack.c.h.b16 %v458
        %v732 = vunpack.c.l.b16 %v459
        %v733 = vunpack.c.l.b16 %v460
        %v734 = vunpack.c.h.b16 %v460
        %v735 = vunpack.c.l.b16 %v461
        %v736 = vunpack.c.h.b16 %v461
        %v737 = vunpack.c.l.b16 %v462
        %v738 = vunpack.c.h.b16 %v462
        %v739 = vunpack.c.l.b16 %v463
        %v740 = vunpack.c.l.b16 %v464
        %v741 = vunpack.c.h.b16 %v464
        %v742 = vunpack.c.l.b16 %v465
        %v743 = vunpack.c.h.b16 %v465
        %v744 = vunpack.c.l.b16 %v466
        %v745 = vunpack.c.h.b16 %v466
        %v746 = vunpack.c.l.b16 %v467
        %v747 = vunpack.c.l.b16 %v468
        %v748 = vunpack.c.h.b16 %v468
        %v749 = vunpack.c.l.b16 %v469
        %v750 = vunpack.c.h.b16 %v469
        %v751 = vunpack.c.l.b16 %v470
        %v752 = vunpack.c.h.b16 %v470
        %v753 = vunpack.c.l.b16 %v471
        %v754 = vunpack.c.l.b16 %v472
        %v755 = vunpack.c.h.b16 %v472
        %v756 = vunpack.c.l.b16 %v473
        %v757 = vunpack.c.h.b16 %v473
        %v758 = vunpack.c.l.b16 %v474
        %v759 = vunpack.c.h.b16 %v474
        %v760 = vunpack.c.l.b16 %v475
        %v761 = vunpack.c.l.b16 %v476
        %v762 = vunpack.c.h.b16 %v476
        %v763 = vunpack.c.l.b16 %v477
        %v764 = vunpack.c.h.b16 %v477
        %v765 = vunpack.c.l.b16 %v478
        %v766 = vunpack.c.h.b16 %v478
        %v767 = vunpack.c.l.b16 %v479
        %v768 = vpack.c.b16 %v663, %v656
        %v769 = vpack.c.b16 %v664, %v657
        %v770 = vpack.c.b16 %v665, %v658
        %v771 = vpack.c.b16 %v666, %v659
        %v772 = vpack.c.b16 %v667, %v660
        %v773 = vpack.c.b16 %v668, %v661
        %v774 = vpack.c.b16 %v669, %v662
        %v775 = vpack.c.b16 %v677, %v670
        %v776 = vpack.c.b16 %v678, %v671
        %v777 = vpack.c.b16 %v679, %v672
        %v778 = vpack.c.b16 %v680, %v673
        %v779 = vpack.c.b16 %v681, %v674
        %v780 = vpack.c.b16 %v682, %v675
        %v781 = vpack.c.b16 %v683, %v676
        %v782 = vpack.c.b16 %v691, %v684
        %v783 = vpack.c.b16 %v692, %v685
        %v784 = vpack.c.b16 %v693, %v686
        %v785 = vpack.c.b16 %v694, %v687
        %v786 = vpack.c.b16 %v695, %v688
        %v787 = vpack.c.b16 %v696, %v689
        %v788 = vpack.c.b16 %v697, %v690
        %v789 = vpack.c.b16 %v705, %v698
        %v790 = vpack.c.b16 %v706, %v699
        %v791 = vpack.c.b16 %v707, %v700
        %v792 = vpack.c.b16 %v708, %v701
        %v793 = vpack.c.b16 %v709, %v702
        %v794 = vpack.c.b16 %v710, %v703
        %v795 = vpack.c.b16 %v711, %v704
        %v796 = vpack.c.b16 %v719, %v712
        %v797 = vpack.c.b16 %v720, %v713
        %v798 = vpack.c.b16 %v721, %v714
        %v799 = vpack.c.b16 %v722, %v715
        %v800 = vpack.c.b16 %v723, %v716
        %v801 = vpack.c.b16 %v724, %v717
        %v802 = vpack.c.b16 %v725, %v718
        %v803 = vpack.c.b16 %v733, %v726
        %v804 = vpack.c.b16 %v734, %v727
        %v805 = vpack.c.b16 %v735, %v728
        %v806 = vpack.c.b16 %v736, %v729
        %v807 = vpack.c.b16 %v737, %v730
        %v808 = vpack.c.b16 %v738, %v731
        %v809 = vpack.c.b16 %v739, %v732
        %v810 = vpack.c.b16 %v747, %v740
        %v811 = vpack.c.b16 %v748, %v741
        %v812 = vpack.c.b16 %v749, %v742
        %v813 = vpack.c.b16 %v750, %v743
        %v814 = vpack.c.b16 %v751, %v744
        %v815 = vpack.c.b16 %v752, %v745
        %v816 = vpack.c.b16 %v753, %v746
        %v817 = vpack.c.b16 %v761, %v754
        %v818 = vpack.c.b16 %v762, %v755
        %v819 = vpack.c.b16 %v763, %v756
        %v820 = vpack.c.b16 %v764, %v757
        %v821 = vpack.c.b16 %v765, %v758
        %v822 = vpack.c.b16 %v766, %v759
        %v823 = vpack.c.b16 %v767, %v760
        %v992 = vunpack.c.l.b16 %v480
        %v993 = vunpack.c.l.b16 %v481
        %v994 = vunpack.c.l.b16 %v482
        %v995 = vunpack.c.l.b16 %v483
        %v996 = vunpack.c.l.b16 %v484
        %v997 = vunpack.c.l.b16 %v485
        %v998 = vunpack.c.l.b16 %v486
        %v999 = vunpack.c.l.b16 %v487
        %v1000 = vunpack.c.l.b16 %v488
        %v1001 = vunpack.c.l.b16 %v489
        %v1002 = vunpack.c.l.b16 %v490
        %v1003 = vunpack.c.l.b16 %v491
        %v1004 = vunpack.c.l.b16 %v492
        %v1005 = vunpack.c.l.b16 %v493
        %v1006 = vunpack.c.l.b16 %v494
        %v1007 = vunpack.c.l.b16 %v495
        %v1008 = vunpack.c.l.b16 %v496
        %v1009 = vunpack.c.l.b16 %v497
        %v1010 = vunpack.c.l.b16 %v498
        %v1011 = vunpack.c.l.b16 %v499
        %v1012 = vunpack.c.l.b16 %v500
        %v1013 = vunpack.c.l.b16 %v501
        %v1014 = vunpack.c.l.b16 %v502
        %v1015 = vunpack.c.l.b16 %v503
        %v1016 = vunpack.c.l.b16 %v504
        %v1017 = vunpack.c.l.b16 %v505
        %v1018 = vunpack.c.l.b16 %v506
        %v1019 = vunpack.c.l.b16 %v507
        %v1020 = vunpack.c.l.b16 %v508
        %v1021 = vunpack.c.l.b16 %v509
        %v1022 = vunpack.c.l.b16 %v510
        %v1023 = vunpack.c.l.b16 %v511
        %v1024 = vunpack.c.l.b16 %v512
        %v1025 = vunpack.c.l.b16 %v513
        %v1026 = vunpack.c.l.b16 %v514
        %v1027 = vunpack.c.l.b16 %v515
        %v1028 = vunpack.c.l.b16 %v516
        %v1029 = vunpack.c.l.b16 %v517
        %v1030 = vunpack.c.l.b16 %v518
        %v1031 = vunpack.c.l.b16 %v519
        %v1032 = vunpack.c.l.b16 %v520
        %v1033 = vunpack.c.l.b16 %v521
        %v1034 = vunpack.c.l.b16 %v522
        %v1035 = vunpack.c.l.b16 %v523
        %v1036 = vunpack.c.l.b16 %v524
        %v1037 = vunpack.c.l.b16 %v525
        %v1038 = vunpack.c.l.b16 %v526
        %v1039 = vunpack.c.l.b16 %v527
        %v1040 = vunpack.c.l.b16 %v528
        %v1041 = vunpack.c.l.b16 %v529
        %v1042 = vunpack.c.l.b16 %v530
        %v1043 = vunpack.c.l.b16 %v531
        %v1044 = vunpack.c.l.b16 %v532
        %v1045 = vunpack.c.l.b16 %v533
        %v1046 = vunpack.c.l.b16 %v534
        %v1047 = vunpack.c.l.b16 %v535
        %v1048 = vunpack.c.l.b16 %v536
        %v1049 = vunpack.c.l.b16 %v537
        %v1050 = vunpack.c.l.b16 %v538
        %v1051 = vunpack.c.l.b16 %v539
        %v1052 = vunpack.c.l.b16 %v540
        %v1053 = vunpack.c.l.b16 %v541
        %v1054 = vunpack.c.l.b16 %v542
        %v1055 = vunpack.c.l.b16 %v543
        %v1056 = vunpack.c.l.b16 %v544
        %v1057 = vunpack.c.l.b16 %v545
        %v1058 = vunpack.c.l.b16 %v546
        %v1059 = vunpack.c.l.b16 %v547
        %v1060 = vunpack.c.l.b16 %v548
        %v1061 = vunpack.c.l.b16 %v549
        %v1062 = vunpack.c.l.b16 %v550
        %v1063 = vunpack.c.l.b16 %v551
        %v1064 = vunpack.c.l.b16 %v552
        %v1065 = vunpack.c.l.b16 %v553
        %v1066 = vunpack.c.l.b16 %v554
        %v1067 = vunpack.c.l.b16 %v555
        %v1068 = vunpack.c.l.b16 %v556
        %v1069 = vunpack.c.l.b16 %v557
        %v1070 = vunpack.c.l.b16 %v558
        %v1071 = vunpack.c.l.b16 %v559
        %v1072 = vunpack.c.l.b16 %v560
        %v1073 = vunpack.c.l.b16 %v561
        %v1074 = vunpack.c.l.b16 %v562
        %v1075 = vunpack.c.l.b16 %v563
        %v1076 = vunpack.c.l.b16 %v564
        %v1077 = vunpack.c.l.b16 %v565
        %v1078 = vunpack.c.l.b16 %v566
        %v1079 = vunpack.c.l.b16 %v567
        %v1080 = vunpack.c.l.b16 %v568
        %v1081 = vunpack.c.l.b16 %v569
        %v1082 = vunpack.c.l.b16 %v570
        %v1083 = vunpack.c.l.b16 %v571
        %v1084 = vunpack.c.l.b16 %v572
        %v1085 = vunpack.c.l.b16 %v573
        %v1086 = vunpack.c.l.b16 %v574
        %v1087 = vunpack.c.l.b16 %v575
        %v1088 = vunpack.c.l.b16 %v576
        %v1089 = vunpack.c.l.b16 %v577
        %v1090 = vunpack.c.l.b16 %v578
        %v1091 = vunpack.c.l.b16 %v579
        %v1092 = vunpack.c.l.b16 %v580
        %v1093 = vunpack.c.l.b16 %v581
        %v1094 = vunpack.c.l.b16 %v582
        %v1095 = vunpack.c.l.b16 %v583
        %v1096 = vunpack.c.l.b16 %v584
        %v1097 = vunpack.c.l.b16 %v585
        %v1098 = vunpack.c.l.b16 %v586
        %v1099 = vunpack.c.l.b16 %v587
        %v1100 = vunpack.c.l.b16 %v588
        %v1101 = vunpack.c.l.b16 %v589
        %v1102 = vunpack.c.l.b16 %v590
        %v1103 = vunpack.c.l.b16 %v591
        %v1104 = vpack.c.b16 %v993, %v992
        %v1105 = vpack.c.b16 %v995, %v994
        %v1106 = vpack.c.b16 %v997, %v996
        %v1107 = vpack.c.b16 %v999, %v998
        %v1108 = vpack.c.b16 %v1001, %v1000
        %v1109 = vpack.c.b16 %v1003, %v1002
        %v1110 = vpack.c.b16 %v1005, %v1004
        %v1111 = vpack.c.b16 %v1007, %v1006
        %v1112 = vpack.c.b16 %v1009, %v1008
        %v1113 = vpack.c.b16 %v1011, %v1010
        %v1114 = vpack.c.b16 %v1013, %v1012
        %v1115 = vpack.c.b16 %v1015, %v1014
        %v1116 = vpack.c.b16 %v1017, %v1016
        %v1117 = vpack.c.b16 %v1019, %v1018
        %v1118 = vpack.c.b16 %v1021, %v1020
        %v1119 = vpack.c.b16 %v1023, %v1022
        %v1120 = vpack.c.b16 %v1025, %v1024
        %v1121 = vpack.c.b16 %v1027, %v1026
        %v1122 = vpack.c.b16 %v1029, %v1028
        %v1123 = vpack.c.b16 %v1031, %v1030
        %v1124 = vpack.c.b16 %v1033, %v1032
        %v1125 = vpack.c.b16 %v1035, %v1034
        %v1126 = vpack.c.b16 %v1037, %v1036
        %v1127 = vpack.c.b16 %v1039, %v1038
        %v1128 = vpack.c.b16 %v1041, %v1040
        %v1129 = vpack.c.b16 %v1043, %v1042
        %v1130 = vpack.c.b16 %v1045, %v1044
        %v1131 = vpack.c.b16 %v1047, %v1046
        %v1132 = vpack.c.b16 %v1049, %v1048
        %v1133 = vpack.c.b16 %v1051, %v1050
        %v1134 = vpack.c.b16 %v1053, %v1052
        %v1135 = vpack.c.b16 %v1055, %v1054
        %v1136 = vpack.c.b16 %v1057, %v1056
        %v1137 = vpack.c.b16 %v1059, %v1058
        %v1138 = vpack.c.b16 %v1061, %v1060
        %v1139 = vpack.c.b16 %v1063, %v1062
        %v1140 = vpack.c.b16 %v1065, %v1064
        %v1141 = vpack.c.b16 %v1067, %v1066
        %v1142 = vpack.c.b16 %v1069, %v1068
        %v1143 = vpack.c.b16 %v1071, %v1070
        %v1144 = vpack.c.b16 %v1073, %v1072
        %v1145 = vpack.c.b16 %v1075, %v1074
        %v1146 = vpack.c.b16 %v1077, %v1076
        %v1147 = vpack.c.b16 %v1079, %v1078
        %v1148 = vpack.c.b16 %v1081, %v1080
        %v1149 = vpack.c.b16 %v1083, %v1082
        %v1150 = vpack.c.b16 %v1085, %v1084
        %v1151 = vpack.c.b16 %v1087, %v1086
        %v1152 = vpack.c.b16 %v1089, %v1088
        %v1153 = vpack.c.b16 %v1091, %v1090
        %v1154 = vpack.c.b16 %v1093, %v1092
        %v1155 = vpack.c.b16 %v1095, %v1094
        %v1156 = vpack.c.b16 %v1097, %v1096
        %v1157 = vpack.c.b16 %v1099, %v1098
        %v1158 = vpack.c.b16 %v1101, %v1100
        %v1159 = vpack.c.b16 %v1103, %v1102
        %1216 = vmatpush.bf16.msra.mxu0 %v1111
        %1217 = vmatpush.bf16.msra.mxu0 %v1110
        %1218 = vmatpush.bf16.msra.mxu0 %v1109
        %1219 = vmatpush.bf16.msra.mxu0 %v1108
        %1220 = vmatpush.bf16.msra.mxu0 %v1107
        %1221 = vmatpush.bf16.msra.mxu0 %v1106
        %1222 = vmatpush.bf16.msra.mxu0 %v1105
        %1223 = vmatpush.bf16.msra.mxu0 %v1104
        %1224 = vmatmul.bf16.gmra.mxu0 %v768
        %v1225 = vpop.f32.mrf.mxu0
        %v1226 = vadd.f32 0.0, %v1225
        %v1227 = vpop.f32.mrf.mxu0
        %v1228 = vadd.f32 0.0, %v1227
        %1229 = vmatmul.bf16.gmra.mxu0 %v775
        %v1230 = vpop.f32.mrf.mxu0
        %v1231 = vadd.f32 0.0, %v1230
        %v1232 = vpop.f32.mrf.mxu0
        %v1233 = vadd.f32 0.0, %v1232
        %1234 = vmatmul.bf16.gmra.mxu0 %v782
        %v1235 = vpop.f32.mrf.mxu0
        %v1236 = vadd.f32 0.0, %v1235
        %v1237 = vpop.f32.mrf.mxu0
        %v1238 = vadd.f32 0.0, %v1237
        %1239 = vmatmul.bf16.gmra.mxu0 %v789
        %v1240 = vpop.f32.mrf.mxu0
        %v1241 = vadd.f32 0.0, %v1240
        %v1242 = vpop.f32.mrf.mxu0
        %v1243 = vadd.f32 0.0, %v1242
        %1244 = vmatmul.bf16.gmra.mxu0 %v796
        %v1245 = vpop.f32.mrf.mxu0
        %v1246 = vadd.f32 0.0, %v1245
        %v1247 = vpop.f32.mrf.mxu0
        %v1248 = vadd.f32 0.0, %v1247
        %1249 = vmatmul.bf16.gmra.mxu0 %v803
        %v1250 = vpop.f32.mrf.mxu0
        %v1251 = vadd.f32 0.0, %v1250
        %v1252 = vpop.f32.mrf.mxu0
        %v1253 = vadd.f32 0.0, %v1252
        %1254 = vmatmul.bf16.gmra.mxu0 %v810
        %v1255 = vpop.f32.mrf.mxu0
        %v1256 = vadd.f32 0.0, %v1255
        %v1257 = vpop.f32.mrf.mxu0
        %v1258 = vadd.f32 0.0, %v1257
        %1259 = vmatmul.bf16.gmra.mxu0 %v817
        %v1260 = vpop.f32.mrf.mxu0
        %v1261 = vadd.f32 0.0, %v1260
        %v1262 = vpop.f32.mrf.mxu0
        %v1263 = vadd.f32 0.0, %v1262
        %1264 = vdwg.mxu0
        %1265 = vmatpush.bf16.msra.mxu0 %v1119
        %1266 = vmatpush.bf16.msra.mxu0 %v1118
        %1267 = vmatpush.bf16.msra.mxu0 %v1117
        %1268 = vmatpush.bf16.msra.mxu0 %v1116
        %1269 = vmatpush.bf16.msra.mxu0 %v1115
        %1270 = vmatpush.bf16.msra.mxu0 %v1114
        %1271 = vmatpush.bf16.msra.mxu0 %v1113
        %1272 = vmatpush.bf16.msra.mxu0 %v1112
        %1273 = vmatmul.bf16.gmra.mxu0 %v769
        %v1274 = vpop.f32.mrf.mxu0
        %v1275 = vadd.f32 %v1226, %v1274
        %v1276 = vpop.f32.mrf.mxu0
        %v1277 = vadd.f32 %v1228, %v1276
        %1278 = vmatmul.bf16.gmra.mxu0 %v776
        %v1279 = vpop.f32.mrf.mxu0
        %v1280 = vadd.f32 %v1231, %v1279
        %v1281 = vpop.f32.mrf.mxu0
        %v1282 = vadd.f32 %v1233, %v1281
        %1283 = vmatmul.bf16.gmra.mxu0 %v783
        %v1284 = vpop.f32.mrf.mxu0
        %v1285 = vadd.f32 %v1236, %v1284
        %v1286 = vpop.f32.mrf.mxu0
        %v1287 = vadd.f32 %v1238, %v1286
        %1288 = vmatmul.bf16.gmra.mxu0 %v790
        %v1289 = vpop.f32.mrf.mxu0
        %v1290 = vadd.f32 %v1241, %v1289
        %v1291 = vpop.f32.mrf.mxu0
        %v1292 = vadd.f32 %v1243, %v1291
        %1293 = vmatmul.bf16.gmra.mxu0 %v797
        %v1294 = vpop.f32.mrf.mxu0
        %v1295 = vadd.f32 %v1246, %v1294
        %v1296 = vpop.f32.mrf.mxu0
        %v1297 = vadd.f32 %v1248, %v1296
        %1298 = vmatmul.bf16.gmra.mxu0 %v804
        %v1299 = vpop.f32.mrf.mxu0
        %v1300 = vadd.f32 %v1251, %v1299
        %v1301 = vpop.f32.mrf.mxu0
        %v1302 = vadd.f32 %v1253, %v1301
        %1303 = vmatmul.bf16.gmra.mxu0 %v811
        %v1304 = vpop.f32.mrf.mxu0
        %v1305 = vadd.f32 %v1256, %v1304
        %v1306 = vpop.f32.mrf.mxu0
        %v1307 = vadd.f32 %v1258, %v1306
        %1308 = vmatmul.bf16.gmra.mxu0 %v818
        %v1309 = vpop.f32.mrf.mxu0
        %v1310 = vadd.f32 %v1261, %v1309
        %v1311 = vpop.f32.mrf.mxu0
        %v1312 = vadd.f32 %v1263, %v1311
        %1313 = vdwg.mxu0
        %1314 = vmatpush.bf16.msra.mxu0 %v1127
        %1315 = vmatpush.bf16.msra.mxu0 %v1126
        %1316 = vmatpush.bf16.msra.mxu0 %v1125
        %1317 = vmatpush.bf16.msra.mxu0 %v1124
        %1318 = vmatpush.bf16.msra.mxu0 %v1123
        %1319 = vmatpush.bf16.msra.mxu0 %v1122
        %1320 = vmatpush.bf16.msra.mxu0 %v1121
        %1321 = vmatpush.bf16.msra.mxu0 %v1120
        %1322 = vmatmul.bf16.gmra.mxu0 %v770
        %v1323 = vpop.f32.mrf.mxu0
        %v1324 = vadd.f32 %v1275, %v1323
        %v1325 = vpop.f32.mrf.mxu0
        %v1326 = vadd.f32 %v1277, %v1325
        %1327 = vmatmul.bf16.gmra.mxu0 %v777
        %v1328 = vpop.f32.mrf.mxu0
        %v1329 = vadd.f32 %v1280, %v1328
        %v1330 = vpop.f32.mrf.mxu0
        %v1331 = vadd.f32 %v1282, %v1330
        %1332 = vmatmul.bf16.gmra.mxu0 %v784
        %v1333 = vpop.f32.mrf.mxu0
        %v1334 = vadd.f32 %v1285, %v1333
        %v1335 = vpop.f32.mrf.mxu0
        %v1336 = vadd.f32 %v1287, %v1335
        %1337 = vmatmul.bf16.gmra.mxu0 %v791
        %v1338 = vpop.f32.mrf.mxu0
        %v1339 = vadd.f32 %v1290, %v1338
        %v1340 = vpop.f32.mrf.mxu0
        %v1341 = vadd.f32 %v1292, %v1340
        %1342 = vmatmul.bf16.gmra.mxu0 %v798
        %v1343 = vpop.f32.mrf.mxu0
        %v1344 = vadd.f32 %v1295, %v1343
        %v1345 = vpop.f32.mrf.mxu0
        %v1346 = vadd.f32 %v1297, %v1345
        %1347 = vmatmul.bf16.gmra.mxu0 %v805
        %v1348 = vpop.f32.mrf.mxu0
        %v1349 = vadd.f32 %v1300, %v1348
        %v1350 = vpop.f32.mrf.mxu0
        %v1351 = vadd.f32 %v1302, %v1350
        %1352 = vmatmul.bf16.gmra.mxu0 %v812
        %v1353 = vpop.f32.mrf.mxu0
        %v1354 = vadd.f32 %v1305, %v1353
        %v1355 = vpop.f32.mrf.mxu0
        %v1356 = vadd.f32 %v1307, %v1355
        %1357 = vmatmul.bf16.gmra.mxu0 %v819
        %v1358 = vpop.f32.mrf.mxu0
        %v1359 = vadd.f32 %v1310, %v1358
        %v1360 = vpop.f32.mrf.mxu0
        %v1361 = vadd.f32 %v1312, %v1360
        %1362 = vdwg.mxu0
        %1363 = vmatpush.bf16.msra.mxu0 %v1135
        %1364 = vmatpush.bf16.msra.mxu0 %v1134
        %1365 = vmatpush.bf16.msra.mxu0 %v1133
        %1366 = vmatpush.bf16.msra.mxu0 %v1132
        %1367 = vmatpush.bf16.msra.mxu0 %v1131
        %1368 = vmatpush.bf16.msra.mxu0 %v1130
        %1369 = vmatpush.bf16.msra.mxu0 %v1129
        %1370 = vmatpush.bf16.msra.mxu0 %v1128
        %1371 = vmatmul.bf16.gmra.mxu0 %v771
        %v1372 = vpop.f32.mrf.mxu0
        %v1373 = vadd.f32 %v1324, %v1372
        %v1374 = vpop.f32.mrf.mxu0
        %v1375 = vadd.f32 %v1326, %v1374
        %1376 = vmatmul.bf16.gmra.mxu0 %v778
        %v1377 = vpop.f32.mrf.mxu0
        %v1378 = vadd.f32 %v1329, %v1377
        %v1379 = vpop.f32.mrf.mxu0
        %v1380 = vadd.f32 %v1331, %v1379
        %1381 = vmatmul.bf16.gmra.mxu0 %v785
        %v1382 = vpop.f32.mrf.mxu0
        %v1383 = vadd.f32 %v1334, %v1382
        %v1384 = vpop.f32.mrf.mxu0
        %v1385 = vadd.f32 %v1336, %v1384
        %1386 = vmatmul.bf16.gmra.mxu0 %v792
        %v1387 = vpop.f32.mrf.mxu0
        %v1388 = vadd.f32 %v1339, %v1387
        %v1389 = vpop.f32.mrf.mxu0
        %v1390 = vadd.f32 %v1341, %v1389
        %1391 = vmatmul.bf16.gmra.mxu0 %v799
        %v1392 = vpop.f32.mrf.mxu0
        %v1393 = vadd.f32 %v1344, %v1392
        %v1394 = vpop.f32.mrf.mxu0
        %v1395 = vadd.f32 %v1346, %v1394
        %1396 = vmatmul.bf16.gmra.mxu0 %v806
        %v1397 = vpop.f32.mrf.mxu0
        %v1398 = vadd.f32 %v1349, %v1397
        %v1399 = vpop.f32.mrf.mxu0
        %v1400 = vadd.f32 %v1351, %v1399
        %1401 = vmatmul.bf16.gmra.mxu0 %v813
        %v1402 = vpop.f32.mrf.mxu0
        %v1403 = vadd.f32 %v1354, %v1402
        %v1404 = vpop.f32.mrf.mxu0
        %v1405 = vadd.f32 %v1356, %v1404
        %1406 = vmatmul.bf16.gmra.mxu0 %v820
        %v1407 = vpop.f32.mrf.mxu0
        %v1408 = vadd.f32 %v1359, %v1407
        %v1409 = vpop.f32.mrf.mxu0
        %v1410 = vadd.f32 %v1361, %v1409
        %1411 = vdwg.mxu0
        %1412 = vmatpush.bf16.msra.mxu0 %v1143
        %1413 = vmatpush.bf16.msra.mxu0 %v1142
        %1414 = vmatpush.bf16.msra.mxu0 %v1141
        %1415 = vmatpush.bf16.msra.mxu0 %v1140
        %1416 = vmatpush.bf16.msra.mxu0 %v1139
        %1417 = vmatpush.bf16.msra.mxu0 %v1138
        %1418 = vmatpush.bf16.msra.mxu0 %v1137
        %1419 = vmatpush.bf16.msra.mxu0 %v1136
        %1420 = vmatmul.bf16.gmra.mxu0 %v772
        %v1421 = vpop.f32.mrf.mxu0
        %v1422 = vadd.f32 %v1373, %v1421
        %v1423 = vpop.f32.mrf.mxu0
        %v1424 = vadd.f32 %v1375, %v1423
        %1425 = vmatmul.bf16.gmra.mxu0 %v779
        %v1426 = vpop.f32.mrf.mxu0
        %v1427 = vadd.f32 %v1378, %v1426
        %v1428 = vpop.f32.mrf.mxu0
        %v1429 = vadd.f32 %v1380, %v1428
        %1430 = vmatmul.bf16.gmra.mxu0 %v786
        %v1431 = vpop.f32.mrf.mxu0
        %v1432 = vadd.f32 %v1383, %v1431
        %v1433 = vpop.f32.mrf.mxu0
        %v1434 = vadd.f32 %v1385, %v1433
        %1435 = vmatmul.bf16.gmra.mxu0 %v793
        %v1436 = vpop.f32.mrf.mxu0
        %v1437 = vadd.f32 %v1388, %v1436
        %v1438 = vpop.f32.mrf.mxu0
        %v1439 = vadd.f32 %v1390, %v1438
        %1440 = vmatmul.bf16.gmra.mxu0 %v800
        %v1441 = vpop.f32.mrf.mxu0
        %v1442 = vadd.f32 %v1393, %v1441
        %v1443 = vpop.f32.mrf.mxu0
        %v1444 = vadd.f32 %v1395, %v1443
        %1445 = vmatmul.bf16.gmra.mxu0 %v807
        %v1446 = vpop.f32.mrf.mxu0
        %v1447 = vadd.f32 %v1398, %v1446
        %v1448 = vpop.f32.mrf.mxu0
        %v1449 = vadd.f32 %v1400, %v1448
        %1450 = vmatmul.bf16.gmra.mxu0 %v814
        %v1451 = vpop.f32.mrf.mxu0
        %v1452 = vadd.f32 %v1403, %v1451
        %v1453 = vpop.f32.mrf.mxu0
        %v1454 = vadd.f32 %v1405, %v1453
        %1455 = vmatmul.bf16.gmra.mxu0 %v821
        %v1456 = vpop.f32.mrf.mxu0
        %v1457 = vadd.f32 %v1408, %v1456
        %v1458 = vpop.f32.mrf.mxu0
        %v1459 = vadd.f32 %v1410, %v1458
        %1460 = vdwg.mxu0
        %1461 = vmatpush.bf16.msra.mxu0 %v1151
        %1462 = vmatpush.bf16.msra.mxu0 %v1150
        %1463 = vmatpush.bf16.msra.mxu0 %v1149
        %1464 = vmatpush.bf16.msra.mxu0 %v1148
        %1465 = vmatpush.bf16.msra.mxu0 %v1147
        %1466 = vmatpush.bf16.msra.mxu0 %v1146
        %1467 = vmatpush.bf16.msra.mxu0 %v1145
        %1468 = vmatpush.bf16.msra.mxu0 %v1144
        %1469 = vmatmul.bf16.gmra.mxu0 %v773
        %v1470 = vpop.f32.mrf.mxu0
        %v1471 = vadd.f32 %v1422, %v1470
        %v1472 = vpop.f32.mrf.mxu0
        %v1473 = vadd.f32 %v1424, %v1472
        %1474 = vmatmul.bf16.gmra.mxu0 %v780
        %v1475 = vpop.f32.mrf.mxu0
        %v1476 = vadd.f32 %v1427, %v1475
        %v1477 = vpop.f32.mrf.mxu0
        %v1478 = vadd.f32 %v1429, %v1477
        %1479 = vmatmul.bf16.gmra.mxu0 %v787
        %v1480 = vpop.f32.mrf.mxu0
        %v1481 = vadd.f32 %v1432, %v1480
        %v1482 = vpop.f32.mrf.mxu0
        %v1483 = vadd.f32 %v1434, %v1482
        %1484 = vmatmul.bf16.gmra.mxu0 %v794
        %v1485 = vpop.f32.mrf.mxu0
        %v1486 = vadd.f32 %v1437, %v1485
        %v1487 = vpop.f32.mrf.mxu0
        %v1488 = vadd.f32 %v1439, %v1487
        %1489 = vmatmul.bf16.gmra.mxu0 %v801
        %v1490 = vpop.f32.mrf.mxu0
        %v1491 = vadd.f32 %v1442, %v1490
        %v1492 = vpop.f32.mrf.mxu0
        %v1493 = vadd.f32 %v1444, %v1492
        %1494 = vmatmul.bf16.gmra.mxu0 %v808
        %v1495 = vpop.f32.mrf.mxu0
        %v1496 = vadd.f32 %v1447, %v1495
        %v1497 = vpop.f32.mrf.mxu0
        %v1498 = vadd.f32 %v1449, %v1497
        %1499 = vmatmul.bf16.gmra.mxu0 %v815
        %v1500 = vpop.f32.mrf.mxu0
        %v1501 = vadd.f32 %v1452, %v1500
        %v1502 = vpop.f32.mrf.mxu0
        %v1503 = vadd.f32 %v1454, %v1502
        %1504 = vmatmul.bf16.gmra.mxu0 %v822
        %v1505 = vpop.f32.mrf.mxu0
        %v1506 = vadd.f32 %v1457, %v1505
        %v1507 = vpop.f32.mrf.mxu0
        %v1508 = vadd.f32 %v1459, %v1507
        %1509 = vdwg.mxu0
        %1510 = vmatpush.bf16.msra.mxu0 %v1159
        %1511 = vmatpush.bf16.msra.mxu0 %v1158
        %1512 = vmatpush.bf16.msra.mxu0 %v1157
        %1513 = vmatpush.bf16.msra.mxu0 %v1156
        %1514 = vmatpush.bf16.msra.mxu0 %v1155
        %1515 = vmatpush.bf16.msra.mxu0 %v1154
        %1516 = vmatpush.bf16.msra.mxu0 %v1153
        %1517 = vmatpush.bf16.msra.mxu0 %v1152
        %1518 = vmatmul.bf16.gmra.mxu0 %v774
        %v1519 = vpop.f32.mrf.mxu0
        %v1520 = vadd.f32 %v1471, %v1519
        %v1521 = vpop.f32.mrf.mxu0
        %v1522 = vadd.f32 %v1473, %v1521
        %1523 = vmatmul.bf16.gmra.mxu0 %v781
        %v1524 = vpop.f32.mrf.mxu0
        %v1525 = vadd.f32 %v1476, %v1524
        %v1526 = vpop.f32.mrf.mxu0
        %v1527 = vadd.f32 %v1478, %v1526
        %1528 = vmatmul.bf16.gmra.mxu0 %v788
        %v1529 = vpop.f32.mrf.mxu0
        %v1530 = vadd.f32 %v1481, %v1529
        %v1531 = vpop.f32.mrf.mxu0
        %v1532 = vadd.f32 %v1483, %v1531
        %1533 = vmatmul.bf16.gmra.mxu0 %v795
        %v1534 = vpop.f32.mrf.mxu0
        %v1535 = vadd.f32 %v1486, %v1534
        %v1536 = vpop.f32.mrf.mxu0
        %v1537 = vadd.f32 %v1488, %v1536
        %1538 = vmatmul.bf16.gmra.mxu0 %v802
        %v1539 = vpop.f32.mrf.mxu0
        %v1540 = vadd.f32 %v1491, %v1539
        %v1541 = vpop.f32.mrf.mxu0
        %v1542 = vadd.f32 %v1493, %v1541
        %1543 = vmatmul.bf16.gmra.mxu0 %v809
        %v1544 = vpop.f32.mrf.mxu0
        %v1545 = vadd.f32 %v1496, %v1544
        %v1546 = vpop.f32.mrf.mxu0
        %v1547 = vadd.f32 %v1498, %v1546
        %1548 = vmatmul.bf16.gmra.mxu0 %v816
        %v1549 = vpop.f32.mrf.mxu0
        %v1550 = vadd.f32 %v1501, %v1549
        %v1551 = vpop.f32.mrf.mxu0
        %v1552 = vadd.f32 %v1503, %v1551
        %1553 = vmatmul.bf16.gmra.mxu0 %v823
        %v1554 = vpop.f32.mrf.mxu0
        %v1555 = vadd.f32 %v1506, %v1554
        %v1556 = vpop.f32.mrf.mxu0
        %v1557 = vadd.f32 %v1508, %v1556
        %1558 = vdwg.mxu0
        %v1559 = vadd.f32 %v400, %v1520
        %v1560 = vadd.f32 %v401, %v1522
        %v1561 = vadd.f32 %v402, %v1525
        %v1562 = vadd.f32 %v403, %v1527
        %v1563 = vadd.f32 %v404, %v1530
        %v1564 = vadd.f32 %v405, %v1532
        %v1565 = vadd.f32 %v406, %v1535
        %v1566 = vadd.f32 %v407, %v1537
        %v1567 = vadd.f32 %v408, %v1540
        %v1568 = vadd.f32 %v409, %v1542
        %v1569 = vadd.f32 %v410, %v1545
        %v1570 = vadd.f32 %v411, %v1547
        %v1571 = vadd.f32 %v412, %v1550
        %v1572 = vadd.f32 %v413, %v1552
        %v1573 = vadd.f32 %v414, %v1555
        %v1574 = vadd.f32 %v415, %v1557
        %1575 = vst [vmem:[#allocation2] sm:$0xff] %v1559
        %1576 = vst [vmem:[#allocation2 + $0x8] sm:$0xff] %v1560
        %1577 = vst [vmem:[#allocation2 + $0x10] sm:$0xff] %v1561
        %1578 = vst [vmem:[#allocation2 + $0x18] sm:$0xff] %v1562
        %1579 = vst [vmem:[#allocation2 + $0x20] sm:$0xff] %v1563
        %1580 = vst [vmem:[#allocation2 + $0x28] sm:$0xff] %v1564
        %1581 = vst [vmem:[#allocation2 + $0x30] sm:$0xff] %v1565
        %1582 = vst [vmem:[#allocation2 + $0x38] sm:$0xff] %v1566
        %1583 = vst [vmem:[#allocation2 + $0x40] sm:$0xff] %v1567
        %1584 = vst [vmem:[#allocation2 + $0x48] sm:$0xff] %v1568
        %1585 = vst [vmem:[#allocation2 + $0x50] sm:$0xff] %v1569
        %1586 = vst [vmem:[#allocation2 + $0x58] sm:$0xff] %v1570
        %1587 = vst [vmem:[#allocation2 + $0x60] sm:$0xff] %v1571
        %1588 = vst [vmem:[#allocation2 + $0x68] sm:$0xff] %v1572
        %1589 = vst [vmem:[#allocation2 + $0x70] sm:$0xff] %v1573
        %1590 = vst [vmem:[#allocation2 + $0x78] sm:$0xff] %v1574
        %p1591 = scmp.eq.s32.totalorder %s20, 6
        // Predicated region
        $region59: #{_lambda_.42} parent=49 // pred_check
          %p1592 = pneg %p1591
        $region60: #{_lambda_.42} parent=49 // pred_check_branch
          %1594 = sbr.rel (%p1592) target = $region62
        $region61: #{_lambda_.42} parent=49 // pred_region
          %v1595 = vld [vmem:[#allocation2] sm:$0xff]
          %v1596 = vld [vmem:[#allocation2 + $0x8] sm:$0xff]
          %v1597 = vld [vmem:[#allocation2 + $0x10] sm:$0xff]
          %v1598 = vld [vmem:[#allocation2 + $0x18] sm:$0xff]
          %v1599 = vld [vmem:[#allocation2 + $0x20] sm:$0xff]
          %v1600 = vld [vmem:[#allocation2 + $0x28] sm:$0xff]
          %v1601 = vld [vmem:[#allocation2 + $0x30] sm:$0xff]
          %v1602 = vld [vmem:[#allocation2 + $0x38] sm:$0xff]
          %v1603 = vld [vmem:[#allocation2 + $0x40] sm:$0xff]
          %v1604 = vld [vmem:[#allocation2 + $0x48] sm:$0xff]
          %v1605 = vld [vmem:[#allocation2 + $0x50] sm:$0xff]
          %v1606 = vld [vmem:[#allocation2 + $0x58] sm:$0xff]
          %v1607 = vld [vmem:[#allocation2 + $0x60] sm:$0xff]
          %v1608 = vld [vmem:[#allocation2 + $0x68] sm:$0xff]
          %v1609 = vld [vmem:[#allocation2 + $0x70] sm:$0xff]
          %v1610 = vld [vmem:[#allocation2 + $0x78] sm:$0xff]
          %1611 = vst [vmem:[%s374] sm:$0xff] %v1595
          %1612 = vst [vmem:[%s374 + $0x8] sm:$0xff] %v1596
          %1613 = vst [vmem:[%s374 + $0x10] sm:$0xff] %v1597
          %1614 = vst [vmem:[%s374 + $0x18] sm:$0xff] %v1598
          %1615 = vst [vmem:[%s374 + $0x20] sm:$0xff] %v1599
          %1616 = vst [vmem:[%s374 + $0x28] sm:$0xff] %v1600
          %1617 = vst [vmem:[%s374 + $0x30] sm:$0xff] %v1601
          %1618 = vst [vmem:[%s374 + $0x38] sm:$0xff] %v1602
          %1619 = vst [vmem:[%s374 + $0x40] sm:$0xff] %v1603
          %1620 = vst [vmem:[%s374 + $0x48] sm:$0xff] %v1604
          %1621 = vst [vmem:[%s374 + $0x50] sm:$0xff] %v1605
          %1622 = vst [vmem:[%s374 + $0x58] sm:$0xff] %v1606
          %1623 = vst [vmem:[%s374 + $0x60] sm:$0xff] %v1607
          %1624 = vst [vmem:[%s374 + $0x68] sm:$0xff] %v1608
          %1625 = vst [vmem:[%s374 + $0x70] sm:$0xff] %v1609
          %1626 = vst [vmem:[%s374 + $0x78] sm:$0xff] %v1610
          %v1627 = vadd.f32 %v1595, %v1596
          %v1628 = vadd.f32 %v1627, %v1597
          %v1629 = vadd.f32 %v1628, %v1598
          %v1630 = vadd.f32 %v1629, %v1599
          %v1631 = vadd.f32 %v1630, %v1600
          %v1632 = vadd.f32 %v1631, %v1601
          %v1633 = vadd.f32 %v1632, %v1602
          %v1634 = vadd.f32 %v1633, %v1603
          %v1635 = vadd.f32 %v1634, %v1604
          %v1636 = vadd.f32 %v1635, %v1605
          %v1637 = vadd.f32 %v1636, %v1606
          %v1638 = vadd.f32 %v1637, %v1607
          %v1639 = vadd.f32 %v1638, %v1608
          %v1640 = vadd.f32 %v1639, %v1609
          %v1641 = vadd.f32 %v1640, %v1610
          %v1642 = vrot.slane %v1641, 4
          %v1643 = vadd.f32 %v1641, %v1642
          %v1644 = vrot.slane %v1643, 2
          %v1645 = vadd.f32 %v1643, %v1644
          %v1646 = vrot.slane %v1645, 1
          %v1647 = vadd.f32 %v1645, %v1646
          %1648 = vst [vmem:[%s379] sm:$0x1] %v1647
          %v1649 = vmul.f32 %v1595, %v1595
          %v1650 = vmul.f32 %v1596, %v1596
          %v1651 = vmul.f32 %v1597, %v1597
          %v1652 = vmul.f32 %v1598, %v1598
          %v1653 = vmul.f32 %v1599, %v1599
          %v1654 = vmul.f32 %v1600, %v1600
          %v1655 = vmul.f32 %v1601, %v1601
          %v1656 = vmul.f32 %v1602, %v1602
          %v1657 = vmul.f32 %v1603, %v1603
          %v1658 = vmul.f32 %v1604, %v1604
          %v1659 = vmul.f32 %v1605, %v1605
          %v1660 = vmul.f32 %v1606, %v1606
          %v1661 = vmul.f32 %v1607, %v1607
          %v1662 = vmul.f32 %v1608, %v1608
          %v1663 = vmul.f32 %v1609, %v1609
          %v1664 = vmul.f32 %v1610, %v1610
          %v1665 = vadd.f32 %v1649, %v1650
          %v1666 = vadd.f32 %v1665, %v1651
          %v1667 = vadd.f32 %v1666, %v1652
          %v1668 = vadd.f32 %v1667, %v1653
          %v1669 = vadd.f32 %v1668, %v1654
          %v1670 = vadd.f32 %v1669, %v1655
          %v1671 = vadd.f32 %v1670, %v1656
          %v1672 = vadd.f32 %v1671, %v1657
          %v1673 = vadd.f32 %v1672, %v1658
          %v1674 = vadd.f32 %v1673, %v1659
          %v1675 = vadd.f32 %v1674, %v1660
          %v1676 = vadd.f32 %v1675, %v1661
          %v1677 = vadd.f32 %v1676, %v1662
          %v1678 = vadd.f32 %v1677, %v1663
          %v1679 = vadd.f32 %v1678, %v1664
          %v1680 = vrot.slane %v1679, 4
          %v1681 = vadd.f32 %v1679, %v1680
          %v1682 = vrot.slane %v1681, 2
          %v1683 = vadd.f32 %v1681, %v1682
          %v1684 = vrot.slane %v1683, 1
          %v1685 = vadd.f32 %v1683, %v1684
          %1686 = vst [vmem:[%s379 + $0x1] sm:$0x1] %v1685
        $region62: #{_lambda_.42} parent=49 // pred_fallthru
          _
        %s1687 = smul.u32 16, %s19
        %p1688 = scmp.lt.s32.totalorder %s1687, 15
        %s1689 = scalar_select %p1688, %s1687, 15
        %s1690 = smul.addr %s1689, 8
        %s1691 = scalar_lea.vmem %s2, %s1690
        %p1692 = scmp.lt.s32.totalorder %s19, 0
        %s1693 = scalar_select %p1692, %s19, 0
        %s1694 = smul.addr %s1693, 2
        %s1695 = scalar_lea.vmem %s3, %s1694
        // Predicated region
        $region63: #{_lambda_.42} parent=49 // pred_check
          %p1696 = pneg %p99
        $region64: #{_lambda_.42} parent=49 // pred_check_branch
          %1698 = sbr.rel (%p1696) target = $region66
        $region65: #{_lambda_.42} parent=49 // pred_region
          %s1699 = smul.u32 16, %s19
        $region66: #{_lambda_.42} parent=49 // pred_fallthru
          _
        // Predicated region
        $region67: #{_lambda_.42} parent=49 // pred_check
          %p1700 = pneg %p125
        $region68: #{_lambda_.42} parent=49 // pred_check_branch
          %1702 = sbr.rel (%p1700) target = $region70
        $region69: #{_lambda_.42} parent=49 // pred_region
          _
        $region70: #{_lambda_.42} parent=49 // pred_fallthru
          _
        // Predicated region
        $region71: #{_lambda_.42} parent=49 // pred_check
          %p1703 = pneg %p99
        $region72: #{_lambda_.42} parent=49 // pred_check_branch
          %1705 = sbr.rel (%p1703) target = $region74
        $region73: #{_lambda_.42} parent=49 // pred_region
          %s1706 = smul.u32 16, %s19
          %p1707 = scmp.lt.s32.totalorder %s1706, 15
          %s1708 = scalar_select %p1707, %s1706, 15
          %s1709 = smul.addr %s1708, 8
          %s1710 = scalar_lea.vmem %s2, %s1709
        $region74: #{_lambda_.42} parent=49 // pred_fallthru
          _
        // Predicated region
        $region75: #{_lambda_.42} parent=49 // pred_check
          %p1711 = pneg %p125
        $region76: #{_lambda_.42} parent=49 // pred_check_branch
          %1713 = sbr.rel (%p1711) target = $region78
        $region77: #{_lambda_.42} parent=49 // pred_region
          %p1714 = scmp.lt.s32.totalorder %s19, 0
          %s1715 = scalar_select %p1714, %s19, 0
          %s1716 = smul.addr %s1715, 2
          %s1717 = scalar_lea.vmem %s3, %s1716
        $region78: #{_lambda_.42} parent=49 // pred_fallthru
          _
      $region50: #{_lambda_.42} parent=5 // pred_fallthru
        _
      %p1718 = scmp.le.s32.totalorder 2, %s10
      // Predicated region
      $region79: #{_lambda_.42} parent=5 // pred_check
        %p1719 = pneg %p1718
      $region80: #{_lambda_.42} parent=5 // pred_check_branch
        %1721 = sbr.rel (%p1719) target = $region82
      $region81: #{_lambda_.42} parent=5 // pred_region
        %s1722 = ssub.s32 %s10, 2
      $region82: #{_lambda_.42} parent=5 // pred_fallthru
        _
    $region6: #{_lambda_.42} parent=1 // loop_footer
      %s14 = sadd.s32 1, %s10
    $region7: #{_lambda_.42} parent=1 // loop_footer_branch
      %9 = sbr.rel target = $region3
    $region8: #{_lambda_.42} parent=1 // loop_exit
      _

// kernel: _lambda_.45
$region0: #{_lambda_.45}
  #allocation0 [shape = 'u32[]', space=smem, size = 0x4, offset = 0x4, fixed_abs, tag = 'smem constant byte address 0x4 - core index']
  #allocation1 [shape = 'u32[72,128]{1,0:T(1,128)}', space=vmem, size = 0x9000, scoped, tag = 'internal scratch']
  #allocation2 [shape = 'f32[32,128]{1,0:T(8,128)}', space=vmem, size = 0x4000, scoped, tag = 'scratch operand']
  %s0 = inlined_call_operand.vmem [shape: bf16[32,1152], index: 0, kind: input, shape index: {}]
  %s1 = inlined_call_operand.vmem [shape: bf16[1152,128], index: 1, kind: input, shape index: {}]
  %s2 = inlined_call_operand.vmem [shape: f32[32,128], index: 2, kind: output, shape index: {0}]
  %s3 = inlined_call_operand.vmem [shape: f32[1,2,128], index: 3, kind: output, shape index: {1}]
  %4 = xla_tuple %s2, %s3
  %s5 = sld [smem:[#allocation0]]
  $region83: #{_lambda_.45} parent=0
    _
  %s7 = ssub.s32 1, %s5
  %s8 = scalar_select 0, %s7, %s5
  $region1: #{_lambda_.45} parent=0
    #allocation3 [shape = 'u8[49152]{0}', space=vmem, size = 0xc000, scoped, tag = 'input window, operand 0']
    loop: start=0, step=1, limit=5
    $region2: #{_lambda_.45} parent=1 // loop_pre_header
      _
    $region3: #{_lambda_.45} parent=1 // loop_header
      %s10 = sphi 0, %s14
      %p11 = scmp.ge.s32.totalorder %s10, 5
      %s17 = sphi 0, %s29
      %s18 = sphi 0, %s25
      %s19 = sphi 0, %s17
      %s20 = sphi 0, %s18
      %s21 = sphi 0, %s19
      %s22 = sphi 0, %s20
      %s34 = sphi 0, %s36
      %s37 = sphi 0, %s34
      %s38 = sphi 0, %s37
      %s54 = sphi 0, %s38
      %s60 = sphi 0, %s62
      %s63 = sphi 0, %s60
      %s64 = sphi 0, %s63
      %s80 = sphi 0, %s64
      %s86 = sphi 0, %s88
      %s89 = sphi 0, %s86
      %s90 = sphi 0, %s89
      %s106 = sphi 0, %s90
      %s112 = sphi 0, %s114
      %s115 = sphi 0, %s112
      %s116 = sphi 0, %s115
      %s132 = sphi 0, %s116
    $region4: #{_lambda_.45} parent=1 // loop_header_branch
      %13 = sbr.rel (%p11) target = $region8
    $region5: #{_lambda_.45} parent=1 // loop_body
      %s15 = ssub.s32 %s10, 1
      %s16 = ssub.s32 %s10, 2
      %s23 = sadd.s32 1, %s18
      %p24 = scmp.ge.s32.totalorder %s23, 3
      %s25 = scalar_select %p24, 0, %s23
      %s26 = sadd.s32 1, %s17
      %s27 = scalar_select %p24, %s26, %s17
      %p28 = scmp.ge.s32.totalorder %s27, 1
      %s29 = scalar_select %p28, 0, %s27
      %s30 = ssub.s32 %s17, %s29
      %s31 = ssub.s32 %s18, %s25
      %s32 = sor.u32 %s30, %s31
      %p33 = scmp.eq.s32.totalorder %s32, 0
      %s35 = sadd.s32 %s34, 1
      %s36 = scalar_select %p33, %s34, %s35
      %p39 = pneg %p33
      %p40 = scmp.eq.s32.totalorder %s10, 2
      %p41 = por %p39, %p40
      %p42 = scmp.ne.s32.totalorder %s34, %s37
      %p43 = scmp.eq.s32.totalorder %s10, 0
      %p44 = por %p42, %p43
      %p45 = scmp.ne.s32.totalorder %s34, %s37
      %p46 = scmp.eq.s32.totalorder %s15, 2
      %p47 = por %p45, %p46
      %p48 = scmp.ne.s32.totalorder %s37, %s38
      %p49 = scmp.eq.s32.totalorder %s15, 0
      %p50 = por %p48, %p49
      %p51 = scmp.ne.s32.totalorder %s37, %s38
      %p52 = scmp.eq.s32.totalorder %s16, 2
      %p53 = por %p51, %p52
      %p55 = scmp.ne.s32.totalorder %s38, %s54
      %p56 = scmp.eq.s32.totalorder %s16, 0
      %p57 = por %p55, %p56
      %s58 = ssub.s32 %s18, %s25
      %p59 = scmp.eq.s32.totalorder %s58, 0
      %s61 = sadd.s32 %s60, 1
      %s62 = scalar_select %p59, %s60, %s61
      %p65 = pneg %p59
      %p66 = scmp.eq.s32.totalorder %s10, 2
      %p67 = por %p65, %p66
      %p68 = scmp.ne.s32.totalorder %s60, %s63
      %p69 = scmp.eq.s32.totalorder %s10, 0
      %p70 = por %p68, %p69
      %p71 = scmp.ne.s32.totalorder %s60, %s63
      %p72 = scmp.eq.s32.totalorder %s15, 2
      %p73 = por %p71, %p72
      %p74 = scmp.ne.s32.totalorder %s63, %s64
      %p75 = scmp.eq.s32.totalorder %s15, 0
      %p76 = por %p74, %p75
      %p77 = scmp.ne.s32.totalorder %s63, %s64
      %p78 = scmp.eq.s32.totalorder %s16, 2
      %p79 = por %p77, %p78
      %p81 = scmp.ne.s32.totalorder %s64, %s80
      %p82 = scmp.eq.s32.totalorder %s16, 0
      %p83 = por %p81, %p82
      %s84 = ssub.s32 %s17, %s29
      %p85 = scmp.eq.s32.totalorder %s84, 0
      %s87 = sadd.s32 %s86, 1
      %s88 = scalar_select %p85, %s86, %s87
      %p91 = pneg %p85
      %p92 = scmp.eq.s32.totalorder %s10, 2
      %p93 = por %p91, %p92
      %p94 = scmp.ne.s32.totalorder %s86, %s89
      %p95 = scmp.eq.s32.totalorder %s10, 0
      %p96 = por %p94, %p95
      %p97 = scmp.ne.s32.totalorder %s86, %s89
      %p98 = scmp.eq.s32.totalorder %s15, 2
      %p99 = por %p97, %p98
      %p100 = scmp.ne.s32.totalorder %s89, %s90
      %p101 = scmp.eq.s32.totalorder %s15, 0
      %p102 = por %p100, %p101
      %p103 = scmp.ne.s32.totalorder %s89, %s90
      %p104 = scmp.eq.s32.totalorder %s16, 2
      %p105 = por %p103, %p104
      %p107 = scmp.ne.s32.totalorder %s90, %s106
      %p108 = scmp.eq.s32.totalorder %s16, 0
      %p109 = por %p107, %p108
      %s110 = ssub.s32 %s17, %s29
      %p111 = scmp.eq.s32.totalorder %s110, 0
      %s113 = sadd.s32 %s112, 1
      %s114 = scalar_select %p111, %s112, %s113
      %p117 = pneg %p111
      %p118 = scmp.eq.s32.totalorder %s10, 2
      %p119 = por %p117, %p118
      %p120 = scmp.ne.s32.totalorder %s112, %s115
      %p121 = scmp.eq.s32.totalorder %s10, 0
      %p122 = por %p120, %p121
      %p123 = scmp.ne.s32.totalorder %s112, %s115
      %p124 = scmp.eq.s32.totalorder %s15, 2
      %p125 = por %p123, %p124
      %p126 = scmp.ne.s32.totalorder %s115, %s116
      %p127 = scmp.eq.s32.totalorder %s15, 0
      %p128 = por %p126, %p127
      %p129 = scmp.ne.s32.totalorder %s115, %s116
      %p130 = scmp.eq.s32.totalorder %s16, 2
      %p131 = por %p129, %p130
      %p133 = scmp.ne.s32.totalorder %s116, %s132
      %p134 = scmp.eq.s32.totalorder %s16, 0
      %p135 = por %p133, %p134
      %p136 = scmp.le.s32.totalorder 1, %s10
      %p137 = scmp.lt.s32.totalorder %s10, 4
      %p138 = pnand %p136, %p137
      %p139 = pneg %p138
      // Predicated region
      $region9: #{_lambda_.45} parent=5 // pred_check
        _
      $region10: #{_lambda_.45} parent=5 // pred_check_branch
        %141 = sbr.rel (%p138) target = $region12
      $region11: #{_lambda_.45} parent=5 // pred_region
        %s142 = ssub.s32 %s10, 1
      $region12: #{_lambda_.45} parent=5 // pred_fallthru
        _
      %p143 = scmp.lt.s32.totalorder %s10, 3
      // Predicated region
      $region13: #{_lambda_.45} parent=5 // pred_check
        %p144 = pneg %p143
      $region14: #{_lambda_.45} parent=5 // pred_check_branch
        %146 = sbr.rel (%p144) target = $region16
      $region15: #{_lambda_.45} parent=5 // pred_region
        // Predicated region
        $region17: #{_lambda_.45} parent=15 // pred_check
          %p147 = pneg %p44
        $region18: #{_lambda_.45} parent=15 // pred_check_branch
          %149 = sbr.rel (%p147) target = $region20
        $region19: #{_lambda_.45} parent=15 // pred_region
          %s150 = sand.u32 %s34, 1
          %s151 = sand.u32 %s34, 1
          %s152 = smul.addr %s151, 48
          %s153 = scalar_lea.vmem [#allocation3], %s152
          %s154 = smul.u32 4, %s17
          %s155 = smul.u32 3, %s18
          %s156 = smul.addr %s154, 9
          %s157 = sadd.s32 %s155, %s156
          %s158 = smul.addr %s157, 4
          %s159 = scalar_lea.vmem %s0, %s158
          // Predicated region
          $region21: #{_lambda_.45} parent=19 // pred_check
            _
          $region22: #{_lambda_.45} parent=19 // pred_check_branch
            %161 = sbr.rel (0) target = $region24
          $region23: #{_lambda_.45} parent=19 // pred_region
            // Predicated region
            $region25: #{_lambda_.45} parent=23 // pred_check
              _
            $region26: #{_lambda_.45} parent=23 // pred_check_branch
              %163 = sbr.rel (0) target = $region28
            $region27: #{_lambda_.45} parent=23 // pred_region
              %s164 = scalar_lea.vmem %s159, 8
              %s165 = scalar_lea.vmem %s153, 8 [#allocation3]
              loop: start=0, step=1, limit=1
              $region29: #{_lambda_.45} parent=27 // loop_pre_header
                _
              $region30: #{_lambda_.45} parent=27 // loop_header
                %s167 = sphi 0, %s171
                %p168 = scmp.ge.s32.totalorder %s167, 1
                %s172 = sphi %s159, %s159
                %s173 = sphi %s153, %s153
              $region31: #{_lambda_.45} parent=27 // loop_header_branch
                %170 = sbr.rel (%p168) target = $region35
              $region32: #{_lambda_.45} parent=27 // loop_body
                %v174 = vld [vmem:[%s172] sm:$0xff]
                %175 = vst [vmem:[%s173] sm:$0xff] %v174
                %v176 = vld [vmem:[%s172 + $0x24] sm:$0xff]
                %177 = vst [vmem:[%s173 + $0xc] sm:$0xff] %v176
                %v178 = vld [vmem:[%s172 + $0x48] sm:$0xff]
                %179 = vst [vmem:[%s173 + $0x18] sm:$0xff] %v178
                %v180 = vld [vmem:[%s172 + $0x6c] sm:$0xff]
                %181 = vst [vmem:[%s173 + $0x24] sm:$0xff] %v180
              $region33: #{_lambda_.45} parent=27 // loop_footer
                %s171 = sadd.s32 1, %s167
              $region34: #{_lambda_.45} parent=27 // loop_footer_branch
                %166 = sbr.rel target = $region30
              $region35: #{_lambda_.45} parent=27 // loop_exit
                _
              %s183 = ssub.s32 16, 1
              loop: start=0, step=1, limit=1
              $region36: #{_lambda_.45} parent=27 // loop_pre_header
                _
              $region37: #{_lambda_.45} parent=27 // loop_header
                %s185 = sphi 0, %s189
                %p186 = scmp.ge.s32.totalorder %s185, 1
                %s190 = sphi %s164, %s164
                %s191 = sphi %s165, %s165
              $region38: #{_lambda_.45} parent=27 // loop_header_branch
                %188 = sbr.rel (%p186) target = $region42
              $region39: #{_lambda_.45} parent=27 // loop_body
                %v192 = vld [vmem:[%s190] sm:%s183]
                %193 = vst [vmem:[%s191] sm:%s183] %v192
                %v194 = vld [vmem:[%s190 + $0x24] sm:%s183]
                %195 = vst [vmem:[%s191 + $0xc] sm:%s183] %v194
                %v196 = vld [vmem:[%s190 + $0x48] sm:%s183]
                %197 = vst [vmem:[%s191 + $0x18] sm:%s183] %v196
                %v198 = vld [vmem:[%s190 + $0x6c] sm:%s183]
                %199 = vst [vmem:[%s191 + $0x24] sm:%s183] %v198
              $region40: #{_lambda_.45} parent=27 // loop_footer
                %s189 = sadd.s32 1, %s185
              $region41: #{_lambda_.45} parent=27 // loop_footer_branch
                %184 = sbr.rel target = $region37
              $region42: #{_lambda_.45} parent=27 // loop_exit
                _
            $region28: #{_lambda_.45} parent=23 // pred_fallthru
              _
          $region24: #{_lambda_.45} parent=19 // pred_fallthru
            _
          %200 = vnop
        $region20: #{_lambda_.45} parent=15 // pred_fallthru
          _
        // Predicated region
        $region43: #{_lambda_.45} parent=15 // pred_check
          %p201 = pneg %p70
        $region44: #{_lambda_.45} parent=15 // pred_check_branch
          %203 = sbr.rel (%p201) target = $region46
        $region45: #{_lambda_.45} parent=15 // pred_region
          %s204 = smul.u32 48, %s18
          %p205 = scmp.lt.s32.totalorder %s204, 143
          %s206 = scalar_select %p205, %s204, 143
          %s207 = smul.addr %s206, 4
          %s208 = scalar_lea.vmem %s1, %s207
          %s209 = smul.u32 48, %s18
        $region46: #{_lambda_.45} parent=15 // pred_fallthru
          _
      $region16: #{_lambda_.45} parent=5 // pred_fallthru
        _
      %p210 = scmp.le.s32.totalorder 1, %s10
      %p211 = scmp.lt.s32.totalorder %s10, 4
      %p212 = pnand %p210, %p211
      %p213 = pneg %p212
      // Predicated region
      $region47: #{_lambda_.45} parent=5 // pred_check
        _
      $region48: #{_lambda_.45} parent=5 // pred_check_branch
        %215 = sbr.rel (%p212) target = $region50
      $region49: #{_lambda_.45} parent=5 // pred_region
        %s216 = ssub.s32 %s10, 1
        %s217 = sand.u32 %s37, 1
        %s218 = sand.u32 %s37, 1
        %s219 = smul.addr %s218, 48
        %s220 = scalar_lea.vmem [#allocation3], %s219
        // Predicated region
        $region51: #{_lambda_.45} parent=49 // pred_check
          %p221 = pneg %p50
        $region52: #{_lambda_.45} parent=49 // pred_check_branch
          %223 = sbr.rel (%p221) target = $region54
        $region53: #{_lambda_.45} parent=49 // pred_region
          _
        $region54: #{_lambda_.45} parent=49 // pred_fallthru
          _
        %s224 = sand.u32 %s37, 1
        %s225 = sand.u32 %s37, 1
        %s226 = smul.addr %s225, 48
        %s227 = scalar_lea.vmem [#allocation3], %s226
        %p228 = pneg %p50
        %p229 = pneg %p47
        %s230 = smul.u32 48, %s20
        %p231 = scmp.lt.s32.totalorder %s230, 143
        %s232 = scalar_select %p231, %s230, 143
        %s233 = smul.addr %s232, 4
        %s234 = scalar_lea.vmem %s1, %s233
        %p235 = pneg %p76
        %p236 = pneg %p73
        %p237 = pneg %p102
        %p238 = pneg %p99
        %s239 = smul.u32 4, %s19
        %p240 = scmp.lt.s32.totalorder %s239, 3
        %s241 = scalar_select %p240, %s239, 3
        %s242 = smul.addr %s241, 8
        %s243 = scalar_lea.vmem %s2, %s242
        %p244 = pneg %p128
        %p245 = pneg %p125
        %p246 = scmp.lt.s32.totalorder %s19, 0
        %s247 = scalar_select %p246, %s19, 0
        %s248 = smul.addr %s247, 2
        %s249 = scalar_lea.vmem %s3, %s248
        %s250 = smul.u32 4, %s19
        %s251 = smul.u32 3, %s20
        %s252 = smul.u32 48, %s20
        %p253 = scmp.lt.s32.totalorder %s252, 143
        %s254 = scalar_select %p253, %s252, 143
        %s255 = smul.addr %s254, 4
        %s256 = scalar_lea.vmem %s1, %s255
        %s257 = smul.u32 48, %s20
        %s258 = smul.u32 4, %s19
        %p259 = scmp.lt.s32.totalorder %s258, 3
        %s260 = scalar_select %p259, %s258, 3
        %s261 = smul.addr %s260, 8
        %s262 = scalar_lea.vmem %s2, %s261
        %s263 = smul.u32 4, %s19
        %p264 = scmp.lt.s32.totalorder %s19, 0
        %s265 = scalar_select %p264, %s19, 0
        %s266 = smul.addr %s265, 2
        %s267 = scalar_lea.vmem %s3, %s266
        %p268 = scmp.eq.s32.totalorder %s20, 0
        // Predicated region
        $region55: #{_lambda_.45} parent=49 // pred_check
          %p269 = pneg %p268
        $region56: #{_lambda_.45} parent=49 // pred_check_branch
          %271 = sbr.rel (%p269) target = $region58
        $region57: #{_lambda_.45} parent=49 // pred_region
          %272 = vst [vmem:[#allocation2] sm:$0xff] 0.0
          %273 = vst [vmem:[#allocation2 + $0x8] sm:$0xff] 0.0
          %274 = vst [vmem:[#allocation2 + $0x10] sm:$0xff] 0.0
          %275 = vst [vmem:[#allocation2 + $0x18] sm:$0xff] 0.0
        $region58: #{_lambda_.45} parent=49 // pred_fallthru
          _
        %v276 = vld [vmem:[#allocation2] sm:$0xff]
        %v277 = vld [vmem:[#allocation2 + $0x8] sm:$0xff]
        %v278 = vld [vmem:[#allocation2 + $0x10] sm:$0xff]
        %v279 = vld [vmem:[#allocation2 + $0x18] sm:$0xff]
        %v280 = vld [vmem:[%s220] sm:$0xff]
        %v281 = vld [vmem:[%s220 + $0x8] sm:$0xf]
        %v282 = vld [vmem:[%s220 + $0xc] sm:$0xff]
        %v283 = vld [vmem:[%s220 + $0x14] sm:$0xf]
        %v284 = vld [vmem:[%s220 + $0x18] sm:$0xff]
        %v285 = vld [vmem:[%s220 + $0x20] sm:$0xf]
        %v286 = vld [vmem:[%s220 + $0x24] sm:$0xff]
        %v287 = vld [vmem:[%s220 + $0x2c] sm:$0xf]
        %v288 = vld [vmem:[%s256] sm:$0xf]
        %v289 = vld [vmem:[%s256 + $0x4] sm:$0xf]
        %v290 = vld [vmem:[%s256 + $0x8] sm:$0xf]
        %v291 = vld [vmem:[%s256 + $0xc] sm:$0xf]
        %v292 = vld [vmem:[%s256 + $0x10] sm:$0xf]
        %v293 = vld [vmem:[%s256 + $0x14] sm:$0xf]
        %v294 = vld [vmem:[%s256 + $0x18] sm:$0xf]
        %v295 = vld [vmem:[%s256 + $0x1c] sm:$0xf]
        %v296 = vld [vmem:[%s256 + $0x20] sm:$0xf]
        %v297 = vld [vmem:[%s256 + $0x24] sm:$0xf]
        %v298 = vld [vmem:[%s256 + $0x28] sm:$0xf]
        %v299 = vld [vmem:[%s256 + $0x2c] sm:$0xf]
        %v300 = vld [vmem:[%s256 + $0x30] sm:$0xf]
        %v301 = vld [vmem:[%s256 + $0x34] sm:$0xf]
        %v302 = vld [vmem:[%s256 + $0x38] sm:$0xf]
        %v303 = vld [vmem:[%s256 + $0x3c] sm:$0xf]
        %v304 = vld [vmem:[%s256 + $0x40] sm:$0xf]
        %v305 = vld [vmem:[%s256 + $0x44] sm:$0xf]
        %v306 = vld [vmem:[%s256 + $0x48] sm:$0xf]
        %v307 = vld [vmem:[%s256 + $0x4c] sm:$0xf]
        %v308 = vld [vmem:[%s256 + $0x50] sm:$0xf]
        %v309 = vld [vmem:[%s256 + $0x54] sm:$0xf]
        %v310 = vld [vmem:[%s256 + $0x58] sm:$0xf]
        %v311 = vld [vmem:[%s256 + $0x5c] sm:$0xf]
        %v312 = vld [vmem:[%s256 + $0x60] sm:$0xf]
        %v313 = vld [vmem:[%s256 + $0x64] sm:$0xf]
        %v314 = vld [vmem:[%s256 + $0x68] sm:$0xf]
        %v315 = vld [vmem:[%s256 + $0x6c] sm:$0xf]
        %v316 = vld [vmem:[%s256 + $0x70] sm:$0xf]
        %v317 = vld [vmem:[%s256 + $0x74] sm:$0xf]
        %v318 = vld [vmem:[%s256 + $0x78] sm:$0xf]
        %v319 = vld [vmem:[%s256 + $0x7c] sm:$0xf]
        %v320 = vld [vmem:[%s256 + $0x80] sm:$0xf]
        %v321 = vld [vmem:[%s256 + $0x84] sm:$0xf]
        %v322 = vld [vmem:[%s256 + $0x88] sm:$0xf]
        %v323 = vld [vmem:[%s256 + $0x8c] sm:$0xf]
        %v324 = vld [vmem:[%s256 + $0x90] sm:$0xf]
        %v325 = vld [vmem:[%s256 + $0x94] sm:$0xf]
        %v326 = vld [vmem:[%s256 + $0x98] sm:$0xf]
        %v327 = vld [vmem:[%s256 + $0x9c] sm:$0xf]
        %v328 = vld [vmem:[%s256 + $0xa0] sm:$0xf]
        %v329 = vld [vmem:[%s256 + $0xa4] sm:$0xf]
        %v330 = vld [vmem:[%s256 + $0xa8] sm:$0xf]
        %v331 = vld [vmem:[%s256 + $0xac] sm:$0xf]
        %v332 = vld [vmem:[%s256 + $0xb0] sm:$0xf]
        %v333 = vld [vmem:[%s256 + $0xb4] sm:$0xf]
        %v334 = vld [vmem:[%s256 + $0xb8] sm:$0xf]
        %v335 = vld [vmem:[%s256 + $0xbc] sm:$0xf]
        %v344 = vunpack.c.l.b16 %v280
        %v345 = vunpack.c.h.b16 %v280
        %v346 = vunpack.c.l.b16 %v281
        %v347 = vunpack.c.l.b16 %v282
        %v348 = vunpack.c.h.b16 %v282
        %v349 = vunpack.c.l.b16 %v283
        %v350 = vunpack.c.l.b16 %v284
        %v351 = vunpack.c.h.b16 %v284
        %v352 = vunpack.c.l.b16 %v285
        %v353 = vunpack.c.l.b16 %v286
        %v354 = vunpack.c.h.b16 %v286
        %v355 = vunpack.c.l.b16 %v287
        %v356 = vpack.c.b16 %v347, %v344
        %v357 = vpack.c.b16 %v348, %v345
        %v358 = vpack.c.b16 %v349, %v346
        %v359 = vpack.c.b16 %v353, %v350
        %v360 = vpack.c.b16 %v354, %v351
        %v361 = vpack.c.b16 %v355, %v352
        %v416 = vunpack.c.l.b16 %v288
        %v417 = vunpack.c.l.b16 %v289
        %v418 = vunpack.c.l.b16 %v290
        %v419 = vunpack.c.l.b16 %v291
        %v420 = vunpack.c.l.b16 %v292
        %v421 = vunpack.c.l.b16 %v293
        %v422 = vunpack.c.l.b16 %v294
        %v423 = vunpack.c.l.b16 %v295
        %v424 = vunpack.c.l.b16 %v296
        %v425 = vunpack.c.l.b16 %v297
        %v426 = vunpack.c.l.b16 %v298
        %v427 = vunpack.c.l.b16 %v299
        %v428 = vunpack.c.l.b16 %v300
        %v429 = vunpack.c.l.b16 %v301
        %v430 = vunpack.c.l.b16 %v302
        %v431 = vunpack.c.l.b16 %v303
        %v432 = vunpack.c.l.b16 %v304
        %v433 = vunpack.c.l.b16 %v305
        %v434 = vunpack.c.l.b16 %v306
        %v435 = vunpack.c.l.b16 %v307
        %v436 = vunpack.c.l.b16 %v308
        %v437 = vunpack.c.l.b16 %v309
        %v438 = vunpack.c.l.b16 %v310
        %v439 = vunpack.c.l.b16 %v311
        %v440 = vunpack.c.l.b16 %v312
        %v441 = vunpack.c.l.b16 %v313
        %v442 = vunpack.c.l.b16 %v314
        %v443 = vunpack.c.l.b16 %v315
        %v444 = vunpack.c.l.b16 %v316
        %v445 = vunpack.c.l.b16 %v317
        %v446 = vunpack.c.l.b16 %v318
        %v447 = vunpack.c.l.b16 %v319
        %v448 = vunpack.c.l.b16 %v320
        %v449 = vunpack.c.l.b16 %v321
        %v450 = vunpack.c.l.b16 %v322
        %v451 = vunpack.c.l.b16 %v323
        %v452 = vunpack.c.l.b16 %v324
        %v453 = vunpack.c.l.b16 %v325
        %v454 = vunpack.c.l.b16 %v326
        %v455 = vunpack.c.l.b16 %v327
        %v456 = vunpack.c.l.b16 %v328
        %v457 = vunpack.c.l.b16 %v329
        %v458 = vunpack.c.l.b16 %v330
        %v459 = vunpack.c.l.b16 %v331
        %v460 = vunpack.c.l.b16 %v332
        %v461 = vunpack.c.l.b16 %v333
        %v462 = vunpack.c.l.b16 %v334
        %v463 = vunpack.c.l.b16 %v335
        %v464 = vpack.c.b16 %v417, %v416
        %v465 = vpack.c.b16 %v419, %v418
        %v466 = vpack.c.b16 %v421, %v420
        %v467 = vpack.c.b16 %v423, %v422
        %v468 = vpack.c.b16 %v425, %v424
        %v469 = vpack.c.b16 %v427, %v426
        %v470 = vpack.c.b16 %v429, %v428
        %v471 = vpack.c.b16 %v431, %v430
        %v472 = vpack.c.b16 %v433, %v432
        %v473 = vpack.c.b16 %v435, %v434
        %v474 = vpack.c.b16 %v437, %v436
        %v475 = vpack.c.b16 %v439, %v438
        %v476 = vpack.c.b16 %v441, %v440
        %v477 = vpack.c.b16 %v443, %v442
        %v478 = vpack.c.b16 %v445, %v444
        %v479 = vpack.c.b16 %v447, %v446
        %v480 = vpack.c.b16 %v449, %v448
        %v481 = vpack.c.b16 %v451, %v450
        %v482 = vpack.c.b16 %v453, %v452
        %v483 = vpack.c.b16 %v455, %v454
        %v484 = vpack.c.b16 %v457, %v456
        %v485 = vpack.c.b16 %v459, %v458
        %v486 = vpack.c.b16 %v461, %v460
        %v487 = vpack.c.b16 %v463, %v462
        %512 = vmatpush.bf16.msra.mxu0 %v471
        %513 = vmatpush.bf16.msra.mxu0 %v470
        %514 = vmatpush.bf16.msra.mxu0 %v469
        %515 = vmatpush.bf16.msra.mxu0 %v468
        %516 = vmatpush.bf16.msra.mxu0 %v467
        %517 = vmatpush.bf16.msra.mxu0 %v466
        %518 = vmatpush.bf16.msra.mxu0 %v465
        %519 = vmatpush.bf16.msra.mxu0 %v464
        %520 = vmatmul.bf16.gmra.mxu0 %v356
        %v521 = vpop.f32.mrf.mxu0
        %v522 = vadd.f32 0.0, %v521
        %v523 = vpop.f32.mrf.mxu0
        %v524 = vadd.f32 0.0, %v523
        %525 = vmatmul.bf16.gmra.mxu0 %v359
        %v526 = vpop.f32.mrf.mxu0
        %v527 = vadd.f32 0.0, %v526
        %v528 = vpop.f32.mrf.mxu0
        %v529 = vadd.f32 0.0, %v528
        %530 = vdwg.mxu0
        %531 = vmatpush.bf16.msra.mxu0 %v479
        %532 = vmatpush.bf16.msra.mxu0 %v478
        %533 = vmatpush.bf16.msra.mxu0 %v477
        %534 = vmatpush.bf16.msra.mxu0 %v476
        %535 = vmatpush.bf16.msra.mxu0 %v475
        %536 = vmatpush.bf16.msra.mxu0 %v474
        %537 = vmatpush.bf16.msra.mxu0 %v473
        %538 = vmatpush.bf16.msra.mxu0 %v472
        %539 = vmatmul.bf16.gmra.mxu0 %v357
        %v540 = vpop.f32.mrf.mxu0
        %v541 = vadd.f32 %v522, %v540
        %v542 = vpop.f32.mrf.mxu0
        %v543 = vadd.f32 %v524, %v542
        %544 = vmatmul.bf16.gmra.mxu0 %v360
        %v545 = vpop.f32.mrf.mxu0
        %v546 = vadd.f32 %v527, %v545
        %v547 = vpop.f32.mrf.mxu0
        %v548 = vadd.f32 %v529, %v547
        %549 = vdwg.mxu0
        %550 = vmatpush.bf16.msra.mxu0 %v487
        %551 = vmatpush.bf16.msra.mxu0 %v486
        %552 = vmatpush.bf16.msra.mxu0 %v485
        %553 = vmatpush.bf16.msra.mxu0 %v484
        %554 = vmatpush.bf16.msra.mxu0 %v483
        %555 = vmatpush.bf16.msra.mxu0 %v482
        %556 = vmatpush.bf16.msra.mxu0 %v481
        %557 = vmatpush.bf16.msra.mxu0 %v480
        %558 = vmatmul.bf16.gmra.mxu0 %v358
        %v559 = vpop.f32.mrf.mxu0
        %v560 = vadd.f32 %v541, %v559
        %v561 = vpop.f32.mrf.mxu0
        %v562 = vadd.f32 %v543, %v561
        %563 = vmatmul.bf16.gmra.mxu0 %v361
        %v564 = vpop.f32.mrf.mxu0
        %v565 = vadd.f32 %v546, %v564
        %v566 = vpop.f32.mrf.mxu0
        %v567 = vadd.f32 %v548, %v566
        %568 = vdwg.mxu0
        %v569 = vadd.f32 %v276, %v560
        %v570 = vadd.f32 %v277, %v562
        %v571 = vadd.f32 %v278, %v565
        %v572 = vadd.f32 %v279, %v567
        %573 = vst [vmem:[#allocation2] sm:$0xff] %v569
        %574 = vst [vmem:[#allocation2 + $0x8] sm:$0xff] %v570
        %575 = vst [vmem:[#allocation2 + $0x10] sm:$0xff] %v571
        %576 = vst [vmem:[#allocation2 + $0x18] sm:$0xff] %v572
        %p577 = scmp.eq.s32.totalorder %s20, 2
        // Predicated region
        $region59: #{_lambda_.45} parent=49 // pred_check
          %p578 = pneg %p577
        $region60: #{_lambda_.45} parent=49 // pred_check_branch
          %580 = sbr.rel (%p578) target = $region62
        $region61: #{_lambda_.45} parent=49 // pred_region
          %v581 = vld [vmem:[#allocation2] sm:$0xff]
          %v582 = vld [vmem:[#allocation2 + $0x8] sm:$0xff]
          %v583 = vld [vmem:[#allocation2 + $0x10] sm:$0xff]
          %v584 = vld [vmem:[#allocation2 + $0x18] sm:$0xff]
          %585 = vst [vmem:[%s262] sm:$0xff] %v581
          %586 = vst [vmem:[%s262 + $0x8] sm:$0xff] %v582
          %587 = vst [vmem:[%s262 + $0x10] sm:$0xff] %v583
          %588 = vst [vmem:[%s262 + $0x18] sm:$0xff] %v584
          %v589 = vadd.f32 %v581, %v582
          %v590 = vadd.f32 %v589, %v583
          %v591 = vadd.f32 %v590, %v584
          %v592 = vrot.slane %v591, 4
          %v593 = vadd.f32 %v591, %v592
          %v594 = vrot.slane %v593, 2
          %v595 = vadd.f32 %v593, %v594
          %v596 = vrot.slane %v595, 1
          %v597 = vadd.f32 %v595, %v596
          %598 = vst [vmem:[%s267] sm:$0x1] %v597
          %v599 = vmul.f32 %v581, %v581
          %v600 = vmul.f32 %v582, %v582
          %v601 = vmul.f32 %v583, %v583
          %v602 = vmul.f32 %v584, %v584
          %v603 = vadd.f32 %v599, %v600
          %v604 = vadd.f32 %v603, %v601
          %v605 = vadd.f32 %v604, %v602
          %v606 = vrot.slane %v605, 4
          %v607 = vadd.f32 %v605, %v606
          %v608 = vrot.slane %v607, 2
          %v609 = vadd.f32 %v607, %v608
          %v610 = vrot.slane %v609, 1
          %v611 = vadd.f32 %v609, %v610
          %612 = vst [vmem:[%s267 + $0x1] sm:$0x1] %v611
        $region62: #{_lambda_.45} parent=49 // pred_fallthru
          _
        %s613 = smul.u32 4, %s19
        %p614 = scmp.lt.s32.totalorder %s613, 3
        %s615 = scalar_select %p614, %s613, 3
        %s616 = smul.addr %s615, 8
        %s617 = scalar_lea.vmem %s2, %s616
        %p618 = scmp.lt.s32.totalorder %s19, 0
        %s619 = scalar_select %p618, %s19, 0
        %s620 = smul.addr %s619, 2
        %s621 = scalar_lea.vmem %s3, %s620
        // Predicated region
        $region63: #{_lambda_.45} parent=49 // pred_check
          %p622 = pneg %p99
        $region64: #{_lambda_.45} parent=49 // pred_check_branch
          %624 = sbr.rel (%p622) target = $region66
        $region65: #{_lambda_.45} parent=49 // pred_region
          %s625 = smul.u32 4, %s19
        $region66: #{_lambda_.45} parent=49 // pred_fallthru
          _
        // Predicated region
        $region67: #{_lambda_.45} parent=49 // pred_check
          %p626 = pneg %p125
        $region68: #{_lambda_.45} parent=49 // pred_check_branch
          %628 = sbr.rel (%p626) target = $region70
        $region69: #{_lambda_.45} parent=49 // pred_region
          _
        $region70: #{_lambda_.45} parent=49 // pred_fallthru
          _
        // Predicated region
        $region71: #{_lambda_.45} parent=49 // pred_check
          %p629 = pneg %p99
        $region72: #{_lambda_.45} parent=49 // pred_check_branch
          %631 = sbr.rel (%p629) target = $region74
        $region73: #{_lambda_.45} parent=49 // pred_region
          %s632 = smul.u32 4, %s19
          %p633 = scmp.lt.s32.totalorder %s632, 3
          %s634 = scalar_select %p633, %s632, 3
          %s635 = smul.addr %s634, 8
          %s636 = scalar_lea.vmem %s2, %s635
        $region74: #{_lambda_.45} parent=49 // pred_fallthru
          _
        // Predicated region
        $region75: #{_lambda_.45} parent=49 // pred_check
          %p637 = pneg %p125
        $region76: #{_lambda_.45} parent=49 // pred_check_branch
          %639 = sbr.rel (%p637) target = $region78
        $region77: #{_lambda_.45} parent=49 // pred_region
          %p640 = scmp.lt.s32.totalorder %s19, 0
          %s641 = scalar_select %p640, %s19, 0
          %s642 = smul.addr %s641, 2
          %s643 = scalar_lea.vmem %s3, %s642
        $region78: #{_lambda_.45} parent=49 // pred_fallthru
          _
      $region50: #{_lambda_.45} parent=5 // pred_fallthru
        _
      %p644 = scmp.le.s32.totalorder 2, %s10
      // Predicated region
      $region79: #{_lambda_.45} parent=5 // pred_check
        %p645 = pneg %p644
      $region80: #{_lambda_.45} parent=5 // pred_check_branch
        %647 = sbr.rel (%p645) target = $region82
      $region81: #{_lambda_.45} parent=5 // pred_region
        %s648 = ssub.s32 %s10, 2
      $region82: #{_lambda_.45} parent=5 // pred_fallthru
        _
    $region6: #{_lambda_.45} parent=1 // loop_footer
      %s14 = sadd.s32 1, %s10
    $region7: #{_lambda_.45} parent=1 // loop_footer_branch
      %9 = sbr.rel target = $region3
    $region8: #{_lambda_.45} parent=1 // loop_exit
      _

// kernel: _lambda_.46
$region0: #{_lambda_.46}
  #allocation0 [shape = 'u32[]', space=smem, size = 0x4, offset = 0x4, fixed_abs, tag = 'smem constant byte address 0x4 - core index']
  #allocation1 [shape = 'u32[72,128]{1,0:T(1,128)}', space=vmem, size = 0x9000, scoped, tag = 'internal scratch']
  %s0 = inlined_call_operand.vmem [shape: f32[32,128], index: 0, kind: input, shape index: {}]
  %s1 = inlined_call_operand.vmem [shape: f32[2,128], index: 1, kind: input, shape index: {}]
  %s2 = inlined_call_operand.vmem [shape: f32[1,128], index: 2, kind: input, shape index: {}]
  %s3 = inlined_call_operand.vmem [shape: f32[1,128], index: 3, kind: input, shape index: {}]
  %s4 = inlined_call_operand.vmem [shape: f32[32,128], index: 4, kind: output, shape index: {}]
  %s5 = sld [smem:[#allocation0]]
  $region26: #{_lambda_.46} parent=0
    _
  %s7 = ssub.s32 1, %s5
  %s8 = scalar_select 0, %s7, %s5
  // Predicated region
  $region2: #{_lambda_.46} parent=0 // pred_check
    _
  $region3: #{_lambda_.46} parent=0 // pred_check_branch
    %10 = sbr.rel (0) target = $region5
  $region4: #{_lambda_.46} parent=0 // pred_region
    _
  $region5: #{_lambda_.46} parent=0 // pred_fallthru
    _
  // Predicated region
  $region6: #{_lambda_.46} parent=0 // pred_check
    _
  $region7: #{_lambda_.46} parent=0 // pred_check_branch
    %12 = sbr.rel (0) target = $region9
  $region8: #{_lambda_.46} parent=0 // pred_region
    _
  $region9: #{_lambda_.46} parent=0 // pred_fallthru
    _
  // Predicated region
  $region10: #{_lambda_.46} parent=0 // pred_check
    _
  $region11: #{_lambda_.46} parent=0 // pred_check_branch
    %14 = sbr.rel (0) target = $region13
  $region12: #{_lambda_.46} parent=0 // pred_region
    _
  $region13: #{_lambda_.46} parent=0 // pred_fallthru
    _
  // Predicated region
  $region14: #{_lambda_.46} parent=0 // pred_check
    _
  $region15: #{_lambda_.46} parent=0 // pred_check_branch
    %16 = sbr.rel (0) target = $region17
  $region16: #{_lambda_.46} parent=0 // pred_region
    _
  $region17: #{_lambda_.46} parent=0 // pred_fallthru
    _
  %v17 = vld [vmem:[%s1] sm:$0x1]
  %v18 = vmul.f32 %v17, 0.03125
  %v19 = vld [vmem:[%s1 + $0x1] sm:$0x1]
  %v20 = vmul.f32 %v19, 0.03125
  %v21 = vmul.f32 %v18, %v18
  %v22 = vsub.f32 %v20, %v21
  %v23 = vmax.f32 %v22, 0.0
  %v24 = vld [vmem:[%s2] sm:$0x1]
  %v25 = vadd.f32 %v23, 1e-05
  %v26 = vrsqrt.pop %v25
  %v27 = vmul.f32 %v26, %v25
  %v28 = vmul.f32 %v27, %v26
  %v29 = vmul.f32 0.5, %v28
  %v30 = vsub.f32 1.5, %v29
  %v31 = vmul.f32 %v26, %v30
  %vm32 = vweird.f32 %v25
  %vm33 = vweird.f32 %v26
  %vm34 = vmor %vm32, %vm33
  %v35 = vsel %vm34, %v26, %v31
  %v36 = vmul.f32 %v24, %v35
  %v37 = vld [vmem:[%s3] sm:$0x1]
  %v38 = vmul.f32 %v18, %v36
  %v39 = vsub.f32 %v37, %v38
  %v40 = vld [vmem:[%s0] sm:$0xff]
  %v41 = vld [vmem:[%s0 + $0x8] sm:$0xff]
  %v42 = vld [vmem:[%s0 + $0x10] sm:$0xff]
  %v43 = vld [vmem:[%s0 + $0x18] sm:$0xff]
  %v45 = vperm.slane %v36, 0
  %v47 = vmul.f32 %v40, %v45
  %v48 = vmul.f32 %v41, %v45
  %v49 = vmul.f32 %v42, %v45
  %v50 = vmul.f32 %v43, %v45
  %v52 = vperm.slane %v39, 0
  %v54 = vadd.f32 %v47, %v52
  %v55 = vadd.f32 %v48, %v52
  %v56 = vadd.f32 %v49, %v52
  %v57 = vadd.f32 %v50, %v52
  %v58 = vmax.f32 %v54, 0.0
  %v59 = vmax.f32 %v55, 0.0
  %v60 = vmax.f32 %v56, 0.0
  %v61 = vmax.f32 %v57, 0.0
  %62 = vst [vmem:[%s4] sm:$0xff] %v58
  %63 = vst [vmem:[%s4 + $0x8] sm:$0xff] %v59
  %64 = vst [vmem:[%s4 + $0x10] sm:$0xff] %v60
  %65 = vst [vmem:[%s4 + $0x18] sm:$0xff] %v61
  // Predicated region
  $region18: #{_lambda_.46} parent=0 // pred_check
    _
  $region19: #{_lambda_.46} parent=0 // pred_check_branch
    %67 = sbr.rel (0) target = $region21
  $region20: #{_lambda_.46} parent=0 // pred_region
    _
  $region21: #{_lambda_.46} parent=0 // pred_fallthru
    _
  // Predicated region
  $region22: #{_lambda_.46} parent=0 // pred_check
    _
  $region23: #{_lambda_.46} parent=0 // pred_check_branch
    %69 = sbr.rel (0) target = $region25
  $region24: #{_lambda_.46} parent=0 // pred_region
    _
  $region25: #{_lambda_.46} parent=0 // pred_fallthru
    _

// kernel: _lambda_.48
$region0: #{_lambda_.48}
  #allocation0 [shape = 'u32[]', space=smem, size = 0x4, offset = 0x4, fixed_abs, tag = 'smem constant byte address 0x4 - core index']
  #allocation1 [shape = 'u32[72,128]{1,0:T(1,128)}', space=vmem, size = 0x9000, scoped, tag = 'internal scratch']
  %s0 = inlined_call_operand.vmem [shape: f32[32,128], index: 0, kind: input, shape index: {}]
  %s1 = inlined_call_operand.vmem [shape: f32[2,128], index: 1, kind: input, shape index: {}]
  %s2 = inlined_call_operand.vmem [shape: f32[1,128], index: 2, kind: input, shape index: {}]
  %s3 = inlined_call_operand.vmem [shape: f32[1,128], index: 3, kind: input, shape index: {}]
  %s4 = inlined_call_operand.vmem [shape: f32[32,128], index: 4, kind: input, shape index: {}, may-alias: {4,5}]
  %s5 = inlined_call_operand.vmem [shape: f32[32,128], index: 5, kind: output, shape index: {}, may-alias: {4,5}]
  %s6 = sld [smem:[#allocation0]]
  $region30: #{_lambda_.48} parent=0
    _
  %s8 = ssub.s32 1, %s6
  %s9 = scalar_select 0, %s8, %s6
  // Predicated region
  $region2: #{_lambda_.48} parent=0 // pred_check
    _
  $region3: #{_lambda_.48} parent=0 // pred_check_branch
    %11 = sbr.rel (0) target = $region5
  $region4: #{_lambda_.48} parent=0 // pred_region
    _
  $region5: #{_lambda_.48} parent=0 // pred_fallthru
    _
  // Predicated region
  $region6: #{_lambda_.48} parent=0 // pred_check
    _
  $region7: #{_lambda_.48} parent=0 // pred_check_branch
    %13 = sbr.rel (0) target = $region9
  $region8: #{_lambda_.48} parent=0 // pred_region
    _
  $region9: #{_lambda_.48} parent=0 // pred_fallthru
    _
  // Predicated region
  $region10: #{_lambda_.48} parent=0 // pred_check
    _
  $region11: #{_lambda_.48} parent=0 // pred_check_branch
    %15 = sbr.rel (0) target = $region13
  $region12: #{_lambda_.48} parent=0 // pred_region
    _
  $region13: #{_lambda_.48} parent=0 // pred_fallthru
    _
  // Predicated region
  $region14: #{_lambda_.48} parent=0 // pred_check
    _
  $region15: #{_lambda_.48} parent=0 // pred_check_branch
    %17 = sbr.rel (0) target = $region17
  $region16: #{_lambda_.48} parent=0 // pred_region
    _
  $region17: #{_lambda_.48} parent=0 // pred_fallthru
    _
  // Predicated region
  $region18: #{_lambda_.48} parent=0 // pred_check
    _
  $region19: #{_lambda_.48} parent=0 // pred_check_branch
    %19 = sbr.rel (0) target = $region21
  $region20: #{_lambda_.48} parent=0 // pred_region
    _
  $region21: #{_lambda_.48} parent=0 // pred_fallthru
    _
  %v20 = vld [vmem:[%s1] sm:$0x1]
  %v21 = vmul.f32 %v20, 0.03125
  %v22 = vld [vmem:[%s1 + $0x1] sm:$0x1]
  %v23 = vmul.f32 %v22, 0.03125
  %v24 = vmul.f32 %v21, %v21
  %v25 = vsub.f32 %v23, %v24
  %v26 = vmax.f32 %v25, 0.0
  %v27 = vld [vmem:[%s2] sm:$0x1]
  %v28 = vadd.f32 %v26, 1e-05
  %v29 = vrsqrt.pop %v28
  %v30 = vmul.f32 %v29, %v28
  %v31 = vmul.f32 %v30, %v29
  %v32 = vmul.f32 0.5, %v31
  %v33 = vsub.f32 1.5, %v32
  %v34 = vmul.f32 %v29, %v33
  %vm35 = vweird.f32 %v28
  %vm36 = vweird.f32 %v29
  %vm37 = vmor %vm35, %vm36
  %v38 = vsel %vm37, %v29, %v34
  %v39 = vmul.f32 %v27, %v38
  %v40 = vld [vmem:[%s3] sm:$0x1]
  %v41 = vmul.f32 %v21, %v39
  %v42 = vsub.f32 %v40, %v41
  %v43 = vld [vmem:[%s0] sm:$0xff]
  %v44 = vld [vmem:[%s0 + $0x8] sm:$0xff]
  %v45 = vld [vmem:[%s0 + $0x10] sm:$0xff]
  %v46 = vld [vmem:[%s0 + $0x18] sm:$0xff]
  %v48 = vperm.slane %v39, 0
  %v50 = vmul.f32 %v43, %v48
  %v51 = vmul.f32 %v44, %v48
  %v52 = vmul.f32 %v45, %v48
  %v53 = vmul.f32 %v46, %v48
  %v55 = vperm.slane %v42, 0
  %v57 = vadd.f32 %v50, %v55
  %v58 = vadd.f32 %v51, %v55
  %v59 = vadd.f32 %v52, %v55
  %v60 = vadd.f32 %v53, %v55
  %v61 = vld [vmem:[%s4] sm:$0xff]
  %v62 = vld [vmem:[%s4 + $0x8] sm:$0xff]
  %v63 = vld [vmem:[%s4 + $0x10] sm:$0xff]
  %v64 = vld [vmem:[%s4 + $0x18] sm:$0xff]
  %v65 = vadd.f32 %v57, %v61
  %v66 = vadd.f32 %v58, %v62
  %v67 = vadd.f32 %v59, %v63
  %v68 = vadd.f32 %v60, %v64
  %v69 = vmax.f32 %v65, 0.0
  %v70 = vmax.f32 %v66, 0.0
  %v71 = vmax.f32 %v67, 0.0
  %v72 = vmax.f32 %v68, 0.0
  %73 = vst [vmem:[%s5] sm:$0xff] %v69
  %74 = vst [vmem:[%s5 + $0x8] sm:$0xff] %v70
  %75 = vst [vmem:[%s5 + $0x10] sm:$0xff] %v71
  %76 = vst [vmem:[%s5 + $0x18] sm:$0xff] %v72
  // Predicated region
  $region22: #{_lambda_.48} parent=0 // pred_check
    _
  $region23: #{_lambda_.48} parent=0 // pred_check_branch
    %78 = sbr.rel (0) target = $region25
  $region24: #{_lambda_.48} parent=0 // pred_region
    _
  $region25: #{_lambda_.48} parent=0 // pred_fallthru
    _
  // Predicated region
  $region26: #{_lambda_.48} parent=0 // pred_check
    _
  $region27: #{_lambda_.48} parent=0 // pred_check_branch
    %80 = sbr.rel (0) target = $region29
  $region28: #{_lambda_.48} parent=0 // pred_region
    _
  $region29: #{_lambda_.48} parent=0 // pred_fallthru
    _

// kernel: _lambda_.54
$region0: #{_lambda_.54}
  #allocation0 [shape = 'u32[]', space=smem, size = 0x4, offset = 0x4, fixed_abs, tag = 'smem constant byte address 0x4 - core index']
  #allocation1 [shape = 'u32[72,128]{1,0:T(1,128)}', space=vmem, size = 0x9000, scoped, tag = 'internal scratch']
  %s0 = inlined_call_operand.vmem [shape: f32[8,128], index: 0, kind: input, shape index: {}]
  %s1 = inlined_call_operand.vmem [shape: f32[2,128], index: 1, kind: input, shape index: {}]
  %s2 = inlined_call_operand.vmem [shape: f32[1,128], index: 2, kind: input, shape index: {}]
  %s3 = inlined_call_operand.vmem [shape: f32[1,128], index: 3, kind: input, shape index: {}]
  %s4 = inlined_call_operand.vmem [shape: f32[8,128], index: 4, kind: output, shape index: {}]
  %s5 = sld [smem:[#allocation0]]
  $region26: #{_lambda_.54} parent=0
    _
  %s7 = ssub.s32 1, %s5
  %s8 = scalar_select 0, %s7, %s5
  // Predicated region
  $region2: #{_lambda_.54} parent=0 // pred_check
    _
  $region3: #{_lambda_.54} parent=0 // pred_check_branch
    %10 = sbr.rel (0) target = $region5
  $region4: #{_lambda_.54} parent=0 // pred_region
    _
  $region5: #{_lambda_.54} parent=0 // pred_fallthru
    _
  // Predicated region
  $region6: #{_lambda_.54} parent=0 // pred_check
    _
  $region7: #{_lambda_.54} parent=0 // pred_check_branch
    %12 = sbr.rel (0) target = $region9
  $region8: #{_lambda_.54} parent=0 // pred_region
    _
  $region9: #{_lambda_.54} parent=0 // pred_fallthru
    _
  // Predicated region
  $region10: #{_lambda_.54} parent=0 // pred_check
    _
  $region11: #{_lambda_.54} parent=0 // pred_check_branch
    %14 = sbr.rel (0) target = $region13
  $region12: #{_lambda_.54} parent=0 // pred_region
    _
  $region13: #{_lambda_.54} parent=0 // pred_fallthru
    _
  // Predicated region
  $region14: #{_lambda_.54} parent=0 // pred_check
    _
  $region15: #{_lambda_.54} parent=0 // pred_check_branch
    %16 = sbr.rel (0) target = $region17
  $region16: #{_lambda_.54} parent=0 // pred_region
    _
  $region17: #{_lambda_.54} parent=0 // pred_fallthru
    _
  %v17 = vld [vmem:[%s1] sm:$0x1]
  %v18 = vmul.f32 %v17, 0.125
  %v19 = vld [vmem:[%s1 + $0x1] sm:$0x1]
  %v20 = vmul.f32 %v19, 0.125
  %v21 = vmul.f32 %v18, %v18
  %v22 = vsub.f32 %v20, %v21
  %v23 = vmax.f32 %v22, 0.0
  %v24 = vld [vmem:[%s2] sm:$0x1]
  %v25 = vadd.f32 %v23, 1e-05
  %v26 = vrsqrt.pop %v25
  %v27 = vmul.f32 %v26, %v25
  %v28 = vmul.f32 %v27, %v26
  %v29 = vmul.f32 0.5, %v28
  %v30 = vsub.f32 1.5, %v29
  %v31 = vmul.f32 %v26, %v30
  %vm32 = vweird.f32 %v25
  %vm33 = vweird.f32 %v26
  %vm34 = vmor %vm32, %vm33
  %v35 = vsel %vm34, %v26, %v31
  %v36 = vmul.f32 %v24, %v35
  %v37 = vld [vmem:[%s3] sm:$0x1]
  %v38 = vmul.f32 %v18, %v36
  %v39 = vsub.f32 %v37, %v38
  %v40 = vld [vmem:[%s0] sm:$0xff]
  %v42 = vperm.slane %v36, 0
  %v44 = vmul.f32 %v40, %v42
  %v46 = vperm.slane %v39, 0
  %v48 = vadd.f32 %v44, %v46
  %49 = vst [vmem:[%s4] sm:$0xff] %v48
  // Predicated region
  $region18: #{_lambda_.54} parent=0 // pred_check
    _
  $region19: #{_lambda_.54} parent=0 // pred_check_branch
    %51 = sbr.rel (0) target = $region21
  $region20: #{_lambda_.54} parent=0 // pred_region
    _
  $region21: #{_lambda_.54} parent=0 // pred_fallthru
    _
  // Predicated region
  $region22: #{_lambda_.54} parent=0 // pred_check
    _
  $region23: #{_lambda_.54} parent=0 // pred_check_branch
    %53 = sbr.rel (0) target = $region25
  $region24: #{_lambda_.54} parent=0 // pred_region
    _
  $region25: #{_lambda_.54} parent=0 // pred_fallthru
    _

// kernel: _lambda_.56
$region0: #{_lambda_.56}
  #allocation0 [shape = 'u32[]', space=smem, size = 0x4, offset = 0x4, fixed_abs, tag = 'smem constant byte address 0x4 - core index']
  #allocation1 [shape = 'u32[72,128]{1,0:T(1,128)}', space=vmem, size = 0x9000, scoped, tag = 'internal scratch']
  %s0 = inlined_call_operand.vmem [shape: f32[8,128], index: 0, kind: input, shape index: {}]
  %s1 = inlined_call_operand.vmem [shape: f32[2,128], index: 1, kind: input, shape index: {}]
  %s2 = inlined_call_operand.vmem [shape: f32[1,128], index: 2, kind: input, shape index: {}]
  %s3 = inlined_call_operand.vmem [shape: f32[1,128], index: 3, kind: input, shape index: {}]
  %s4 = inlined_call_operand.vmem [shape: f32[8,128], index: 4, kind: output, shape index: {}]
  %s5 = sld [smem:[#allocation0]]
  $region26: #{_lambda_.56} parent=0
    _
  %s7 = ssub.s32 1, %s5
  %s8 = scalar_select 0, %s7, %s5
  // Predicated region
  $region2: #{_lambda_.56} parent=0 // pred_check
    _
  $region3: #{_lambda_.56} parent=0 // pred_check_branch
    %10 = sbr.rel (0) target = $region5
  $region4: #{_lambda_.56} parent=0 // pred_region
    _
  $region5: #{_lambda_.56} parent=0 // pred_fallthru
    _
  // Predicated region
  $region6: #{_lambda_.56} parent=0 // pred_check
    _
  $region7: #{_lambda_.56} parent=0 // pred_check_branch
    %12 = sbr.rel (0) target = $region9
  $region8: #{_lambda_.56} parent=0 // pred_region
    _
  $region9: #{_lambda_.56} parent=0 // pred_fallthru
    _
  // Predicated region
  $region10: #{_lambda_.56} parent=0 // pred_check
    _
  $region11: #{_lambda_.56} parent=0 // pred_check_branch
    %14 = sbr.rel (0) target = $region13
  $region12: #{_lambda_.56} parent=0 // pred_region
    _
  $region13: #{_lambda_.56} parent=0 // pred_fallthru
    _
  // Predicated region
  $region14: #{_lambda_.56} parent=0 // pred_check
    _
  $region15: #{_lambda_.56} parent=0 // pred_check_branch
    %16 = sbr.rel (0) target = $region17
  $region16: #{_lambda_.56} parent=0 // pred_region
    _
  $region17: #{_lambda_.56} parent=0 // pred_fallthru
    _
  %v17 = vld [vmem:[%s1] sm:$0x1]
  %v18 = vmul.f32 %v17, 0.125
  %v19 = vld [vmem:[%s1 + $0x1] sm:$0x1]
  %v20 = vmul.f32 %v19, 0.125
  %v21 = vmul.f32 %v18, %v18
  %v22 = vsub.f32 %v20, %v21
  %v23 = vmax.f32 %v22, 0.0
  %v24 = vld [vmem:[%s2] sm:$0x1]
  %v25 = vadd.f32 %v23, 1e-05
  %v26 = vrsqrt.pop %v25
  %v27 = vmul.f32 %v26, %v25
  %v28 = vmul.f32 %v27, %v26
  %v29 = vmul.f32 0.5, %v28
  %v30 = vsub.f32 1.5, %v29
  %v31 = vmul.f32 %v26, %v30
  %vm32 = vweird.f32 %v25
  %vm33 = vweird.f32 %v26
  %vm34 = vmor %vm32, %vm33
  %v35 = vsel %vm34, %v26, %v31
  %v36 = vmul.f32 %v24, %v35
  %v37 = vld [vmem:[%s3] sm:$0x1]
  %v38 = vmul.f32 %v18, %v36
  %v39 = vsub.f32 %v37, %v38
  %v40 = vld [vmem:[%s0] sm:$0xff]
  %v42 = vperm.slane %v36, 0
  %v44 = vmul.f32 %v40, %v42
  %v46 = vperm.slane %v39, 0
  %v48 = vadd.f32 %v44, %v46
  %v49 = vmax.f32 %v48, 0.0
  %50 = vst [vmem:[%s4] sm:$0xff] %v49
  // Predicated region
  $region18: #{_lambda_.56} parent=0 // pred_check
    _
  $region19: #{_lambda_.56} parent=0 // pred_check_branch
    %52 = sbr.rel (0) target = $region21
  $region20: #{_lambda_.56} parent=0 // pred_region
    _
  $region21: #{_lambda_.56} parent=0 // pred_fallthru
    _
  // Predicated region
  $region22: #{_lambda_.56} parent=0 // pred_check
    _
  $region23: #{_lambda_.56} parent=0 // pred_check_branch
    %54 = sbr.rel (0) target = $region25
  $region24: #{_lambda_.56} parent=0 // pred_region
    _
  $region25: #{_lambda_.56} parent=0 // pred_fallthru
    _

// kernel: _lambda_.53
$region0: #{_lambda_.53}
  #allocation0 [shape = 'u32[]', space=smem, size = 0x4, offset = 0x4, fixed_abs, tag = 'smem constant byte address 0x4 - core index']
  #allocation1 [shape = 'u32[72,128]{1,0:T(1,128)}', space=vmem, size = 0x9000, scoped, tag = 'internal scratch']
  #allocation2 [shape = 'f32[8,128]{1,0:T(8,128)}', space=vmem, size = 0x1000, scoped, tag = 'scratch operand']
  %s0 = inlined_call_operand.vmem [shape: bf16[8,1152], index: 0, kind: input, shape index: {}]
  %s1 = inlined_call_operand.vmem [shape: bf16[1152,128], index: 1, kind: input, shape index: {}]
  %s2 = inlined_call_operand.vmem [shape: f32[8,128], index: 2, kind: output, shape index: {0}]
  %s3 = inlined_call_operand.vmem [shape: f32[1,2,128], index: 3, kind: output, shape index: {1}]
  %4 = xla_tuple %s2, %s3
  %s5 = sld [smem:[#allocation0]]
  $region57: #{_lambda_.53} parent=0
    _
  %s7 = ssub.s32 1, %s5
  %s8 = scalar_select 0, %s7, %s5
  loop: start=0, step=1, limit=5
  $region2: #{_lambda_.53} parent=0 // loop_pre_header
    _
  $region3: #{_lambda_.53} parent=0 // loop_header
    %s10 = sphi 0, %s14
    %p11 = scmp.ge.s32.totalorder %s10, 5
    %s17 = sphi 0, %s29
    %s18 = sphi 0, %s25
    %s19 = sphi 0, %s17
    %s20 = sphi 0, %s18
    %s21 = sphi 0, %s19
    %s22 = sphi 0, %s20
    %s34 = sphi 0, %s36
    %s37 = sphi 0, %s34
    %s38 = sphi 0, %s37
    %s54 = sphi 0, %s38
    %s60 = sphi 0, %s62
    %s63 = sphi 0, %s60
    %s64 = sphi 0, %s63
    %s80 = sphi 0, %s64
    %s86 = sphi 0, %s88
    %s89 = sphi 0, %s86
    %s90 = sphi 0, %s89
    %s106 = sphi 0, %s90
    %s112 = sphi 0, %s114
    %s115 = sphi 0, %s112
    %s116 = sphi 0, %s115
    %s132 = sphi 0, %s116
  $region4: #{_lambda_.53} parent=0 // loop_header_branch
    %13 = sbr.rel (%p11) target = $region8
  $region5: #{_lambda_.53} parent=0 // loop_body
    %s15 = ssub.s32 %s10, 1
    %s16 = ssub.s32 %s10, 2
    %s23 = sadd.s32 1, %s18
    %p24 = scmp.ge.s32.totalorder %s23, 3
    %s25 = scalar_select %p24, 0, %s23
    %s26 = sadd.s32 1, %s17
    %s27 = scalar_select %p24, %s26, %s17
    %p28 = scmp.ge.s32.totalorder %s27, 1
    %s29 = scalar_select %p28, 0, %s27
    %s30 = ssub.s32 %s17, %s29
    %s31 = ssub.s32 %s18, %s25
    %s32 = sor.u32 %s30, %s31
    %p33 = scmp.eq.s32.totalorder %s32, 0
    %s35 = sadd.s32 %s34, 1
    %s36 = scalar_select %p33, %s34, %s35
    %p39 = pneg %p33
    %p40 = scmp.eq.s32.totalorder %s10, 2
    %p41 = por %p39, %p40
    %p42 = scmp.ne.s32.totalorder %s34, %s37
    %p43 = scmp.eq.s32.totalorder %s10, 0
    %p44 = por %p42, %p43
    %p45 = scmp.ne.s32.totalorder %s34, %s37
    %p46 = scmp.eq.s32.totalorder %s15, 2
    %p47 = por %p45, %p46
    %p48 = scmp.ne.s32.totalorder %s37, %s38
    %p49 = scmp.eq.s32.totalorder %s15, 0
    %p50 = por %p48, %p49
    %p51 = scmp.ne.s32.totalorder %s37, %s38
    %p52 = scmp.eq.s32.totalorder %s16, 2
    %p53 = por %p51, %p52
    %p55 = scmp.ne.s32.totalorder %s38, %s54
    %p56 = scmp.eq.s32.totalorder %s16, 0
    %p57 = por %p55, %p56
    %s58 = ssub.s32 %s18, %s25
    %p59 = scmp.eq.s32.totalorder %s58, 0
    %s61 = sadd.s32 %s60, 1
    %s62 = scalar_select %p59, %s60, %s61
    %p65 = pneg %p59
    %p66 = scmp.eq.s32.totalorder %s10, 2
    %p67 = por %p65, %p66
    %p68 = scmp.ne.s32.totalorder %s60, %s63
    %p69 = scmp.eq.s32.totalorder %s10, 0
    %p70 = por %p68, %p69
    %p71 = scmp.ne.s32.totalorder %s60, %s63
    %p72 = scmp.eq.s32.totalorder %s15, 2
    %p73 = por %p71, %p72
    %p74 = scmp.ne.s32.totalorder %s63, %s64
    %p75 = scmp.eq.s32.totalorder %s15, 0
    %p76 = por %p74, %p75
    %p77 = scmp.ne.s32.totalorder %s63, %s64
    %p78 = scmp.eq.s32.totalorder %s16, 2
    %p79 = por %p77, %p78
    %p81 = scmp.ne.s32.totalorder %s64, %s80
    %p82 = scmp.eq.s32.totalorder %s16, 0
    %p83 = por %p81, %p82
    %s84 = ssub.s32 %s17, %s29
    %p85 = scmp.eq.s32.totalorder %s84, 0
    %s87 = sadd.s32 %s86, 1
    %s88 = scalar_select %p85, %s86, %s87
    %p91 = pneg %p85
    %p92 = scmp.eq.s32.totalorder %s10, 2
    %p93 = por %p91, %p92
    %p94 = scmp.ne.s32.totalorder %s86, %s89
    %p95 = scmp.eq.s32.totalorder %s10, 0
    %p96 = por %p94, %p95
    %p97 = scmp.ne.s32.totalorder %s86, %s89
    %p98 = scmp.eq.s32.totalorder %s15, 2
    %p99 = por %p97, %p98
    %p100 = scmp.ne.s32.totalorder %s89, %s90
    %p101 = scmp.eq.s32.totalorder %s15, 0
    %p102 = por %p100, %p101
    %p103 = scmp.ne.s32.totalorder %s89, %s90
    %p104 = scmp.eq.s32.totalorder %s16, 2
    %p105 = por %p103, %p104
    %p107 = scmp.ne.s32.totalorder %s90, %s106
    %p108 = scmp.eq.s32.totalorder %s16, 0
    %p109 = por %p107, %p108
    %s110 = ssub.s32 %s17, %s29
    %p111 = scmp.eq.s32.totalorder %s110, 0
    %s113 = sadd.s32 %s112, 1
    %s114 = scalar_select %p111, %s112, %s113
    %p117 = pneg %p111
    %p118 = scmp.eq.s32.totalorder %s10, 2
    %p119 = por %p117, %p118
    %p120 = scmp.ne.s32.totalorder %s112, %s115
    %p121 = scmp.eq.s32.totalorder %s10, 0
    %p122 = por %p120, %p121
    %p123 = scmp.ne.s32.totalorder %s112, %s115
    %p124 = scmp.eq.s32.totalorder %s15, 2
    %p125 = por %p123, %p124
    %p126 = scmp.ne.s32.totalorder %s115, %s116
    %p127 = scmp.eq.s32.totalorder %s15, 0
    %p128 = por %p126, %p127
    %p129 = scmp.ne.s32.totalorder %s115, %s116
    %p130 = scmp.eq.s32.totalorder %s16, 2
    %p131 = por %p129, %p130
    %p133 = scmp.ne.s32.totalorder %s116, %s132
    %p134 = scmp.eq.s32.totalorder %s16, 0
    %p135 = por %p133, %p134
    %p136 = scmp.le.s32.totalorder 1, %s10
    %p137 = scmp.lt.s32.totalorder %s10, 4
    %p138 = pnand %p136, %p137
    %p139 = pneg %p138
    // Predicated region
    $region9: #{_lambda_.53} parent=5 // pred_check
      _
    $region10: #{_lambda_.53} parent=5 // pred_check_branch
      %141 = sbr.rel (%p138) target = $region12
    $region11: #{_lambda_.53} parent=5 // pred_region
      %s142 = ssub.s32 %s10, 1
    $region12: #{_lambda_.53} parent=5 // pred_fallthru
      _
    %p143 = scmp.lt.s32.totalorder %s10, 3
    // Predicated region
    $region13: #{_lambda_.53} parent=5 // pred_check
      %p144 = pneg %p143
    $region14: #{_lambda_.53} parent=5 // pred_check_branch
      %146 = sbr.rel (%p144) target = $region16
    $region15: #{_lambda_.53} parent=5 // pred_region
      // Predicated region
      $region17: #{_lambda_.53} parent=15 // pred_check
        %p147 = pneg %p44
      $region18: #{_lambda_.53} parent=15 // pred_check_branch
        %149 = sbr.rel (%p147) target = $region20
      $region19: #{_lambda_.53} parent=15 // pred_region
        %s150 = smul.u32 3, %s18
        %p151 = scmp.lt.s32.totalorder %s17, 0
        %s152 = scalar_select %p151, %s17, 0
        %p153 = scmp.lt.s32.totalorder %s150, 8
        %s154 = scalar_select %p153, %s150, 8
        %s155 = smul.addr %s152, 9
        %s156 = sadd.s32 %s154, %s155
        %s157 = smul.addr %s156, 4
        %s158 = scalar_lea.vmem %s0, %s157
        %s159 = smul.u32 3, %s18
      $region20: #{_lambda_.53} parent=15 // pred_fallthru
        _
      // Predicated region
      $region21: #{_lambda_.53} parent=15 // pred_check
        %p160 = pneg %p70
      $region22: #{_lambda_.53} parent=15 // pred_check_branch
        %162 = sbr.rel (%p160) target = $region24
      $region23: #{_lambda_.53} parent=15 // pred_region
        %s163 = smul.u32 48, %s18
        %p164 = scmp.lt.s32.totalorder %s163, 143
        %s165 = scalar_select %p164, %s163, 143
        %s166 = smul.addr %s165, 4
        %s167 = scalar_lea.vmem %s1, %s166
        %s168 = smul.u32 48, %s18
      $region24: #{_lambda_.53} parent=15 // pred_fallthru
        _
    $region16: #{_lambda_.53} parent=5 // pred_fallthru
      _
    %p169 = scmp.le.s32.totalorder 1, %s10
    %p170 = scmp.lt.s32.totalorder %s10, 4
    %p171 = pnand %p169, %p170
    %p172 = pneg %p171
    // Predicated region
    $region25: #{_lambda_.53} parent=5 // pred_check
      _
    $region26: #{_lambda_.53} parent=5 // pred_check_branch
      %174 = sbr.rel (%p171) target = $region28
    $region27: #{_lambda_.53} parent=5 // pred_region
      %s175 = ssub.s32 %s10, 1
      %s176 = smul.u32 3, %s20
      %p177 = scmp.lt.s32.totalorder %s19, 0
      %s178 = scalar_select %p177, %s19, 0
      %p179 = scmp.lt.s32.totalorder %s176, 8
      %s180 = scalar_select %p179, %s176, 8
      %s181 = smul.addr %s178, 9
      %s182 = sadd.s32 %s180, %s181
      %s183 = smul.addr %s182, 4
      %s184 = scalar_lea.vmem %s0, %s183
      %p185 = pneg %p50
      %p186 = pneg %p47
      %s187 = smul.u32 48, %s20
      %p188 = scmp.lt.s32.totalorder %s187, 143
      %s189 = scalar_select %p188, %s187, 143
      %s190 = smul.addr %s189, 4
      %s191 = scalar_lea.vmem %s1, %s190
      %p192 = pneg %p76
      %p193 = pneg %p73
      %p194 = pneg %p102
      %p195 = pneg %p99
      %p196 = scmp.lt.s32.totalorder %s19, 0
      %s197 = scalar_select %p196, %s19, 0
      %s198 = smul.addr %s197, 8
      %s199 = scalar_lea.vmem %s2, %s198
      %p200 = pneg %p128
      %p201 = pneg %p125
      %p202 = scmp.lt.s32.totalorder %s19, 0
      %s203 = scalar_select %p202, %s19, 0
      %s204 = smul.addr %s203, 2
      %s205 = scalar_lea.vmem %s3, %s204
      %s206 = smul.u32 3, %s20
      %p207 = scmp.lt.s32.totalorder %s19, 0
      %s208 = scalar_select %p207, %s19, 0
      %p209 = scmp.lt.s32.totalorder %s206, 8
      %s210 = scalar_select %p209, %s206, 8
      %s211 = smul.addr %s208, 9
      %s212 = sadd.s32 %s210, %s211
      %s213 = smul.addr %s212, 4
      %s214 = scalar_lea.vmem %s0, %s213
      %s215 = smul.u32 3, %s20
      %s216 = smul.u32 48, %s20
      %p217 = scmp.lt.s32.totalorder %s216, 143
      %s218 = scalar_select %p217, %s216, 143
      %s219 = smul.addr %s218, 4
      %s220 = scalar_lea.vmem %s1, %s219
      %s221 = smul.u32 48, %s20
      %p222 = scmp.lt.s32.totalorder %s19, 0
      %s223 = scalar_select %p222, %s19, 0
      %s224 = smul.addr %s223, 8
      %s225 = scalar_lea.vmem %s2, %s224
      %p226 = scmp.lt.s32.totalorder %s19, 0
      %s227 = scalar_select %p226, %s19, 0
      %s228 = smul.addr %s227, 2
      %s229 = scalar_lea.vmem %s3, %s228
      %p230 = scmp.eq.s32.totalorder %s20, 0
      // Predicated region
      $region29: #{_lambda_.53} parent=27 // pred_check
        %p231 = pneg %p230
      $region30: #{_lambda_.53} parent=27 // pred_check_branch
        %233 = sbr.rel (%p231) target = $region32
      $region31: #{_lambda_.53} parent=27 // pred_region
        %234 = vst [vmem:[#allocation2] sm:$0xff] 0.0
      $region32: #{_lambda_.53} parent=27 // pred_fallthru
        _
      %v235 = vld [vmem:[#allocation2] sm:$0xff]
      %v236 = vld [vmem:[%s214] sm:$0xff]
      %v237 = vld [vmem:[%s214 + $0x8] sm:$0xf]
      %v238 = vld [vmem:[%s220] sm:$0xf]
      %v239 = vld [vmem:[%s220 + $0x4] sm:$0xf]
      %v240 = vld [vmem:[%s220 + $0x8] sm:$0xf]
      %v241 = vld [vmem:[%s220 + $0xc] sm:$0xf]
      %v242 = vld [vmem:[%s220 + $0x10] sm:$0xf]
      %v243 = vld [vmem:[%s220 + $0x14] sm:$0xf]
      %v244 = vld [vmem:[%s220 + $0x18] sm:$0xf]
      %v245 = vld [vmem:[%s220 + $0x1c] sm:$0xf]
      %v246 = vld [vmem:[%s220 + $0x20] sm:$0xf]
      %v247 = vld [vmem:[%s220 + $0x24] sm:$0xf]
      %v248 = vld [vmem:[%s220 + $0x28] sm:$0xf]
      %v249 = vld [vmem:[%s220 + $0x2c] sm:$0xf]
      %v250 = vld [vmem:[%s220 + $0x30] sm:$0xf]
      %v251 = vld [vmem:[%s220 + $0x34] sm:$0xf]
      %v252 = vld [vmem:[%s220 + $0x38] sm:$0xf]
      %v253 = vld [vmem:[%s220 + $0x3c] sm:$0xf]
      %v254 = vld [vmem:[%s220 + $0x40] sm:$0xf]
      %v255 = vld [vmem:[%s220 + $0x44] sm:$0xf]
      %v256 = vld [vmem:[%s220 + $0x48] sm:$0xf]
      %v257 = vld [vmem:[%s220 + $0x4c] sm:$0xf]
      %v258 = vld [vmem:[%s220 + $0x50] sm:$0xf]
      %v259 = vld [vmem:[%s220 + $0x54] sm:$0xf]
      %v260 = vld [vmem:[%s220 + $0x58] sm:$0xf]
      %v261 = vld [vmem:[%s220 + $0x5c] sm:$0xf]
      %v262 = vld [vmem:[%s220 + $0x60] sm:$0xf]
      %v263 = vld [vmem:[%s220 + $0x64] sm:$0xf]
      %v264 = vld [vmem:[%s220 + $0x68] sm:$0xf]
      %v265 = vld [vmem:[%s220 + $0x6c] sm:$0xf]
      %v266 = vld [vmem:[%s220 + $0x70] sm:$0xf]
      %v267 = vld [vmem:[%s220 + $0x74] sm:$0xf]
      %v268 = vld [vmem:[%s220 + $0x78] sm:$0xf]
      %v269 = vld [vmem:[%s220 + $0x7c] sm:$0xf]
      %v270 = vld [vmem:[%s220 + $0x80] sm:$0xf]
      %v271 = vld [vmem:[%s220 + $0x84] sm:$0xf]
      %v272 = vld [vmem:[%s220 + $0x88] sm:$0xf]
      %v273 = vld [vmem:[%s220 + $0x8c] sm:$0xf]
      %v274 = vld [vmem:[%s220 + $0x90] sm:$0xf]
      %v275 = vld [vmem:[%s220 + $0x94] sm:$0xf]
      %v276 = vld [vmem:[%s220 + $0x98] sm:$0xf]
      %v277 = vld [vmem:[%s220 + $0x9c] sm:$0xf]
      %v278 = vld [vmem:[%s220 + $0xa0] sm:$0xf]
      %v279 = vld [vmem:[%s220 + $0xa4] sm:$0xf]
      %v280 = vld [vmem:[%s220 + $0xa8] sm:$0xf]
      %v281 = vld [vmem:[%s220 + $0xac] sm:$0xf]
      %v282 = vld [vmem:[%s220 + $0xb0] sm:$0xf]
      %v283 = vld [vmem:[%s220 + $0xb4] sm:$0xf]
      %v284 = vld [vmem:[%s220 + $0xb8] sm:$0xf]
      %v285 = vld [vmem:[%s220 + $0xbc] sm:$0xf]
      %v288 = vunpack.c.l.b16 %v236
      %v289 = vunpack.c.h.b16 %v236
      %v290 = vunpack.c.l.b16 %v237
      %v291 = vpack.c.b16 %v288, %v288
      %v292 = vpack.c.b16 %v289, %v289
      %v293 = vpack.c.b16 %v290, %v290
      %v345 = vunpack.c.l.b16 %v238
      %v346 = vunpack.c.l.b16 %v239
      %v347 = vunpack.c.l.b16 %v240
      %v348 = vunpack.c.l.b16 %v241
      %v349 = vunpack.c.l.b16 %v242
      %v350 = vunpack.c.l.b16 %v243
      %v351 = vunpack.c.l.b16 %v244
      %v352 = vunpack.c.l.b16 %v245
      %v353 = vunpack.c.l.b16 %v246
      %v354 = vunpack.c.l.b16 %v247
      %v355 = vunpack.c.l.b16 %v248
      %v356 = vunpack.c.l.b16 %v249
      %v357 = vunpack.c.l.b16 %v250
      %v358 = vunpack.c.l.b16 %v251
      %v359 = vunpack.c.l.b16 %v252
      %v360 = vunpack.c.l.b16 %v253
      %v361 = vunpack.c.l.b16 %v254
      %v362 = vunpack.c.l.b16 %v255
      %v363 = vunpack.c.l.b16 %v256
      %v364 = vunpack.c.l.b16 %v257
      %v365 = vunpack.c.l.b16 %v258
      %v366 = vunpack.c.l.b16 %v259
      %v367 = vunpack.c.l.b16 %v260
      %v368 = vunpack.c.l.b16 %v261
      %v369 = vunpack.c.l.b16 %v262
      %v370 = vunpack.c.l.b16 %v263
      %v371 = vunpack.c.l.b16 %v264
      %v372 = vunpack.c.l.b16 %v265
      %v373 = vunpack.c.l.b16 %v266
      %v374 = vunpack.c.l.b16 %v267
      %v375 = vunpack.c.l.b16 %v268
      %v376 = vunpack.c.l.b16 %v269
      %v377 = vunpack.c.l.b16 %v270
      %v378 = vunpack.c.l.b16 %v271
      %v379 = vunpack.c.l.b16 %v272
      %v380 = vunpack.c.l.b16 %v273
      %v381 = vunpack.c.l.b16 %v274
      %v382 = vunpack.c.l.b16 %v275
      %v383 = vunpack.c.l.b16 %v276
      %v384 = vunpack.c.l.b16 %v277
      %v385 = vunpack.c.l.b16 %v278
      %v386 = vunpack.c.l.b16 %v279
      %v387 = vunpack.c.l.b16 %v280
      %v388 = vunpack.c.l.b16 %v281
      %v389 = vunpack.c.l.b16 %v282
      %v390 = vunpack.c.l.b16 %v283
      %v391 = vunpack.c.l.b16 %v284
      %v392 = vunpack.c.l.b16 %v285
      %v393 = vpack.c.b16 %v346, %v345
      %v394 = vpack.c.b16 %v348, %v347
      %v395 = vpack.c.b16 %v350, %v349
      %v396 = vpack.c.b16 %v352, %v351
      %v397 = vpack.c.b16 %v354, %v353
      %v398 = vpack.c.b16 %v356, %v355
      %v399 = vpack.c.b16 %v358, %v357
      %v400 = vpack.c.b16 %v360, %v359
      %v401 = vpack.c.b16 %v362, %v361
      %v402 = vpack.c.b16 %v364, %v363
      %v403 = vpack.c.b16 %v366, %v365
      %v404 = vpack.c.b16 %v368, %v367
      %v405 = vpack.c.b16 %v370, %v369
      %v406 = vpack.c.b16 %v372, %v371
      %v407 = vpack.c.b16 %v374, %v373
      %v408 = vpack.c.b16 %v376, %v375
      %v409 = vpack.c.b16 %v378, %v377
      %v410 = vpack.c.b16 %v380, %v379
      %v411 = vpack.c.b16 %v382, %v381
      %v412 = vpack.c.b16 %v384, %v383
      %v413 = vpack.c.b16 %v386, %v385
      %v414 = vpack.c.b16 %v388, %v387
      %v415 = vpack.c.b16 %v390, %v389
      %v416 = vpack.c.b16 %v392, %v391
      %441 = vmatpush.bf16.msra.mxu0 %v400
      %442 = vmatpush.bf16.msra.mxu0 %v399
      %443 = vmatpush.bf16.msra.mxu0 %v398
      %444 = vmatpush.bf16.msra.mxu0 %v397
      %445 = vmatpush.bf16.msra.mxu0 %v396
      %446 = vmatpush.bf16.msra.mxu0 %v395
      %447 = vmatpush.bf16.msra.mxu0 %v394
      %448 = vmatpush.bf16.msra.mxu0 %v393
      %449 = vmatmul.bf16.gmra.mxu0 %v291
      %v450 = vpop.f32.mrf.mxu0
      %v451 = vadd.f32 0.0, %v450
      %v452 = vpop.f32.mrf.mxu0
      %453 = vdwg.mxu0
      %454 = vmatpush.bf16.msra.mxu0 %v408
      %455 = vmatpush.bf16.msra.mxu0 %v407
      %456 = vmatpush.bf16.msra.mxu0 %v406
      %457 = vmatpush.bf16.msra.mxu0 %v405
      %458 = vmatpush.bf16.msra.mxu0 %v404
      %459 = vmatpush.bf16.msra.mxu0 %v403
      %460 = vmatpush.bf16.msra.mxu0 %v402
      %461 = vmatpush.bf16.msra.mxu0 %v401
      %462 = vmatmul.bf16.gmra.mxu0 %v292
      %v463 = vpop.f32.mrf.mxu0
      %v464 = vadd.f32 %v451, %v463
      %v465 = vpop.f32.mrf.mxu0
      %466 = vdwg.mxu0
      %467 = vmatpush.bf16.msra.mxu0 %v416
      %468 = vmatpush.bf16.msra.mxu0 %v415
      %469 = vmatpush.bf16.msra.mxu0 %v414
      %470 = vmatpush.bf16.msra.mxu0 %v413
      %471 = vmatpush.bf16.msra.mxu0 %v412
      %472 = vmatpush.bf16.msra.mxu0 %v411
      %473 = vmatpush.bf16.msra.mxu0 %v410
      %474 = vmatpush.bf16.msra.mxu0 %v409
      %475 = vmatmul.bf16.gmra.mxu0 %v293
      %v476 = vpop.f32.mrf.mxu0
      %v477 = vadd.f32 %v464, %v476
      %v478 = vpop.f32.mrf.mxu0
      %479 = vdwg.mxu0
      %v480 = vadd.f32 %v235, %v477
      %481 = vst [vmem:[#allocation2] sm:$0xff] %v480
      %p482 = scmp.eq.s32.totalorder %s20, 2
      // Predicated region
      $region33: #{_lambda_.53} parent=27 // pred_check
        %p483 = pneg %p482
      $region34: #{_lambda_.53} parent=27 // pred_check_branch
        %485 = sbr.rel (%p483) target = $region36
      $region35: #{_lambda_.53} parent=27 // pred_region
        %v486 = vld [vmem:[#allocation2] sm:$0xff]
        %487 = vst [vmem:[%s225] sm:$0xff] %v486
        %v488 = vrot.slane %v486, 4
        %v489 = vadd.f32 %v486, %v488
        %v490 = vrot.slane %v489, 2
        %v491 = vadd.f32 %v489, %v490
        %v492 = vrot.slane %v491, 1
        %v493 = vadd.f32 %v491, %v492
        %494 = vst [vmem:[%s229] sm:$0x1] %v493
        %v495 = vmul.f32 %v486, %v486
        %v496 = vrot.slane %v495, 4
        %v497 = vadd.f32 %v495, %v496
        %v498 = vrot.slane %v497, 2
        %v499 = vadd.f32 %v497, %v498
        %v500 = vrot.slane %v499, 1
        %v501 = vadd.f32 %v499, %v500
        %502 = vst [vmem:[%s229 + $0x1] sm:$0x1] %v501
      $region36: #{_lambda_.53} parent=27 // pred_fallthru
        _
      %p503 = scmp.lt.s32.totalorder %s19, 0
      %s504 = scalar_select %p503, %s19, 0
      %s505 = smul.addr %s504, 8
      %s506 = scalar_lea.vmem %s2, %s505
      %p507 = scmp.lt.s32.totalorder %s19, 0
      %s508 = scalar_select %p507, %s19, 0
      %s509 = smul.addr %s508, 2
      %s510 = scalar_lea.vmem %s3, %s509
      // Predicated region
      $region37: #{_lambda_.53} parent=27 // pred_check
        %p511 = pneg %p99
      $region38: #{_lambda_.53} parent=27 // pred_check_branch
        %513 = sbr.rel (%p511) target = $region40
      $region39: #{_lambda_.53} parent=27 // pred_region
        _
      $region40: #{_lambda_.53} parent=27 // pred_fallthru
        _
      // Predicated region
      $region41: #{_lambda_.53} parent=27 // pred_check
        %p514 = pneg %p125
      $region42: #{_lambda_.53} parent=27 // pred_check_branch
        %516 = sbr.rel (%p514) target = $region44
      $region43: #{_lambda_.53} parent=27 // pred_region
        _
      $region44: #{_lambda_.53} parent=27 // pred_fallthru
        _
      // Predicated region
      $region45: #{_lambda_.53} parent=27 // pred_check
        %p517 = pneg %p99
      $region46: #{_lambda_.53} parent=27 // pred_check_branch
        %519 = sbr.rel (%p517) target = $region48
      $region47: #{_lambda_.53} parent=27 // pred_region
        %p520 = scmp.lt.s32.totalorder %s19, 0
        %s521 = scalar_select %p520, %s19, 0
        %s522 = smul.addr %s521, 8
        %s523 = scalar_lea.vmem %s2, %s522
      $region48: #{_lambda_.53} parent=27 // pred_fallthru
        _
      // Predicated region
      $region49: #{_lambda_.53} parent=27 // pred_check
        %p524 = pneg %p125
      $region50: #{_lambda_.53} parent=27 // pred_check_branch
        %526 = sbr.rel (%p524) target = $region52
      $region51: #{_lambda_.53} parent=27 // pred_region
        %p527 = scmp.lt.s32.totalorder %s19, 0
        %s528 = scalar_select %p527, %s19, 0
        %s529 = smul.addr %s528, 2
        %s530 = scalar_lea.vmem %s3, %s529
      $region52: #{_lambda_.53} parent=27 // pred_fallthru
        _
    $region28: #{_lambda_.53} parent=5 // pred_fallthru
      _
    %p531 = scmp.le.s32.totalorder 2, %s10
    // Predicated region
    $region53: #{_lambda_.53} parent=5 // pred_check
      %p532 = pneg %p531
    $region54: #{_lambda_.53} parent=5 // pred_check_branch
      %534 = sbr.rel (%p532) target = $region56
    $region55: #{_lambda_.53} parent=5 // pred_region
      %s535 = ssub.s32 %s10, 2
    $region56: #{_lambda_.53} parent=5 // pred_fallthru
      _
  $region6: #{_lambda_.53} parent=0 // loop_footer
    %s14 = sadd.s32 1, %s10
  $region7: #{_lambda_.53} parent=0 // loop_footer_branch
    %9 = sbr.rel target = $region3
  $region8: #{_lambda_.53} parent=0 // loop_exit
    _

// kernel: _lambda_.58
$region0: #{_lambda_.58}
  #allocation0 [shape = 'u32[]', space=smem, size = 0x4, offset = 0x4, fixed_abs, tag = 'smem constant byte address 0x4 - core index']
  #allocation1 [shape = 'u32[72,128]{1,0:T(1,128)}', space=vmem, size = 0x9000, scoped, tag = 'internal scratch']
  %s0 = inlined_call_operand.vmem [shape: f32[8,128], index: 0, kind: input, shape index: {}]
  %s1 = inlined_call_operand.vmem [shape: f32[2,128], index: 1, kind: input, shape index: {}]
  %s2 = inlined_call_operand.vmem [shape: f32[1,128], index: 2, kind: input, shape index: {}]
  %s3 = inlined_call_operand.vmem [shape: f32[1,128], index: 3, kind: input, shape index: {}]
  %s4 = inlined_call_operand.vmem [shape: f32[8,128], index: 4, kind: input, shape index: {}, may-alias: {4,5}]
  %s5 = inlined_call_operand.vmem [shape: f32[8,128], index: 5, kind: output, shape index: {}, may-alias: {4,5}]
  %s6 = sld [smem:[#allocation0]]
  $region30: #{_lambda_.58} parent=0
    _
  %s8 = ssub.s32 1, %s6
  %s9 = scalar_select 0, %s8, %s6
  // Predicated region
  $region2: #{_lambda_.58} parent=0 // pred_check
    _
  $region3: #{_lambda_.58} parent=0 // pred_check_branch
    %11 = sbr.rel (0) target = $region5
  $region4: #{_lambda_.58} parent=0 // pred_region
    _
  $region5: #{_lambda_.58} parent=0 // pred_fallthru
    _
  // Predicated region
  $region6: #{_lambda_.58} parent=0 // pred_check
    _
  $region7: #{_lambda_.58} parent=0 // pred_check_branch
    %13 = sbr.rel (0) target = $region9
  $region8: #{_lambda_.58} parent=0 // pred_region
    _
  $region9: #{_lambda_.58} parent=0 // pred_fallthru
    _
  // Predicated region
  $region10: #{_lambda_.58} parent=0 // pred_check
    _
  $region11: #{_lambda_.58} parent=0 // pred_check_branch
    %15 = sbr.rel (0) target = $region13
  $region12: #{_lambda_.58} parent=0 // pred_region
    _
  $region13: #{_lambda_.58} parent=0 // pred_fallthru
    _
  // Predicated region
  $region14: #{_lambda_.58} parent=0 // pred_check
    _
  $region15: #{_lambda_.58} parent=0 // pred_check_branch
    %17 = sbr.rel (0) target = $region17
  $region16: #{_lambda_.58} parent=0 // pred_region
    _
  $region17: #{_lambda_.58} parent=0 // pred_fallthru
    _
  // Predicated region
  $region18: #{_lambda_.58} parent=0 // pred_check
    _
  $region19: #{_lambda_.58} parent=0 // pred_check_branch
    %19 = sbr.rel (0) target = $region21
  $region20: #{_lambda_.58} parent=0 // pred_region
    _
  $region21: #{_lambda_.58} parent=0 // pred_fallthru
    _
  %v20 = vld [vmem:[%s1] sm:$0x1]
  %v21 = vmul.f32 %v20, 0.125
  %v22 = vld [vmem:[%s1 + $0x1] sm:$0x1]
  %v23 = vmul.f32 %v22, 0.125
  %v24 = vmul.f32 %v21, %v21
  %v25 = vsub.f32 %v23, %v24
  %v26 = vmax.f32 %v25, 0.0
  %v27 = vld [vmem:[%s2] sm:$0x1]
  %v28 = vadd.f32 %v26, 1e-05
  %v29 = vrsqrt.pop %v28
  %v30 = vmul.f32 %v29, %v28
  %v31 = vmul.f32 %v30, %v29
  %v32 = vmul.f32 0.5, %v31
  %v33 = vsub.f32 1.5, %v32
  %v34 = vmul.f32 %v29, %v33
  %vm35 = vweird.f32 %v28
  %vm36 = vweird.f32 %v29
  %vm37 = vmor %vm35, %vm36
  %v38 = vsel %vm37, %v29, %v34
  %v39 = vmul.f32 %v27, %v38
  %v40 = vld [vmem:[%s3] sm:$0x1]
  %v41 = vmul.f32 %v21, %v39
  %v42 = vsub.f32 %v40, %v41
  %v43 = vld [vmem:[%s0] sm:$0xff]
  %v45 = vperm.slane %v39, 0
  %v47 = vmul.f32 %v43, %v45
  %v49 = vperm.slane %v42, 0
  %v51 = vadd.f32 %v47, %v49
  %v52 = vld [vmem:[%s4] sm:$0xff]
  %v53 = vadd.f32 %v51, %v52
  %v54 = vmax.f32 %v53, 0.0
  %55 = vst [vmem:[%s5] sm:$0xff] %v54
  // Predicated region
  $region22: #{_lambda_.58} parent=0 // pred_check
    _
  $region23: #{_lambda_.58} parent=0 // pred_check_branch
    %57 = sbr.rel (0) target = $region25
  $region24: #{_lambda_.58} parent=0 // pred_region
    _
  $region25: #{_lambda_.58} parent=0 // pred_fallthru
    _
  // Predicated region
  $region26: #{_lambda_.58} parent=0 // pred_check
    _
  $region27: #{_lambda_.58} parent=0 // pred_check_branch
    %59 = sbr.rel (0) target = $region29
  $region28: #{_lambda_.58} parent=0 // pred_region
    _
  $region29: #{_lambda_.58} parent=0 // pred_fallthru
    _

// kernel: _lambda_.66
$region0: #{_lambda_.66}
  #allocation0 [shape = 'u32[]', space=smem, size = 0x4, offset = 0x4, fixed_abs, tag = 'smem constant byte address 0x4 - core index']
  #allocation1 [shape = 'u32[72,128]{1,0:T(1,128)}', space=vmem, size = 0x9000, scoped, tag = 'internal scratch']
  %s0 = inlined_call_operand.vmem [shape: f32[2,128], index: 0, kind: input, shape index: {}]
  %s1 = inlined_call_operand.vmem [shape: f32[2,128], index: 1, kind: input, shape index: {}]
  %s2 = inlined_call_operand.vmem [shape: f32[1,128], index: 2, kind: input, shape index: {}]
  %s3 = inlined_call_operand.vmem [shape: f32[1,128], index: 3, kind: input, shape index: {}]
  %s4 = inlined_call_operand.vmem [shape: f32[2,128], index: 4, kind: output, shape index: {}]
  %s5 = sld [smem:[#allocation0]]
  $region26: #{_lambda_.66} parent=0
    _
  %s7 = ssub.s32 1, %s5
  %s8 = scalar_select 0, %s7, %s5
  // Predicated region
  $region2: #{_lambda_.66} parent=0 // pred_check
    _
  $region3: #{_lambda_.66} parent=0 // pred_check_branch
    %10 = sbr.rel (0) target = $region5
  $region4: #{_lambda_.66} parent=0 // pred_region
    _
  $region5: #{_lambda_.66} parent=0 // pred_fallthru
    _
  // Predicated region
  $region6: #{_lambda_.66} parent=0 // pred_check
    _
  $region7: #{_lambda_.66} parent=0 // pred_check_branch
    %12 = sbr.rel (0) target = $region9
  $region8: #{_lambda_.66} parent=0 // pred_region
    _
  $region9: #{_lambda_.66} parent=0 // pred_fallthru
    _
  // Predicated region
  $region10: #{_lambda_.66} parent=0 // pred_check
    _
  $region11: #{_lambda_.66} parent=0 // pred_check_branch
    %14 = sbr.rel (0) target = $region13
  $region12: #{_lambda_.66} parent=0 // pred_region
    _
  $region13: #{_lambda_.66} parent=0 // pred_fallthru
    _
  // Predicated region
  $region14: #{_lambda_.66} parent=0 // pred_check
    _
  $region15: #{_lambda_.66} parent=0 // pred_check_branch
    %16 = sbr.rel (0) target = $region17
  $region16: #{_lambda_.66} parent=0 // pred_region
    _
  $region17: #{_lambda_.66} parent=0 // pred_fallthru
    _
  %v17 = vld [vmem:[%s1] sm:$0x1]
  %v18 = vmul.f32 %v17, 0.5
  %v19 = vld [vmem:[%s1 + $0x1] sm:$0x1]
  %v20 = vmul.f32 %v19, 0.5
  %v21 = vmul.f32 %v18, %v18
  %v22 = vsub.f32 %v20, %v21
  %v23 = vmax.f32 %v22, 0.0
  %v24 = vld [vmem:[%s2] sm:$0x1]
  %v25 = vadd.f32 %v23, 1e-05
  %v26 = vrsqrt.pop %v25
  %v27 = vmul.f32 %v26, %v25
  %v28 = vmul.f32 %v27, %v26
  %v29 = vmul.f32 0.5, %v28
  %v30 = vsub.f32 1.5, %v29
  %v31 = vmul.f32 %v26, %v30
  %vm32 = vweird.f32 %v25
  %vm33 = vweird.f32 %v26
  %vm34 = vmor %vm32, %vm33
  %v35 = vsel %vm34, %v26, %v31
  %v36 = vmul.f32 %v24, %v35
  %v37 = vld [vmem:[%s3] sm:$0x1]
  %v38 = vmul.f32 %v18, %v36
  %v39 = vsub.f32 %v37, %v38
  %v40 = vld [vmem:[%s0] sm:$0x3]
  %v42 = vperm.slane %v36, 0
  %v44 = vmul.f32 %v40, %v42
  %v46 = vperm.slane %v39, 0
  %v48 = vadd.f32 %v44, %v46
  %v49 = vmax.f32 %v48, 0.0
  %50 = vst [vmem:[%s4] sm:$0x3] %v49
  // Predicated region
  $region18: #{_lambda_.66} parent=0 // pred_check
    _
  $region19: #{_lambda_.66} parent=0 // pred_check_branch
    %52 = sbr.rel (0) target = $region21
  $region20: #{_lambda_.66} parent=0 // pred_region
    _
  $region21: #{_lambda_.66} parent=0 // pred_fallthru
    _
  // Predicated region
  $region22: #{_lambda_.66} parent=0 // pred_check
    _
  $region23: #{_lambda_.66} parent=0 // pred_check_branch
    %54 = sbr.rel (0) target = $region25
  $region24: #{_lambda_.66} parent=0 // pred_region
    _
  $region25: #{_lambda_.66} parent=0 // pred_fallthru
    _

// kernel: _lambda_.63
$region0: #{_lambda_.63}
  #allocation0 [shape = 'u32[]', space=smem, size = 0x4, offset = 0x4, fixed_abs, tag = 'smem constant byte address 0x4 - core index']
  #allocation1 [shape = 'u32[72,128]{1,0:T(1,128)}', space=vmem, size = 0x9000, scoped, tag = 'internal scratch']
  #allocation2 [shape = 'f32[2,128]{1,0:T(2,128)}', space=vmem, size = 0x400, scoped, tag = 'scratch operand']
  %s0 = inlined_call_operand.vmem [shape: bf16[2,1152], index: 0, kind: input, shape index: {}]
  %s1 = inlined_call_operand.vmem [shape: bf16[1152,128], index: 1, kind: input, shape index: {}]
  %s2 = inlined_call_operand.vmem [shape: f32[2,128], index: 2, kind: output, shape index: {0}]
  %s3 = inlined_call_operand.vmem [shape: f32[1,2,128], index: 3, kind: output, shape index: {1}]
  %4 = xla_tuple %s2, %s3
  %s5 = sld [smem:[#allocation0]]
  $region57: #{_lambda_.63} parent=0
    _
  %s7 = ssub.s32 1, %s5
  %s8 = scalar_select 0, %s7, %s5
  loop: start=0, step=1, limit=5
  $region2: #{_lambda_.63} parent=0 // loop_pre_header
    _
  $region3: #{_lambda_.63} parent=0 // loop_header
    %s10 = sphi 0, %s14
    %p11 = scmp.ge.s32.totalorder %s10, 5
    %s17 = sphi 0, %s29
    %s18 = sphi 0, %s25
    %s19 = sphi 0, %s17
    %s20 = sphi 0, %s18
    %s21 = sphi 0, %s19
    %s22 = sphi 0, %s20
    %s34 = sphi 0, %s36
    %s37 = sphi 0, %s34
    %s38 = sphi 0, %s37
    %s54 = sphi 0, %s38
    %s60 = sphi 0, %s62
    %s63 = sphi 0, %s60
    %s64 = sphi 0, %s63
    %s80 = sphi 0, %s64
    %s86 = sphi 0, %s88
    %s89 = sphi 0, %s86
    %s90 = sphi 0, %s89
    %s106 = sphi 0, %s90
    %s112 = sphi 0, %s114
    %s115 = sphi 0, %s112
    %s116 = sphi 0, %s115
    %s132 = sphi 0, %s116
  $region4: #{_lambda_.63} parent=0 // loop_header_branch
    %13 = sbr.rel (%p11) target = $region8
  $region5: #{_lambda_.63} parent=0 // loop_body
    %s15 = ssub.s32 %s10, 1
    %s16 = ssub.s32 %s10, 2
    %s23 = sadd.s32 1, %s18
    %p24 = scmp.ge.s32.totalorder %s23, 3
    %s25 = scalar_select %p24, 0, %s23
    %s26 = sadd.s32 1, %s17
    %s27 = scalar_select %p24, %s26, %s17
    %p28 = scmp.ge.s32.totalorder %s27, 1
    %s29 = scalar_select %p28, 0, %s27
    %s30 = ssub.s32 %s17, %s29
    %s31 = ssub.s32 %s18, %s25
    %s32 = sor.u32 %s30, %s31
    %p33 = scmp.eq.s32.totalorder %s32, 0
    %s35 = sadd.s32 %s34, 1
    %s36 = scalar_select %p33, %s34, %s35
    %p39 = pneg %p33
    %p40 = scmp.eq.s32.totalorder %s10, 2
    %p41 = por %p39, %p40
    %p42 = scmp.ne.s32.totalorder %s34, %s37
    %p43 = scmp.eq.s32.totalorder %s10, 0
    %p44 = por %p42, %p43
    %p45 = scmp.ne.s32.totalorder %s34, %s37
    %p46 = scmp.eq.s32.totalorder %s15, 2
    %p47 = por %p45, %p46
    %p48 = scmp.ne.s32.totalorder %s37, %s38
    %p49 = scmp.eq.s32.totalorder %s15, 0
    %p50 = por %p48, %p49
    %p51 = scmp.ne.s32.totalorder %s37, %s38
    %p52 = scmp.eq.s32.totalorder %s16, 2
    %p53 = por %p51, %p52
    %p55 = scmp.ne.s32.totalorder %s38, %s54
    %p56 = scmp.eq.s32.totalorder %s16, 0
    %p57 = por %p55, %p56
    %s58 = ssub.s32 %s18, %s25
    %p59 = scmp.eq.s32.totalorder %s58, 0
    %s61 = sadd.s32 %s60, 1
    %s62 = scalar_select %p59, %s60, %s61
    %p65 = pneg %p59
    %p66 = scmp.eq.s32.totalorder %s10, 2
    %p67 = por %p65, %p66
    %p68 = scmp.ne.s32.totalorder %s60, %s63
    %p69 = scmp.eq.s32.totalorder %s10, 0
    %p70 = por %p68, %p69
    %p71 = scmp.ne.s32.totalorder %s60, %s63
    %p72 = scmp.eq.s32.totalorder %s15, 2
    %p73 = por %p71, %p72
    %p74 = scmp.ne.s32.totalorder %s63, %s64
    %p75 = scmp.eq.s32.totalorder %s15, 0
    %p76 = por %p74, %p75
    %p77 = scmp.ne.s32.totalorder %s63, %s64
    %p78 = scmp.eq.s32.totalorder %s16, 2
    %p79 = por %p77, %p78
    %p81 = scmp.ne.s32.totalorder %s64, %s80
    %p82 = scmp.eq.s32.totalorder %s16, 0
    %p83 = por %p81, %p82
    %s84 = ssub.s32 %s17, %s29
    %p85 = scmp.eq.s32.totalorder %s84, 0
    %s87 = sadd.s32 %s86, 1
    %s88 = scalar_select %p85, %s86, %s87
    %p91 = pneg %p85
    %p92 = scmp.eq.s32.totalorder %s10, 2
    %p93 = por %p91, %p92
    %p94 = scmp.ne.s32.totalorder %s86, %s89
    %p95 = scmp.eq.s32.totalorder %s10, 0
    %p96 = por %p94, %p95
    %p97 = scmp.ne.s32.totalorder %s86, %s89
    %p98 = scmp.eq.s32.totalorder %s15, 2
    %p99 = por %p97, %p98
    %p100 = scmp.ne.s32.totalorder %s89, %s90
    %p101 = scmp.eq.s32.totalorder %s15, 0
    %p102 = por %p100, %p101
    %p103 = scmp.ne.s32.totalorder %s89, %s90
    %p104 = scmp.eq.s32.totalorder %s16, 2
    %p105 = por %p103, %p104
    %p107 = scmp.ne.s32.totalorder %s90, %s106
    %p108 = scmp.eq.s32.totalorder %s16, 0
    %p109 = por %p107, %p108
    %s110 = ssub.s32 %s17, %s29
    %p111 = scmp.eq.s32.totalorder %s110, 0
    %s113 = sadd.s32 %s112, 1
    %s114 = scalar_select %p111, %s112, %s113
    %p117 = pneg %p111
    %p118 = scmp.eq.s32.totalorder %s10, 2
    %p119 = por %p117, %p118
    %p120 = scmp.ne.s32.totalorder %s112, %s115
    %p121 = scmp.eq.s32.totalorder %s10, 0
    %p122 = por %p120, %p121
    %p123 = scmp.ne.s32.totalorder %s112, %s115
    %p124 = scmp.eq.s32.totalorder %s15, 2
    %p125 = por %p123, %p124
    %p126 = scmp.ne.s32.totalorder %s115, %s116
    %p127 = scmp.eq.s32.totalorder %s15, 0
    %p128 = por %p126, %p127
    %p129 = scmp.ne.s32.totalorder %s115, %s116
    %p130 = scmp.eq.s32.totalorder %s16, 2
    %p131 = por %p129, %p130
    %p133 = scmp.ne.s32.totalorder %s116, %s132
    %p134 = scmp.eq.s32.totalorder %s16, 0
    %p135 = por %p133, %p134
    %p136 = scmp.le.s32.totalorder 1, %s10
    %p137 = scmp.lt.s32.totalorder %s10, 4
    %p138 = pnand %p136, %p137
    %p139 = pneg %p138
    // Predicated region
    $region9: #{_lambda_.63} parent=5 // pred_check
      _
    $region10: #{_lambda_.63} parent=5 // pred_check_branch
      %141 = sbr.rel (%p138) target = $region12
    $region11: #{_lambda_.63} parent=5 // pred_region
      %s142 = ssub.s32 %s10, 1
    $region12: #{_lambda_.63} parent=5 // pred_fallthru
      _
    %p143 = scmp.lt.s32.totalorder %s10, 3
    // Predicated region
    $region13: #{_lambda_.63} parent=5 // pred_check
      %p144 = pneg %p143
    $region14: #{_lambda_.63} parent=5 // pred_check_branch
      %146 = sbr.rel (%p144) target = $region16
    $region15: #{_lambda_.63} parent=5 // pred_region
      // Predicated region
      $region17: #{_lambda_.63} parent=15 // pred_check
        %p147 = pneg %p44
      $region18: #{_lambda_.63} parent=15 // pred_check_branch
        %149 = sbr.rel (%p147) target = $region20
      $region19: #{_lambda_.63} parent=15 // pred_region
        %s150 = smul.u32 3, %s18
        %p151 = scmp.lt.s32.totalorder %s17, 0
        %s152 = scalar_select %p151, %s17, 0
        %p153 = scmp.lt.s32.totalorder %s150, 8
        %s154 = scalar_select %p153, %s150, 8
        %s155 = smul.addr %s152, 9
        %s156 = sadd.s32 %s154, %s155
        %s157 = scalar_lea.vmem %s0, %s156
        %s158 = smul.u32 3, %s18
      $region20: #{_lambda_.63} parent=15 // pred_fallthru
        _
      // Predicated region
      $region21: #{_lambda_.63} parent=15 // pred_check
        %p159 = pneg %p70
      $region22: #{_lambda_.63} parent=15 // pred_check_branch
        %161 = sbr.rel (%p159) target = $region24
      $region23: #{_lambda_.63} parent=15 // pred_region
        %s162 = smul.u32 48, %s18
        %p163 = scmp.lt.s32.totalorder %s162, 143
        %s164 = scalar_select %p163, %s162, 143
        %s165 = smul.addr %s164, 4
        %s166 = scalar_lea.vmem %s1, %s165
        %s167 = smul.u32 48, %s18
      $region24: #{_lambda_.63} parent=15 // pred_fallthru
        _
    $region16: #{_lambda_.63} parent=5 // pred_fallthru
      _
    %p168 = scmp.le.s32.totalorder 1, %s10
    %p169 = scmp.lt.s32.totalorder %s10, 4
    %p170 = pnand %p168, %p169
    %p171 = pneg %p170
    // Predicated region
    $region25: #{_lambda_.63} parent=5 // pred_check
      _
    $region26: #{_lambda_.63} parent=5 // pred_check_branch
      %173 = sbr.rel (%p170) target = $region28
    $region27: #{_lambda_.63} parent=5 // pred_region
      %s174 = ssub.s32 %s10, 1
      %s175 = smul.u32 3, %s20
      %p176 = scmp.lt.s32.totalorder %s19, 0
      %s177 = scalar_select %p176, %s19, 0
      %p178 = scmp.lt.s32.totalorder %s175, 8
      %s179 = scalar_select %p178, %s175, 8
      %s180 = smul.addr %s177, 9
      %s181 = sadd.s32 %s179, %s180
      %s182 = scalar_lea.vmem %s0, %s181
      %p183 = pneg %p50
      %p184 = pneg %p47
      %s185 = smul.u32 48, %s20
      %p186 = scmp.lt.s32.totalorder %s185, 143
      %s187 = scalar_select %p186, %s185, 143
      %s188 = smul.addr %s187, 4
      %s189 = scalar_lea.vmem %s1, %s188
      %p190 = pneg %p76
      %p191 = pneg %p73
      %p192 = pneg %p102
      %p193 = pneg %p99
      %p194 = scmp.lt.s32.totalorder %s19, 0
      %s195 = scalar_select %p194, %s19, 0
      %s196 = smul.addr %s195, 2
      %s197 = scalar_lea.vmem %s2, %s196
      %p198 = pneg %p128
      %p199 = pneg %p125
      %p200 = scmp.lt.s32.totalorder %s19, 0
      %s201 = scalar_select %p200, %s19, 0
      %s202 = smul.addr %s201, 2
      %s203 = scalar_lea.vmem %s3, %s202
      %s204 = smul.u32 3, %s20
      %p205 = scmp.lt.s32.totalorder %s19, 0
      %s206 = scalar_select %p205, %s19, 0
      %p207 = scmp.lt.s32.totalorder %s204, 8
      %s208 = scalar_select %p207, %s204, 8
      %s209 = smul.addr %s206, 9
      %s210 = sadd.s32 %s208, %s209
      %s211 = scalar_lea.vmem %s0, %s210
      %s212 = smul.u32 3, %s20
      %s213 = smul.u32 48, %s20
      %p214 = scmp.lt.s32.totalorder %s213, 143
      %s215 = scalar_select %p214, %s213, 143
      %s216 = smul.addr %s215, 4
      %s217 = scalar_lea.vmem %s1, %s216
      %s218 = smul.u32 48, %s20
      %p219 = scmp.lt.s32.totalorder %s19, 0
      %s220 = scalar_select %p219, %s19, 0
      %s221 = smul.addr %s220, 2
      %s222 = scalar_lea.vmem %s2, %s221
      %p223 = scmp.lt.s32.totalorder %s19, 0
      %s224 = scalar_select %p223, %s19, 0
      %s225 = smul.addr %s224, 2
      %s226 = scalar_lea.vmem %s3, %s225
      %p227 = scmp.eq.s32.totalorder %s20, 0
      // Predicated region
      $region29: #{_lambda_.63} parent=27 // pred_check
        %p228 = pneg %p227
      $region30: #{_lambda_.63} parent=27 // pred_check_branch
        %230 = sbr.rel (%p228) target = $region32
      $region31: #{_lambda_.63} parent=27 // pred_region
        %231 = vst [vmem:[#allocation2] sm:$0x3] 0.0
      $region32: #{_lambda_.63} parent=27 // pred_fallthru
        _
      %v232 = vld [vmem:[#allocation2] sm:$0x3]
      %v233 = vld [vmem:[%s211] sm:$0x7]
      %v234 = vld [vmem:[%s217] sm:$0xf]
      %v235 = vld [vmem:[%s217 + $0x4] sm:$0xf]
      %v236 = vld [vmem:[%s217 + $0x8] sm:$0xf]
      %v237 = vld [vmem:[%s217 + $0xc] sm:$0xf]
      %v238 = vld [vmem:[%s217 + $0x10] sm:$0xf]
      %v239 = vld [vmem:[%s217 + $0x14] sm:$0xf]
      %v240 = vld [vmem:[%s217 + $0x18] sm:$0xf]
      %v241 = vld [vmem:[%s217 + $0x1c] sm:$0xf]
      %v242 = vld [vmem:[%s217 + $0x20] sm:$0xf]
      %v243 = vld [vmem:[%s217 + $0x24] sm:$0xf]
      %v244 = vld [vmem:[%s217 + $0x28] sm:$0xf]
      %v245 = vld [vmem:[%s217 + $0x2c] sm:$0xf]
      %v246 = vld [vmem:[%s217 + $0x30] sm:$0xf]
      %v247 = vld [vmem:[%s217 + $0x34] sm:$0xf]
      %v248 = vld [vmem:[%s217 + $0x38] sm:$0xf]
      %v249 = vld [vmem:[%s217 + $0x3c] sm:$0xf]
      %v250 = vld [vmem:[%s217 + $0x40] sm:$0xf]
      %v251 = vld [vmem:[%s217 + $0x44] sm:$0xf]
      %v252 = vld [vmem:[%s217 + $0x48] sm:$0xf]
      %v253 = vld [vmem:[%s217 + $0x4c] sm:$0xf]
      %v254 = vld [vmem:[%s217 + $0x50] sm:$0xf]
      %v255 = vld [vmem:[%s217 + $0x54] sm:$0xf]
      %v256 = vld [vmem:[%s217 + $0x58] sm:$0xf]
      %v257 = vld [vmem:[%s217 + $0x5c] sm:$0xf]
      %v258 = vld [vmem:[%s217 + $0x60] sm:$0xf]
      %v259 = vld [vmem:[%s217 + $0x64] sm:$0xf]
      %v260 = vld [vmem:[%s217 + $0x68] sm:$0xf]
      %v261 = vld [vmem:[%s217 + $0x6c] sm:$0xf]
      %v262 = vld [vmem:[%s217 + $0x70] sm:$0xf]
      %v263 = vld [vmem:[%s217 + $0x74] sm:$0xf]
      %v264 = vld [vmem:[%s217 + $0x78] sm:$0xf]
      %v265 = vld [vmem:[%s217 + $0x7c] sm:$0xf]
      %v266 = vld [vmem:[%s217 + $0x80] sm:$0xf]
      %v267 = vld [vmem:[%s217 + $0x84] sm:$0xf]
      %v268 = vld [vmem:[%s217 + $0x88] sm:$0xf]
      %v269 = vld [vmem:[%s217 + $0x8c] sm:$0xf]
      %v270 = vld [vmem:[%s217 + $0x90] sm:$0xf]
      %v271 = vld [vmem:[%s217 + $0x94] sm:$0xf]
      %v272 = vld [vmem:[%s217 + $0x98] sm:$0xf]
      %v273 = vld [vmem:[%s217 + $0x9c] sm:$0xf]
      %v274 = vld [vmem:[%s217 + $0xa0] sm:$0xf]
      %v275 = vld [vmem:[%s217 + $0xa4] sm:$0xf]
      %v276 = vld [vmem:[%s217 + $0xa8] sm:$0xf]
      %v277 = vld [vmem:[%s217 + $0xac] sm:$0xf]
      %v278 = vld [vmem:[%s217 + $0xb0] sm:$0xf]
      %v279 = vld [vmem:[%s217 + $0xb4] sm:$0xf]
      %v280 = vld [vmem:[%s217 + $0xb8] sm:$0xf]
      %v281 = vld [vmem:[%s217 + $0xbc] sm:$0xf]
      %283 = vst [vmem:[#allocation1] ss:$9 sm:$0xff] %v233
      %v284 = vld [vmem:[#allocation1] sm:$0xff]
      %v285 = vld [vmem:[#allocation1 + $0x9] sm:$0xff]
      %v286 = vld [vmem:[#allocation1 + $0x12] sm:$0xff]
      %v338 = vunpack.c.l.b16 %v234
      %v339 = vunpack.c.l.b16 %v235
      %v340 = vunpack.c.l.b16 %v236
      %v341 = vunpack.c.l.b16 %v237
      %v342 = vunpack.c.l.b16 %v238
      %v343 = vunpack.c.l.b16 %v239
      %v344 = vunpack.c.l.b16 %v240
      %v345 = vunpack.c.l.b16 %v241
      %v346 = vunpack.c.l.b16 %v242
      %v347 = vunpack.c.l.b16 %v243
      %v348 = vunpack.c.l.b16 %v244
      %v349 = vunpack.c.l.b16 %v245
      %v350 = vunpack.c.l.b16 %v246
      %v351 = vunpack.c.l.b16 %v247
      %v352 = vunpack.c.l.b16 %v248
      %v353 = vunpack.c.l.b16 %v249
      %v354 = vunpack.c.l.b16 %v250
      %v355 = vunpack.c.l.b16 %v251
      %v356 = vunpack.c.l.b16 %v252
      %v357 = vunpack.c.l.b16 %v253
      %v358 = vunpack.c.l.b16 %v254
      %v359 = vunpack.c.l.b16 %v255
      %v360 = vunpack.c.l.b16 %v256
      %v361 = vunpack.c.l.b16 %v257
      %v362 = vunpack.c.l.b16 %v258
      %v363 = vunpack.c.l.b16 %v259
      %v364 = vunpack.c.l.b16 %v260
      %v365 = vunpack.c.l.b16 %v261
      %v366 = vunpack.c.l.b16 %v262
      %v367 = vunpack.c.l.b16 %v263
      %v368 = vunpack.c.l.b16 %v264
      %v369 = vunpack.c.l.b16 %v265
      %v370 = vunpack.c.l.b16 %v266
      %v371 = vunpack.c.l.b16 %v267
      %v372 = vunpack.c.l.b16 %v268
      %v373 = vunpack.c.l.b16 %v269
      %v374 = vunpack.c.l.b16 %v270
      %v375 = vunpack.c.l.b16 %v271
      %v376 = vunpack.c.l.b16 %v272
      %v377 = vunpack.c.l.b16 %v273
      %v378 = vunpack.c.l.b16 %v274
      %v379 = vunpack.c.l.b16 %v275
      %v380 = vunpack.c.l.b16 %v276
      %v381 = vunpack.c.l.b16 %v277
      %v382 = vunpack.c.l.b16 %v278
      %v383 = vunpack.c.l.b16 %v279
      %v384 = vunpack.c.l.b16 %v280
      %v385 = vunpack.c.l.b16 %v281
      %v386 = vpack.c.b16 %v339, %v338
      %v387 = vpack.c.b16 %v341, %v340
      %v388 = vpack.c.b16 %v343, %v342
      %v389 = vpack.c.b16 %v345, %v344
      %v390 = vpack.c.b16 %v347, %v346
      %v391 = vpack.c.b16 %v349, %v348
      %v392 = vpack.c.b16 %v351, %v350
      %v393 = vpack.c.b16 %v353, %v352
      %v394 = vpack.c.b16 %v355, %v354
      %v395 = vpack.c.b16 %v357, %v356
      %v396 = vpack.c.b16 %v359, %v358
      %v397 = vpack.c.b16 %v361, %v360
      %v398 = vpack.c.b16 %v363, %v362
      %v399 = vpack.c.b16 %v365, %v364
      %v400 = vpack.c.b16 %v367, %v366
      %v401 = vpack.c.b16 %v369, %v368
      %v402 = vpack.c.b16 %v371, %v370
      %v403 = vpack.c.b16 %v373, %v372
      %v404 = vpack.c.b16 %v375, %v374
      %v405 = vpack.c.b16 %v377, %v376
      %v406 = vpack.c.b16 %v379, %v378
      %v407 = vpack.c.b16 %v381, %v380
      %v408 = vpack.c.b16 %v383, %v382
      %v409 = vpack.c.b16 %v385, %v384
      %434 = vmatpush.bf16.msra.mxu0 %v393
      %435 = vmatpush.bf16.msra.mxu0 %v392
      %436 = vmatpush.bf16.msra.mxu0 %v391
      %437 = vmatpush.bf16.msra.mxu0 %v390
      %438 = vmatpush.bf16.msra.mxu0 %v389
      %439 = vmatpush.bf16.msra.mxu0 %v388
      %440 = vmatpush.bf16.msra.mxu0 %v387
      %441 = vmatpush.bf16.msra.mxu0 %v386
      %442 = vmatmul.bf16.gmra.mxu0 %v284
      %v443 = vpop.f32.mrf.mxu0
      %v444 = vadd.f32 0.0, %v443
      %v445 = vpop.f32.mrf.mxu0
      %446 = vdwg.mxu0
      %447 = vmatpush.bf16.msra.mxu0 %v401
      %448 = vmatpush.bf16.msra.mxu0 %v400
      %449 = vmatpush.bf16.msra.mxu0 %v399
      %450 = vmatpush.bf16.msra.mxu0 %v398
      %451 = vmatpush.bf16.msra.mxu0 %v397
      %452 = vmatpush.bf16.msra.mxu0 %v396
      %453 = vmatpush.bf16.msra.mxu0 %v395
      %454 = vmatpush.bf16.msra.mxu0 %v394
      %455 = vmatmul.bf16.gmra.mxu0 %v285
      %v456 = vpop.f32.mrf.mxu0
      %v457 = vadd.f32 %v444, %v456
      %v458 = vpop.f32.mrf.mxu0
      %459 = vdwg.mxu0
      %460 = vmatpush.bf16.msra.mxu0 %v409
      %461 = vmatpush.bf16.msra.mxu0 %v408
      %462 = vmatpush.bf16.msra.mxu0 %v407
      %463 = vmatpush.bf16.msra.mxu0 %v406
      %464 = vmatpush.bf16.msra.mxu0 %v405
      %465 = vmatpush.bf16.msra.mxu0 %v404
      %466 = vmatpush.bf16.msra.mxu0 %v403
      %467 = vmatpush.bf16.msra.mxu0 %v402
      %468 = vmatmul.bf16.gmra.mxu0 %v286
      %v469 = vpop.f32.mrf.mxu0
      %v470 = vadd.f32 %v457, %v469
      %v471 = vpop.f32.mrf.mxu0
      %472 = vdwg.mxu0
      %v473 = vadd.f32 %v232, %v470
      %474 = vst [vmem:[#allocation2] sm:$0x3] %v473
      %p475 = scmp.eq.s32.totalorder %s20, 2
      // Predicated region
      $region33: #{_lambda_.63} parent=27 // pred_check
        %p476 = pneg %p475
      $region34: #{_lambda_.63} parent=27 // pred_check_branch
        %478 = sbr.rel (%p476) target = $region36
      $region35: #{_lambda_.63} parent=27 // pred_region
        %v479 = vld [vmem:[#allocation2] sm:$0x3]
        %480 = vst [vmem:[%s222] sm:$0x3] %v479
        %vm481 = vcmask 1041408
        %v482 = vsel %vm481, %v479, 0.0
        %v483 = vrot.slane %v482, 4
        %v484 = vadd.f32 %v482, %v483
        %v485 = vrot.slane %v484, 2
        %v486 = vadd.f32 %v484, %v485
        %v487 = vrot.slane %v486, 1
        %v488 = vadd.f32 %v486, %v487
        %489 = vst [vmem:[%s226] sm:$0x1] %v488
        %v490 = vmul.f32 %v479, %v479
        %v491 = vsel %vm481, %v490, 0.0
        %v492 = vrot.slane %v491, 4
        %v493 = vadd.f32 %v491, %v492
        %v494 = vrot.slane %v493, 2
        %v495 = vadd.f32 %v493, %v494
        %v496 = vrot.slane %v495, 1
        %v497 = vadd.f32 %v495, %v496
        %498 = vst [vmem:[%s226 + $0x1] sm:$0x1] %v497
      $region36: #{_lambda_.63} parent=27 // pred_fallthru
        _
      %p499 = scmp.lt.s32.totalorder %s19, 0
      %s500 = scalar_select %p499, %s19, 0
      %s501 = smul.addr %s500, 2
      %s502 = scalar_lea.vmem %s2, %s501
      %p503 = scmp.lt.s32.totalorder %s19, 0
      %s504 = scalar_select %p503, %s19, 0
      %s505 = smul.addr %s504, 2
      %s506 = scalar_lea.vmem %s3, %s505
      // Predicated region
      $region37: #{_lambda_.63} parent=27 // pred_check
        %p507 = pneg %p99
      $region38: #{_lambda_.63} parent=27 // pred_check_branch
        %509 = sbr.rel (%p507) target = $region40
      $region39: #{_lambda_.63} parent=27 // pred_region
        _
      $region40: #{_lambda_.63} parent=27 // pred_fallthru
        _
      // Predicated region
      $region41: #{_lambda_.63} parent=27 // pred_check
        %p510 = pneg %p125
      $region42: #{_lambda_.63} parent=27 // pred_check_branch
        %512 = sbr.rel (%p510) target = $region44
      $region43: #{_lambda_.63} parent=27 // pred_region
        _
      $region44: #{_lambda_.63} parent=27 // pred_fallthru
        _
      // Predicated region
      $region45: #{_lambda_.63} parent=27 // pred_check
        %p513 = pneg %p99
      $region46: #{_lambda_.63} parent=27 // pred_check_branch
        %515 = sbr.rel (%p513) target = $region48
      $region47: #{_lambda_.63} parent=27 // pred_region
        %p516 = scmp.lt.s32.totalorder %s19, 0
        %s517 = scalar_select %p516, %s19, 0
        %s518 = smul.addr %s517, 2
        %s519 = scalar_lea.vmem %s2, %s518
      $region48: #{_lambda_.63} parent=27 // pred_fallthru
        _
      // Predicated region
      $region49: #{_lambda_.63} parent=27 // pred_check
        %p520 = pneg %p125
      $region50: #{_lambda_.63} parent=27 // pred_check_branch
        %522 = sbr.rel (%p520) target = $region52
      $region51: #{_lambda_.63} parent=27 // pred_region
        %p523 = scmp.lt.s32.totalorder %s19, 0
        %s524 = scalar_select %p523, %s19, 0
        %s525 = smul.addr %s524, 2
        %s526 = scalar_lea.vmem %s3, %s525
      $region52: #{_lambda_.63} parent=27 // pred_fallthru
        _
    $region28: #{_lambda_.63} parent=5 // pred_fallthru
      _
    %p527 = scmp.le.s32.totalorder 2, %s10
    // Predicated region
    $region53: #{_lambda_.63} parent=5 // pred_check
      %p528 = pneg %p527
    $region54: #{_lambda_.63} parent=5 // pred_check_branch
      %530 = sbr.rel (%p528) target = $region56
    $region55: #{_lambda_.63} parent=5 // pred_region
      %s531 = ssub.s32 %s10, 2
    $region56: #{_lambda_.63} parent=5 // pred_fallthru
      _
  $region6: #{_lambda_.63} parent=0 // loop_footer
    %s14 = sadd.s32 1, %s10
  $region7: #{_lambda_.63} parent=0 // loop_footer_branch
    %9 = sbr.rel target = $region3
  $region8: #{_lambda_.63} parent=0 // loop_exit
    _

// kernel: _lambda_.64
$region0: #{_lambda_.64}
  #allocation0 [shape = 'u32[]', space=smem, size = 0x4, offset = 0x4, fixed_abs, tag = 'smem constant byte address 0x4 - core index']
  #allocation1 [shape = 'u32[72,128]{1,0:T(1,128)}', space=vmem, size = 0x9000, scoped, tag = 'internal scratch']
  %s0 = inlined_call_operand.vmem [shape: f32[2,128], index: 0, kind: input, shape index: {}]
  %s1 = inlined_call_operand.vmem [shape: f32[2,128], index: 1, kind: input, shape index: {}]
  %s2 = inlined_call_operand.vmem [shape: f32[1,128], index: 2, kind: input, shape index: {}]
  %s3 = inlined_call_operand.vmem [shape: f32[1,128], index: 3, kind: input, shape index: {}]
  %s4 = inlined_call_operand.vmem [shape: f32[2,128], index: 4, kind: output, shape index: {}]
  %s5 = sld [smem:[#allocation0]]
  $region26: #{_lambda_.64} parent=0
    _
  %s7 = ssub.s32 1, %s5
  %s8 = scalar_select 0, %s7, %s5
  // Predicated region
  $region2: #{_lambda_.64} parent=0 // pred_check
    _
  $region3: #{_lambda_.64} parent=0 // pred_check_branch
    %10 = sbr.rel (0) target = $region5
  $region4: #{_lambda_.64} parent=0 // pred_region
    _
  $region5: #{_lambda_.64} parent=0 // pred_fallthru
    _
  // Predicated region
  $region6: #{_lambda_.64} parent=0 // pred_check
    _
  $region7: #{_lambda_.64} parent=0 // pred_check_branch
    %12 = sbr.rel (0) target = $region9
  $region8: #{_lambda_.64} parent=0 // pred_region
    _
  $region9: #{_lambda_.64} parent=0 // pred_fallthru
    _
  // Predicated region
  $region10: #{_lambda_.64} parent=0 // pred_check
    _
  $region11: #{_lambda_.64} parent=0 // pred_check_branch
    %14 = sbr.rel (0) target = $region13
  $region12: #{_lambda_.64} parent=0 // pred_region
    _
  $region13: #{_lambda_.64} parent=0 // pred_fallthru
    _
  // Predicated region
  $region14: #{_lambda_.64} parent=0 // pred_check
    _
  $region15: #{_lambda_.64} parent=0 // pred_check_branch
    %16 = sbr.rel (0) target = $region17
  $region16: #{_lambda_.64} parent=0 // pred_region
    _
  $region17: #{_lambda_.64} parent=0 // pred_fallthru
    _
  %v17 = vld [vmem:[%s1] sm:$0x1]
  %v18 = vmul.f32 %v17, 0.5
  %v19 = vld [vmem:[%s1 + $0x1] sm:$0x1]
  %v20 = vmul.f32 %v19, 0.5
  %v21 = vmul.f32 %v18, %v18
  %v22 = vsub.f32 %v20, %v21
  %v23 = vmax.f32 %v22, 0.0
  %v24 = vld [vmem:[%s2] sm:$0x1]
  %v25 = vadd.f32 %v23, 1e-05
  %v26 = vrsqrt.pop %v25
  %v27 = vmul.f32 %v26, %v25
  %v28 = vmul.f32 %v27, %v26
  %v29 = vmul.f32 0.5, %v28
  %v30 = vsub.f32 1.5, %v29
  %v31 = vmul.f32 %v26, %v30
  %vm32 = vweird.f32 %v25
  %vm33 = vweird.f32 %v26
  %vm34 = vmor %vm32, %vm33
  %v35 = vsel %vm34, %v26, %v31
  %v36 = vmul.f32 %v24, %v35
  %v37 = vld [vmem:[%s3] sm:$0x1]
  %v38 = vmul.f32 %v18, %v36
  %v39 = vsub.f32 %v37, %v38
  %v40 = vld [vmem:[%s0] sm:$0x3]
  %v42 = vperm.slane %v36, 0
  %v44 = vmul.f32 %v40, %v42
  %v46 = vperm.slane %v39, 0
  %v48 = vadd.f32 %v44, %v46
  %49 = vst [vmem:[%s4] sm:$0x3] %v48
  // Predicated region
  $region18: #{_lambda_.64} parent=0 // pred_check
    _
  $region19: #{_lambda_.64} parent=0 // pred_check_branch
    %51 = sbr.rel (0) target = $region21
  $region20: #{_lambda_.64} parent=0 // pred_region
    _
  $region21: #{_lambda_.64} parent=0 // pred_fallthru
    _
  // Predicated region
  $region22: #{_lambda_.64} parent=0 // pred_check
    _
  $region23: #{_lambda_.64} parent=0 // pred_check_branch
    %53 = sbr.rel (0) target = $region25
  $region24: #{_lambda_.64} parent=0 // pred_region
    _
  $region25: #{_lambda_.64} parent=0 // pred_fallthru
    _

// kernel: _lambda_.83
$region0: #{_lambda_.83}
  #allocation0 [shape = 'u32[]', space=smem, size = 0x4, offset = 0x4, fixed_abs, tag = 'smem constant byte address 0x4 - core index']
  #allocation1 [shape = 'u32[72,128]{1,0:T(1,128)}', space=vmem, size = 0x9000, scoped, tag = 'internal scratch']
  %s0 = inlined_call_operand.vmem [shape: f32[2,1,128], index: 0, kind: input, shape index: {}]
  %s1 = inlined_call_operand.vmem [shape: f32[128,128], index: 1, kind: input, shape index: {}]
  %s2 = inlined_call_operand.vmem [shape: f32[1,128], index: 2, kind: input, shape index: {}]
  %s3 = inlined_call_operand.hbm [shape: f32[2,128], index: 3, kind: output, shape index: {}]
  %s4 = sld [smem:[#allocation0]]
  $region22: #{_lambda_.83} parent=0
    _
  %s6 = ssub.s32 1, %s4
  %s7 = scalar_select 0, %s6, %s4
  $region1: #{_lambda_.83} parent=0
    #allocation2 [shape = 'u8[1024]{0}', space=vmem, size = 0x400, scoped, tag = 'output window, operand 0, single buffered']
    #allocation3 [shape = 's32[1]{0}', space=sflag, size = 0x4, scoped, tag = 'scoped memory for _lambda_.83']
    %8 = vsyncpa [#allocation3], 0
    // Predicated region
    $region2: #{_lambda_.83} parent=1 // pred_check
      _
    $region3: #{_lambda_.83} parent=1 // pred_check_branch
      %10 = sbr.rel (0) target = $region5
    $region4: #{_lambda_.83} parent=1 // pred_region
      _
    $region5: #{_lambda_.83} parent=1 // pred_fallthru
      _
    // Predicated region
    $region6: #{_lambda_.83} parent=1 // pred_check
      _
    $region7: #{_lambda_.83} parent=1 // pred_check_branch
      %12 = sbr.rel (0) target = $region9
    $region8: #{_lambda_.83} parent=1 // pred_region
      _
    $region9: #{_lambda_.83} parent=1 // pred_fallthru
      _
    // Predicated region
    $region10: #{_lambda_.83} parent=1 // pred_check
      _
    $region11: #{_lambda_.83} parent=1 // pred_check_branch
      %14 = sbr.rel (0) target = $region13
    $region12: #{_lambda_.83} parent=1 // pred_region
      _
    $region13: #{_lambda_.83} parent=1 // pred_fallthru
      _
    %v15 = vld [vmem:[%s0] sm:$0x1]
    %v16 = vld [vmem:[%s0 + $0x1] sm:$0x1]
    %v17 = vadd.f32 %v15, 0.0
    %v18 = vadd.f32 %v16, 0.0
    %v19 = vld [vmem:[%s1] sm:$0xff]
    %v20 = vld [vmem:[%s1 + $0x8] sm:$0xff]
    %v21 = vld [vmem:[%s1 + $0x10] sm:$0xff]
    %v22 = vld [vmem:[%s1 + $0x18] sm:$0xff]
    %v23 = vld [vmem:[%s1 + $0x20] sm:$0xff]
    %v24 = vld [vmem:[%s1 + $0x28] sm:$0xff]
    %v25 = vld [vmem:[%s1 + $0x30] sm:$0xff]
    %v26 = vld [vmem:[%s1 + $0x38] sm:$0xff]
    %v27 = vld [vmem:[%s1 + $0x40] sm:$0xff]
    %v28 = vld [vmem:[%s1 + $0x48] sm:$0xff]
    %v29 = vld [vmem:[%s1 + $0x50] sm:$0xff]
    %v30 = vld [vmem:[%s1 + $0x58] sm:$0xff]
    %v31 = vld [vmem:[%s1 + $0x60] sm:$0xff]
    %v32 = vld [vmem:[%s1 + $0x68] sm:$0xff]
    %v33 = vld [vmem:[%s1 + $0x70] sm:$0xff]
    %v34 = vld [vmem:[%s1 + $0x78] sm:$0xff]
    %v35 = vld [vmem:[%s2] sm:$0x1]
    %v37 = vperm.slane %v35, 0
    %41 = vst [vmem:[#allocation1] ss:$9 sm:$0xff] %v17
    %s42 = scalar_lea.vmem [#allocation1], 1
    %43 = vst [vmem:[%s42] ss:$9 sm:$0xff] %v18
    %v44 = vld [vmem:[#allocation1] sm:$0xff]
    %46 = vmatpush.msra.mxu0 %v34
    %47 = vmatpush.msra.mxu0 %v33
    %48 = vmatpush.msra.mxu0 %v32
    %49 = vmatpush.msra.mxu0 %v31
    %50 = vmatpush.msra.mxu0 %v30
    %51 = vmatpush.msra.mxu0 %v29
    %52 = vmatpush.msra.mxu0 %v28
    %53 = vmatpush.msra.mxu0 %v27
    %54 = vmatpush.msra.mxu0 %v26
    %55 = vmatpush.msra.mxu0 %v25
    %56 = vmatpush.msra.mxu0 %v24
    %57 = vmatpush.msra.mxu0 %v23
    %58 = vmatpush.msra.mxu0 %v22
    %59 = vmatpush.msra.mxu0 %v21
    %60 = vmatpush.msra.mxu0 %v20
    %61 = vmatpush.msra.mxu0 %v19
    %62 = vmatmul.f32.gmra.mxu0 %v44
    %v63 = vpop.f32.mrf.mxu0
    %v64 = vadd.f32 %v37, %v63
    %65 = vdwg.mxu0
    %66 = vst [vmem:[#allocation2] sm:$0x3] %v64
    // Predicated region
    $region14: #{_lambda_.83} parent=1 // pred_check
      _
    $region15: #{_lambda_.83} parent=1 // pred_check_branch
      %68 = sbr.rel (0) target = $region17
    $region16: #{_lambda_.83} parent=1 // pred_region
      %70 = vsyncadd [#allocation3], 0
      %s72 = sshll.u32 [#allocation2], 4
      %s73 = int_to_ptr.vmem [resolvable:$true] %s72
      %s74 = sshll.u32 %s3, 4
      %s75 = int_to_ptr.hbm [resolvable:$true] %s74
      %77 = dma.vmem_to_hbm [thread:$0]  %s73, 32, %s75, [#allocation3]
    $region17: #{_lambda_.83} parent=1 // pred_fallthru
      _
    // Predicated region
    $region18: #{_lambda_.83} parent=1 // pred_check
      _
    $region19: #{_lambda_.83} parent=1 // pred_check_branch
      %79 = sbr.rel (0) target = $region21
    $region20: #{_lambda_.83} parent=1 // pred_region
      %81 = dma.done [#allocation3], 32
    $region21: #{_lambda_.83} parent=1 // pred_fallthru
      _
    %82 = vsyncpa [#allocation3], 1

// kernel: _lambda_.68
$region0: #{_lambda_.68}
  #allocation0 [shape = 'u32[]', space=smem, size = 0x4, offset = 0x4, fixed_abs, tag = 'smem constant byte address 0x4 - core index']
  #allocation1 [shape = 'u32[72,128]{1,0:T(1,128)}', space=vmem, size = 0x9000, scoped, tag = 'internal scratch']
  %s0 = inlined_call_operand.vmem [shape: f32[2,128], index: 0, kind: input, shape index: {}]
  %s1 = inlined_call_operand.vmem [shape: f32[2,128], index: 1, kind: input, shape index: {}]
  %s2 = inlined_call_operand.vmem [shape: f32[1,128], index: 2, kind: input, shape index: {}]
  %s3 = inlined_call_operand.vmem [shape: f32[1,128], index: 3, kind: input, shape index: {}]
  %s4 = inlined_call_operand.vmem [shape: f32[2,128], index: 4, kind: input, shape index: {}, may-alias: {4,5}]
  %s5 = inlined_call_operand.vmem [shape: f32[2,128], index: 5, kind: output, shape index: {}, may-alias: {4,5}]
  %s6 = sld [smem:[#allocation0]]
  $region30: #{_lambda_.68} parent=0
    _
  %s8 = ssub.s32 1, %s6
  %s9 = scalar_select 0, %s8, %s6
  // Predicated region
  $region2: #{_lambda_.68} parent=0 // pred_check
    _
  $region3: #{_lambda_.68} parent=0 // pred_check_branch
    %11 = sbr.rel (0) target = $region5
  $region4: #{_lambda_.68} parent=0 // pred_region
    _
  $region5: #{_lambda_.68} parent=0 // pred_fallthru
    _
  // Predicated region
  $region6: #{_lambda_.68} parent=0 // pred_check
    _
  $region7: #{_lambda_.68} parent=0 // pred_check_branch
    %13 = sbr.rel (0) target = $region9
  $region8: #{_lambda_.68} parent=0 // pred_region
    _
  $region9: #{_lambda_.68} parent=0 // pred_fallthru
    _
  // Predicated region
  $region10: #{_lambda_.68} parent=0 // pred_check
    _
  $region11: #{_lambda_.68} parent=0 // pred_check_branch
    %15 = sbr.rel (0) target = $region13
  $region12: #{_lambda_.68} parent=0 // pred_region
    _
  $region13: #{_lambda_.68} parent=0 // pred_fallthru
    _
  // Predicated region
  $region14: #{_lambda_.68} parent=0 // pred_check
    _
  $region15: #{_lambda_.68} parent=0 // pred_check_branch
    %17 = sbr.rel (0) target = $region17
  $region16: #{_lambda_.68} parent=0 // pred_region
    _
  $region17: #{_lambda_.68} parent=0 // pred_fallthru
    _
  // Predicated region
  $region18: #{_lambda_.68} parent=0 // pred_check
    _
  $region19: #{_lambda_.68} parent=0 // pred_check_branch
    %19 = sbr.rel (0) target = $region21
  $region20: #{_lambda_.68} parent=0 // pred_region
    _
  $region21: #{_lambda_.68} parent=0 // pred_fallthru
    _
  %v20 = vld [vmem:[%s1] sm:$0x1]
  %v21 = vmul.f32 %v20, 0.5
  %v22 = vld [vmem:[%s1 + $0x1] sm:$0x1]
  %v23 = vmul.f32 %v22, 0.5
  %v24 = vmul.f32 %v21, %v21
  %v25 = vsub.f32 %v23, %v24
  %v26 = vmax.f32 %v25, 0.0
  %v27 = vld [vmem:[%s2] sm:$0x1]
  %v28 = vadd.f32 %v26, 1e-05
  %v29 = vrsqrt.pop %v28
  %v30 = vmul.f32 %v29, %v28
  %v31 = vmul.f32 %v30, %v29
  %v32 = vmul.f32 0.5, %v31
  %v33 = vsub.f32 1.5, %v32
  %v34 = vmul.f32 %v29, %v33
  %vm35 = vweird.f32 %v28
  %vm36 = vweird.f32 %v29
  %vm37 = vmor %vm35, %vm36
  %v38 = vsel %vm37, %v29, %v34
  %v39 = vmul.f32 %v27, %v38
  %v40 = vld [vmem:[%s3] sm:$0x1]
  %v41 = vmul.f32 %v21, %v39
  %v42 = vsub.f32 %v40, %v41
  %v43 = vld [vmem:[%s0] sm:$0x3]
  %v45 = vperm.slane %v39, 0
  %v47 = vmul.f32 %v43, %v45
  %v49 = vperm.slane %v42, 0
  %v51 = vadd.f32 %v47, %v49
  %v52 = vld [vmem:[%s4] sm:$0x3]
  %v53 = vadd.f32 %v51, %v52
  %v54 = vmax.f32 %v53, 0.0
  %55 = vst [vmem:[%s5] sm:$0x3] %v54
  // Predicated region
  $region22: #{_lambda_.68} parent=0 // pred_check
    _
  $region23: #{_lambda_.68} parent=0 // pred_check_branch
    %57 = sbr.rel (0) target = $region25
  $region24: #{_lambda_.68} parent=0 // pred_region
    _
  $region25: #{_lambda_.68} parent=0 // pred_fallthru
    _
  // Predicated region
  $region26: #{_lambda_.68} parent=0 // pred_check
    _
  $region27: #{_lambda_.68} parent=0 // pred_check_branch
    %59 = sbr.rel (0) target = $region29
  $region28: #{_lambda_.68} parent=0 // pred_region
    _
  $region29: #{_lambda_.68} parent=0 // pred_fallthru
    _

</llo_original>
